<compile_context>
chip_gen: v7x
topology: tpu7x:2x2x1
jax: 0.10.0
libtpu: 0.0.40
codegen_flags: <defaults>
</compile_context>

<pallas_src>
import functools

import jax
import jax.numpy as jnp
from jax.experimental import pallas as pl
from jax.experimental.pallas import tpu as pltpu

# ------------------------- model hyper-parameters (small) -------------------------
B = 2          # batch
S = 8          # sequence length
H = 32         # hidden size
NH = 2         # attention heads
DH = H // NH   # head dim
FF = 64        # feed-forward size
L = 2          # number of encoder layers
VOCAB = 64
NUM_CLASSES = 2
LN_EPS = 1e-12


def _layernorm(x, g, b):
    mu = jnp.mean(x, axis=-1, keepdims=True)
    var = jnp.mean((x - mu) ** 2, axis=-1, keepdims=True)
    return (x - mu) * jax.lax.rsqrt(var + LN_EPS) * g + b


# ------------------------- fused Pallas kernel -------------------------
def fused_forward_kernel(x_ref, mask_ref, tags_ref,
                         wqkv_ref, bqkv_ref, wo_ref,
                         w1_ref, w2_ref, vecs_ref, head_ref,
                         bl_ref, loss_ref, *, num_layers, num_heads, batch, seq):
    """Embedding LN + L encoder layers (unrolled) + Linear(H,2) head + CE(mean) loss."""
    bs, hdim = x_ref.shape                                 # (B*S, H) lane-dense slab
    dh = hdim // num_heads

    head = head_ref[...]                                   # (4, H): [wlt0, wlt1, emb_ln_g, emb_ln_b]
    # embedding LayerNorm fused into the kernel (no extra HBM round-trip of activations)
    h2 = _layernorm(x_ref[...], head[2], head[3])          # (B*S, H)

    # additive key-mask bias; broadcast to (B, S, S) hoisted ONCE for all layers/heads
    bias = (1.0 - mask_ref[...]) * jnp.float32(-1e9)       # (B, S)
    bias_b = jnp.broadcast_to(bias[:, None, :], (batch, seq, seq))

    for l in range(num_layers):                            # static unroll, L = 2
        vec = vecs_ref[l]                                  # (7, FF) packed per-layer vectors
        attn = jnp.zeros((bs, hdim), jnp.float32)
        for hd in range(num_heads):                        # static unroll, NH = 2
            # per-head projections: no lane-axis slicing of activations
            q = (jnp.dot(h2, wqkv_ref[l, 0, hd], preferred_element_type=jnp.float32)
                 + bqkv_ref[l, 0, hd]).reshape(batch, seq, dh)   # 1/sqrt(dh) folded into Q weights
            k = (jnp.dot(h2, wqkv_ref[l, 1, hd], preferred_element_type=jnp.float32)
                 + bqkv_ref[l, 1, hd]).reshape(batch, seq, dh)
            v = (jnp.dot(h2, wqkv_ref[l, 2, hd], preferred_element_type=jnp.float32)
                 + bqkv_ref[l, 2, hd]).reshape(batch, seq, dh)

            sc = jnp.einsum('bqd,bkd->bqk', q, k,
                            preferred_element_type=jnp.float32) + bias_b
            sc = sc - jnp.max(sc, axis=-1, keepdims=True)
            p = jnp.exp(sc)
            # approx reciprocal -> EUP slot; use approx=False for bit-closer torch parity
            p = p * pl.reciprocal(jnp.sum(p, axis=-1, keepdims=True), approx=True)
            ctx = jnp.einsum('bqk,bkd->bqd', p, v,
                             preferred_element_type=jnp.float32).reshape(bs, dh)
            # accumulate per-head output projection instead of concat + single matmul
            attn = attn + jnp.dot(ctx, wo_ref[l, hd], preferred_element_type=jnp.float32)

        attn = attn + vec[0, :hdim]                        # bo
        h1 = _layernorm(h2 + attn, vec[3, :hdim], vec[4, :hdim])

        ffn = jnp.dot(h1, w1_ref[l], preferred_element_type=jnp.float32) + vec[1]
        ffn = jax.nn.gelu(ffn, approximate=True)           # TODO(synk): HF BERT uses erf-gelu
        ffn = jnp.dot(ffn, w2_ref[l], preferred_element_type=jnp.float32) + vec[2, :hdim]
        h2 = _layernorm(h1 + ffn, vec[5, :hdim], vec[6, :hdim])

    # Dropout(0.3) == identity in eval mode.
    # Linear(H -> 2) head: head rows 0/1 hold the transposed weight (H contraction on lanes).
    l0 = jnp.sum(h2 * head[0], axis=-1, keepdims=True) + bl_ref[0, 0]   # (B*S, 1)
    l1 = jnp.sum(h2 * head[1], axis=-1, keepdims=True) + bl_ref[0, 1]   # (B*S, 1)

    # 2-class cross-entropy with closed-form logsumexp; mean over all B*S tokens
    tags = tags_ref[...]                                   # (B*S, 1) int32 in {0, 1} (VMEM)
    mx = jnp.maximum(l0, l1)
    lse = mx + jnp.log(1.0 + jnp.exp(-jnp.abs(l0 - l1)))
    tgt = jnp.where(tags == 0, l0, l1)
    loss_ref[0, 0] = jnp.mean(lse - tgt)


# ------------------------- Pallas wrapper -------------------------
_VMEM = pl.BlockSpec(memory_space=pltpu.MemorySpace.VMEM)
_SMEM = pl.BlockSpec(memory_space=pltpu.MemorySpace.SMEM)


def run_fused_forward(x2, masks_f, tags2, params):
    operands = (x2, masks_f, tags2,
                params['wqkv'], params['bqkv'], params['wo'],
                params['w1'], params['w2'], params['vecs'], params['head'],
                params['bl'])

    bs = B * S
    flops_layer = (2 * bs * H * 3 * H                # q/k/v projections (summed over heads)
                   + 2 * 2 * NH * B * S * S * DH     # score + context einsums
                   + 2 * bs * DH * H * NH            # per-head output projections
                   + 2 * bs * H * FF + 2 * bs * FF * H)   # feed-forward
    flops = L * flops_layer + 2 * bs * H * NUM_CLASSES
    transcendentals = L * (NH * B * S * S + bs * FF) + bs
    bytes_accessed = 4 * (sum(int(o.size) for o in operands) + 1)

    loss = pl.pallas_call(
        functools.partial(fused_forward_kernel,
                          num_layers=L, num_heads=NH, batch=B, seq=S),
        out_shape=jax.ShapeDtypeStruct((1, 1), jnp.float32),
        in_specs=[_VMEM] * 10 + [_SMEM],              # bl is the sole SMEM input
        out_specs=_SMEM,                              # scalar loss
        cost_estimate=pl.CostEstimate(flops=flops,
                                      transcendentals=transcendentals,
                                      bytes_accessed=bytes_accessed),
    )(*operands)
    return loss[0, 0]


# ------------------------- parameter init (deterministic) -------------------------
def init_params(key):
    ks = iter(jax.random.split(key, 10))

    def nrm(shape, scale=0.02):
        return (scale * jax.random.normal(next(ks), shape)).astype(jnp.float32)

    attn_scale = 1.0 / float(DH) ** 0.5
    wq = nrm((L, NH, H, DH)) * attn_scale            # 1/sqrt(DH) folded into Q weights
    wk = nrm((L, NH, H, DH))
    wv = nrm((L, NH, H, DH))
    wqkv = jnp.stack([wq, wk, wv], axis=1)           # (L, 3, NH, H, DH)
    bqkv = jnp.zeros((L, 3, NH, 1, DH), jnp.float32)  # (q bias would carry the same scale)

    wo = nrm((L, NH, DH, H))                         # per-head output projection
    w1 = nrm((L, H, FF))
    w2 = nrm((L, FF, H))

    # packed per-layer small vectors (one DMA): rows = [bo, b1, b2, ln1g, ln1b, ln2g, ln2b]
    vecs = jnp.zeros((L, 7, FF), jnp.float32)
    vecs = vecs.at[:, 3, :H].set(1.0)                # ln1 gamma
    vecs = vecs.at[:, 5, :H].set(1.0)                # ln2 gamma

    # head slab: rows = [linear_w[0], linear_w[1], emb_ln_gamma, emb_ln_beta]
    wlt = nrm((NUM_CLASSES, H))
    head = jnp.concatenate([wlt,
                            jnp.ones((1, H), jnp.float32),
                            jnp.zeros((1, H), jnp.float32)], axis=0)

    return {
        'tok_emb': nrm((VOCAB, H)),
        'pos_emb': nrm((S, H)),
        'wqkv': wqkv, 'bqkv': bqkv, 'wo': wo,
        'w1': w1, 'w2': w2, 'vecs': vecs,
        'head': head,
        'bl': jnp.zeros((1, NUM_CLASSES), jnp.float32),
    }


# ------------------------- forward pass (matches ModelForAspectExtraction.forward) -------------------------
@jax.jit
def forward(params, ids_tensors, tags_tensors, masks_tensors):
    # token + position embedding gather (plain JAX, fused into the same jitted executable)
    # TODO(synk): gather could move in-kernel (scalar-prefetched ids / jnp.take on a VMEM table)
    #             if VOCAB grows large enough to matter.
    emb = params['tok_emb'][ids_tensors] + params['pos_emb'][None, :, :]    # (B, S, H)
    x2 = emb.reshape(B * S, H).astype(jnp.float32)   # lane-dense slab; embedding LN runs in-kernel
    masks_f = masks_tensors.astype(jnp.float32)      # (B, S); bias prep happens in-kernel
    tags2 = tags_tensors.reshape(B * S, 1).astype(jnp.int32)

    # encoder + dropout(identity) + linear head + cross-entropy, all in ONE pallas_call
    return run_fused_forward(x2, masks_f, tags2, params)


if __name__ == "__main__":
    key = jax.random.PRNGKey(0)
    k_param, k_ids, k_tags = jax.random.split(key, 3)

    params = init_params(k_param)

    ids_tensors = jax.random.randint(k_ids, (B, S), 0, VOCAB, dtype=jnp.int32)
    tags_tensors = jax.random.randint(k_tags, (B, S), 0, NUM_CLASSES, dtype=jnp.int32)
    lengths = jnp.array([S, S - 2], dtype=jnp.int32)
    masks_tensors = (jnp.arange(S)[None, :] < lengths[:, None]).astype(jnp.int32)

    loss = forward(params, ids_tensors, tags_tensors, masks_tensors)
    loss = jax.block_until_ready(loss)
    assert jnp.isfinite(loss), f"non-finite loss: {loss}"
    print("KERNEL_OK")
</pallas_src>

<mosaic_0001>
module attributes {stable_mosaic.version = 11 : i64} {
  func.func @fused_forward_kernel(%arg0: memref<16x32xf32, #tpu.memory_space<vmem>>, %arg1: memref<2x8xf32, #tpu.memory_space<vmem>>, %arg2: memref<16x1xi32, #tpu.memory_space<vmem>>, %arg3: memref<2x3x2x32x16xf32, #tpu.memory_space<vmem>>, %arg4: memref<2x3x2x1x16xf32, #tpu.memory_space<vmem>>, %arg5: memref<2x2x16x32xf32, #tpu.memory_space<vmem>>, %arg6: memref<2x32x64xf32, #tpu.memory_space<vmem>>, %arg7: memref<2x64x32xf32, #tpu.memory_space<vmem>>, %arg8: memref<2x7x64xf32, #tpu.memory_space<vmem>>, %arg9: memref<4x32xf32, #tpu.memory_space<vmem>>, %arg10: memref<1x2xf32, #tpu.memory_space<smem>>, %arg11: memref<1x1xf32, #tpu.memory_space<smem>>) attributes {dimension_semantics = [], scalar_prefetch = 0 : i64, scratch_operands = 0 : i64, tpu.core_type = #tpu.core_type<tc>} {
    %c0 = arith.constant 0 : index
    %c0_0 = arith.constant 0 : index
    %0 = vector.load %arg9[%c0, %c0_0] : memref<4x32xf32, #tpu.memory_space<vmem>>, vector<4x32xf32>
    %c0_1 = arith.constant 0 : index
    %c0_2 = arith.constant 0 : index
    %1 = vector.load %arg0[%c0_1, %c0_2] : memref<16x32xf32, #tpu.memory_space<vmem>>, vector<16x32xf32>
    %2 = vector.extract_strided_slice %0 {offsets = [2, 0], sizes = [1, 32], strides = [1, 1]} : vector<4x32xf32> to vector<1x32xf32>
    %3 = vector.shape_cast %2 : vector<1x32xf32> to vector<32xf32>
    %4 = vector.extract_strided_slice %0 {offsets = [3, 0], sizes = [1, 32], strides = [1, 1]} : vector<4x32xf32> to vector<1x32xf32>
    %5 = vector.shape_cast %4 : vector<1x32xf32> to vector<32xf32>
    %cst = arith.constant dense<0.000000e+00> : vector<16xf32>
    %6 = vector.multi_reduction <add>, %1, %cst [1] : vector<16x32xf32> to vector<16xf32>
    %7 = vector.shape_cast %6 : vector<16xf32> to vector<16x1xf32>
    %cst_3 = arith.constant 3.200000e+01 : f32
    %8 = vector.broadcast %cst_3 : f32 to vector<16x1xf32>
    %9 = arith.divf %7, %8 : vector<16x1xf32>
    %10 = vector.broadcast %9 : vector<16x1xf32> to vector<16x32xf32>
    %11 = arith.subf %1, %10 : vector<16x32xf32>
    %12 = arith.mulf %11, %11 : vector<16x32xf32>
    %cst_4 = arith.constant dense<0.000000e+00> : vector<16xf32>
    %13 = vector.multi_reduction <add>, %12, %cst_4 [1] : vector<16x32xf32> to vector<16xf32>
    %14 = vector.shape_cast %13 : vector<16xf32> to vector<16x1xf32>
    %cst_5 = arith.constant 3.200000e+01 : f32
    %15 = vector.broadcast %cst_5 : f32 to vector<16x1xf32>
    %16 = arith.divf %14, %15 : vector<16x1xf32>
    %17 = vector.broadcast %9 : vector<16x1xf32> to vector<16x32xf32>
    %18 = arith.subf %1, %17 : vector<16x32xf32>
    %cst_6 = arith.constant 9.99999996E-13 : f32
    %19 = vector.broadcast %cst_6 : f32 to vector<16x1xf32>
    %20 = arith.addf %16, %19 : vector<16x1xf32>
    %21 = math.rsqrt %20 : vector<16x1xf32>
    %22 = vector.broadcast %21 : vector<16x1xf32> to vector<16x32xf32>
    %23 = arith.mulf %18, %22 : vector<16x32xf32>
    %24 = vector.shape_cast %3 : vector<32xf32> to vector<1x32xf32>
    %25 = vector.broadcast %24 : vector<1x32xf32> to vector<16x32xf32>
    %26 = arith.mulf %23, %25 : vector<16x32xf32>
    %27 = vector.shape_cast %5 : vector<32xf32> to vector<1x32xf32>
    %28 = vector.broadcast %27 : vector<1x32xf32> to vector<16x32xf32>
    %29 = arith.addf %26, %28 : vector<16x32xf32>
    %c0_7 = arith.constant 0 : index
    %c0_8 = arith.constant 0 : index
    %30 = vector.load %arg1[%c0_7, %c0_8] : memref<2x8xf32, #tpu.memory_space<vmem>>, vector<2x8xf32>
    %cst_9 = arith.constant 1.000000e+00 : f32
    %31 = vector.broadcast %cst_9 : f32 to vector<2x8xf32>
    %32 = arith.subf %31, %30 : vector<2x8xf32>
    %cst_10 = arith.constant -1.000000e+09 : f32
    %33 = vector.broadcast %cst_10 : f32 to vector<2x8xf32>
    %34 = arith.mulf %32, %33 : vector<2x8xf32>
    %35 = vector.shape_cast %34 : vector<2x8xf32> to vector<2x1x8xf32>
    %36 = vector.shape_cast %35 : vector<2x1x8xf32> to vector<2x1x8xf32>
    %37 = vector.broadcast %36 : vector<2x1x8xf32> to vector<2x8x8xf32>
    %c0_11 = arith.constant 0 : index
    %c0_12 = arith.constant 0 : index
    %c0_13 = arith.constant 0 : index
    %38 = vector.load %arg8[%c0_11, %c0_12, %c0_13] : memref<2x7x64xf32, #tpu.memory_space<vmem>>, vector<1x7x64xf32>
    %39 = vector.shape_cast %38 : vector<1x7x64xf32> to vector<7x64xf32>
    %cst_14 = arith.constant 0.000000e+00 : f32
    %40 = vector.broadcast %cst_14 : f32 to vector<16x32xf32>
    %c0_15 = arith.constant 0 : index
    %c0_16 = arith.constant 0 : index
    %c0_17 = arith.constant 0 : index
    %c0_18 = arith.constant 0 : index
    %c0_19 = arith.constant 0 : index
    %41 = vector.load %arg3[%c0_15, %c0_16, %c0_17, %c0_18, %c0_19] : memref<2x3x2x32x16xf32, #tpu.memory_space<vmem>>, vector<1x1x1x32x16xf32>
    %42 = vector.shape_cast %41 : vector<1x1x1x32x16xf32> to vector<32x16xf32>
    %cst_20 = arith.constant dense<0.000000e+00> : vector<16x16xf32>
    %43 = tpu.matmul %29, %42, %cst_20 {dimension_numbers = #tpu.dot_dimension_numbers<[1], [0], [0], [1], [0, 0, 1, 1], [], []>} : vector<16x32xf32>, vector<32x16xf32>, vector<16x16xf32> -> vector<16x16xf32>
    %c0_21 = arith.constant 0 : index
    %c0_22 = arith.constant 0 : index
    %c0_23 = arith.constant 0 : index
    %c0_24 = arith.constant 0 : index
    %c0_25 = arith.constant 0 : index
    %44 = vector.load %arg4[%c0_21, %c0_22, %c0_23, %c0_24, %c0_25] : memref<2x3x2x1x16xf32, #tpu.memory_space<vmem>>, vector<1x1x1x1x16xf32>
    %45 = vector.shape_cast %44 : vector<1x1x1x1x16xf32> to vector<1x16xf32>
    %46 = vector.broadcast %45 : vector<1x16xf32> to vector<16x16xf32>
    %47 = arith.addf %43, %46 : vector<16x16xf32>
    %48 = vector.shape_cast %47 : vector<16x16xf32> to vector<2x8x16xf32>
    %c0_26 = arith.constant 0 : index
    %c1 = arith.constant 1 : index
    %c0_27 = arith.constant 0 : index
    %c0_28 = arith.constant 0 : index
    %c0_29 = arith.constant 0 : index
    %49 = vector.load %arg3[%c0_26, %c1, %c0_27, %c0_28, %c0_29] : memref<2x3x2x32x16xf32, #tpu.memory_space<vmem>>, vector<1x1x1x32x16xf32>
    %50 = vector.shape_cast %49 : vector<1x1x1x32x16xf32> to vector<32x16xf32>
    %cst_30 = arith.constant dense<0.000000e+00> : vector<16x16xf32>
    %51 = tpu.matmul %29, %50, %cst_30 {dimension_numbers = #tpu.dot_dimension_numbers<[1], [0], [0], [1], [0, 0, 1, 1], [], []>} : vector<16x32xf32>, vector<32x16xf32>, vector<16x16xf32> -> vector<16x16xf32>
    %c0_31 = arith.constant 0 : index
    %c1_32 = arith.constant 1 : index
    %c0_33 = arith.constant 0 : index
    %c0_34 = arith.constant 0 : index
    %c0_35 = arith.constant 0 : index
    %52 = vector.load %arg4[%c0_31, %c1_32, %c0_33, %c0_34, %c0_35] : memref<2x3x2x1x16xf32, #tpu.memory_space<vmem>>, vector<1x1x1x1x16xf32>
    %53 = vector.shape_cast %52 : vector<1x1x1x1x16xf32> to vector<1x16xf32>
    %54 = vector.broadcast %53 : vector<1x16xf32> to vector<16x16xf32>
    %55 = arith.addf %51, %54 : vector<16x16xf32>
    %56 = vector.shape_cast %55 : vector<16x16xf32> to vector<2x8x16xf32>
    %c0_36 = arith.constant 0 : index
    %c2 = arith.constant 2 : index
    %c0_37 = arith.constant 0 : index
    %c0_38 = arith.constant 0 : index
    %c0_39 = arith.constant 0 : index
    %57 = vector.load %arg3[%c0_36, %c2, %c0_37, %c0_38, %c0_39] : memref<2x3x2x32x16xf32, #tpu.memory_space<vmem>>, vector<1x1x1x32x16xf32>
    %58 = vector.shape_cast %57 : vector<1x1x1x32x16xf32> to vector<32x16xf32>
    %cst_40 = arith.constant dense<0.000000e+00> : vector<16x16xf32>
    %59 = tpu.matmul %29, %58, %cst_40 {dimension_numbers = #tpu.dot_dimension_numbers<[1], [0], [0], [1], [0, 0, 1, 1], [], []>} : vector<16x32xf32>, vector<32x16xf32>, vector<16x16xf32> -> vector<16x16xf32>
    %c0_41 = arith.constant 0 : index
    %c2_42 = arith.constant 2 : index
    %c0_43 = arith.constant 0 : index
    %c0_44 = arith.constant 0 : index
    %c0_45 = arith.constant 0 : index
    %60 = vector.load %arg4[%c0_41, %c2_42, %c0_43, %c0_44, %c0_45] : memref<2x3x2x1x16xf32, #tpu.memory_space<vmem>>, vector<1x1x1x1x16xf32>
    %61 = vector.shape_cast %60 : vector<1x1x1x1x16xf32> to vector<1x16xf32>
    %62 = vector.broadcast %61 : vector<1x16xf32> to vector<16x16xf32>
    %63 = arith.addf %59, %62 : vector<16x16xf32>
    %64 = vector.shape_cast %63 : vector<16x16xf32> to vector<2x8x16xf32>
    "tpu.trace_start"() <{level = 10 : i32, message = "bqd,bkd->bqk"}> : () -> ()
    %cst_46 = arith.constant dense<0.000000e+00> : vector<2x8x8xf32>
    %65 = tpu.matmul %48, %56, %cst_46 {dimension_numbers = #tpu.dot_dimension_numbers<[2], [2], [1], [1], [0, 0, 0, 1, 1, 1], [0], [0]>} : vector<2x8x16xf32>, vector<2x8x16xf32>, vector<2x8x8xf32> -> vector<2x8x8xf32>
    "tpu.trace_stop"() : () -> ()
    %66 = arith.addf %65, %37 : vector<2x8x8xf32>
    %cst_47 = arith.constant dense<0xFF800000> : vector<2x8xf32>
    %67 = vector.multi_reduction <maximumf>, %66, %cst_47 [2] : vector<2x8x8xf32> to vector<2x8xf32>
    %68 = vector.shape_cast %67 : vector<2x8xf32> to vector<2x8x1xf32>
    %69 = vector.broadcast %68 : vector<2x8x1xf32> to vector<2x8x8xf32>
    %70 = arith.subf %66, %69 : vector<2x8x8xf32>
    %71 = math.exp %70 : vector<2x8x8xf32>
    %cst_48 = arith.constant dense<0.000000e+00> : vector<2x8xf32>
    %72 = vector.multi_reduction <add>, %71, %cst_48 [2] : vector<2x8x8xf32> to vector<2x8xf32>
    %73 = vector.shape_cast %72 : vector<2x8xf32> to vector<2x8x1xf32>
    %74 = tpu.reciprocal %73 {approx = true} : vector<2x8x1xf32> -> vector<2x8x1xf32>
    %75 = vector.broadcast %74 : vector<2x8x1xf32> to vector<2x8x8xf32>
    %76 = arith.mulf %71, %75 : vector<2x8x8xf32>
    "tpu.trace_start"() <{level = 10 : i32, message = "bqk,bkd->bqd"}> : () -> ()
    %cst_49 = arith.constant dense<0.000000e+00> : vector<2x8x16xf32>
    %77 = tpu.matmul %76, %64, %cst_49 {dimension_numbers = #tpu.dot_dimension_numbers<[2], [1], [1], [2], [0, 0, 0, 1, 1, 2], [0], [0]>} : vector<2x8x8xf32>, vector<2x8x16xf32>, vector<2x8x16xf32> -> vector<2x8x16xf32>
    "tpu.trace_stop"() : () -> ()
    %78 = vector.shape_cast %77 : vector<2x8x16xf32> to vector<16x16xf32>
    %c0_50 = arith.constant 0 : index
    %c0_51 = arith.constant 0 : index
    %c0_52 = arith.constant 0 : index
    %c0_53 = arith.constant 0 : index
    %79 = vector.load %arg5[%c0_50, %c0_51, %c0_52, %c0_53] : memref<2x2x16x32xf32, #tpu.memory_space<vmem>>, vector<1x1x16x32xf32>
    %80 = vector.shape_cast %79 : vector<1x1x16x32xf32> to vector<16x32xf32>
    %cst_54 = arith.constant dense<0.000000e+00> : vector<16x32xf32>
    %81 = tpu.matmul %78, %80, %cst_54 {dimension_numbers = #tpu.dot_dimension_numbers<[1], [0], [0], [1], [0, 0, 1, 1], [], []>} : vector<16x16xf32>, vector<16x32xf32>, vector<16x32xf32> -> vector<16x32xf32>
    %82 = arith.addf %40, %81 : vector<16x32xf32>
    %c0_55 = arith.constant 0 : index
    %c0_56 = arith.constant 0 : index
    %c1_57 = arith.constant 1 : index
    %c0_58 = arith.constant 0 : index
    %c0_59 = arith.constant 0 : index
    %83 = vector.load %arg3[%c0_55, %c0_56, %c1_57, %c0_58, %c0_59] : memref<2x3x2x32x16xf32, #tpu.memory_space<vmem>>, vector<1x1x1x32x16xf32>
    %84 = vector.shape_cast %83 : vector<1x1x1x32x16xf32> to vector<32x16xf32>
    %cst_60 = arith.constant dense<0.000000e+00> : vector<16x16xf32>
    %85 = tpu.matmul %29, %84, %cst_60 {dimension_numbers = #tpu.dot_dimension_numbers<[1], [0], [0], [1], [0, 0, 1, 1], [], []>} : vector<16x32xf32>, vector<32x16xf32>, vector<16x16xf32> -> vector<16x16xf32>
    %c0_61 = arith.constant 0 : index
    %c0_62 = arith.constant 0 : index
    %c1_63 = arith.constant 1 : index
    %c0_64 = arith.constant 0 : index
    %c0_65 = arith.constant 0 : index
    %86 = vector.load %arg4[%c0_61, %c0_62, %c1_63, %c0_64, %c0_65] : memref<2x3x2x1x16xf32, #tpu.memory_space<vmem>>, vector<1x1x1x1x16xf32>
    %87 = vector.shape_cast %86 : vector<1x1x1x1x16xf32> to vector<1x16xf32>
    %88 = vector.broadcast %87 : vector<1x16xf32> to vector<16x16xf32>
    %89 = arith.addf %85, %88 : vector<16x16xf32>
    %90 = vector.shape_cast %89 : vector<16x16xf32> to vector<2x8x16xf32>
    %c0_66 = arith.constant 0 : index
    %c1_67 = arith.constant 1 : index
    %c1_68 = arith.constant 1 : index
    %c0_69 = arith.constant 0 : index
    %c0_70 = arith.constant 0 : index
    %91 = vector.load %arg3[%c0_66, %c1_67, %c1_68, %c0_69, %c0_70] : memref<2x3x2x32x16xf32, #tpu.memory_space<vmem>>, vector<1x1x1x32x16xf32>
    %92 = vector.shape_cast %91 : vector<1x1x1x32x16xf32> to vector<32x16xf32>
    %cst_71 = arith.constant dense<0.000000e+00> : vector<16x16xf32>
    %93 = tpu.matmul %29, %92, %cst_71 {dimension_numbers = #tpu.dot_dimension_numbers<[1], [0], [0], [1], [0, 0, 1, 1], [], []>} : vector<16x32xf32>, vector<32x16xf32>, vector<16x16xf32> -> vector<16x16xf32>
    %c0_72 = arith.constant 0 : index
    %c1_73 = arith.constant 1 : index
    %c1_74 = arith.constant 1 : index
    %c0_75 = arith.constant 0 : index
    %c0_76 = arith.constant 0 : index
    %94 = vector.load %arg4[%c0_72, %c1_73, %c1_74, %c0_75, %c0_76] : memref<2x3x2x1x16xf32, #tpu.memory_space<vmem>>, vector<1x1x1x1x16xf32>
    %95 = vector.shape_cast %94 : vector<1x1x1x1x16xf32> to vector<1x16xf32>
    %96 = vector.broadcast %95 : vector<1x16xf32> to vector<16x16xf32>
    %97 = arith.addf %93, %96 : vector<16x16xf32>
    %98 = vector.shape_cast %97 : vector<16x16xf32> to vector<2x8x16xf32>
    %c0_77 = arith.constant 0 : index
    %c2_78 = arith.constant 2 : index
    %c1_79 = arith.constant 1 : index
    %c0_80 = arith.constant 0 : index
    %c0_81 = arith.constant 0 : index
    %99 = vector.load %arg3[%c0_77, %c2_78, %c1_79, %c0_80, %c0_81] : memref<2x3x2x32x16xf32, #tpu.memory_space<vmem>>, vector<1x1x1x32x16xf32>
    %100 = vector.shape_cast %99 : vector<1x1x1x32x16xf32> to vector<32x16xf32>
    %cst_82 = arith.constant dense<0.000000e+00> : vector<16x16xf32>
    %101 = tpu.matmul %29, %100, %cst_82 {dimension_numbers = #tpu.dot_dimension_numbers<[1], [0], [0], [1], [0, 0, 1, 1], [], []>} : vector<16x32xf32>, vector<32x16xf32>, vector<16x16xf32> -> vector<16x16xf32>
    %c0_83 = arith.constant 0 : index
    %c2_84 = arith.constant 2 : index
    %c1_85 = arith.constant 1 : index
    %c0_86 = arith.constant 0 : index
    %c0_87 = arith.constant 0 : index
    %102 = vector.load %arg4[%c0_83, %c2_84, %c1_85, %c0_86, %c0_87] : memref<2x3x2x1x16xf32, #tpu.memory_space<vmem>>, vector<1x1x1x1x16xf32>
    %103 = vector.shape_cast %102 : vector<1x1x1x1x16xf32> to vector<1x16xf32>
    %104 = vector.broadcast %103 : vector<1x16xf32> to vector<16x16xf32>
    %105 = arith.addf %101, %104 : vector<16x16xf32>
    %106 = vector.shape_cast %105 : vector<16x16xf32> to vector<2x8x16xf32>
    "tpu.trace_start"() <{level = 10 : i32, message = "bqd,bkd->bqk"}> : () -> ()
    %cst_88 = arith.constant dense<0.000000e+00> : vector<2x8x8xf32>
    %107 = tpu.matmul %90, %98, %cst_88 {dimension_numbers = #tpu.dot_dimension_numbers<[2], [2], [1], [1], [0, 0, 0, 1, 1, 1], [0], [0]>} : vector<2x8x16xf32>, vector<2x8x16xf32>, vector<2x8x8xf32> -> vector<2x8x8xf32>
    "tpu.trace_stop"() : () -> ()
    %108 = arith.addf %107, %37 : vector<2x8x8xf32>
    %cst_89 = arith.constant dense<0xFF800000> : vector<2x8xf32>
    %109 = vector.multi_reduction <maximumf>, %108, %cst_89 [2] : vector<2x8x8xf32> to vector<2x8xf32>
    %110 = vector.shape_cast %109 : vector<2x8xf32> to vector<2x8x1xf32>
    %111 = vector.broadcast %110 : vector<2x8x1xf32> to vector<2x8x8xf32>
    %112 = arith.subf %108, %111 : vector<2x8x8xf32>
    %113 = math.exp %112 : vector<2x8x8xf32>
    %cst_90 = arith.constant dense<0.000000e+00> : vector<2x8xf32>
    %114 = vector.multi_reduction <add>, %113, %cst_90 [2] : vector<2x8x8xf32> to vector<2x8xf32>
    %115 = vector.shape_cast %114 : vector<2x8xf32> to vector<2x8x1xf32>
    %116 = tpu.reciprocal %115 {approx = true} : vector<2x8x1xf32> -> vector<2x8x1xf32>
    %117 = vector.broadcast %116 : vector<2x8x1xf32> to vector<2x8x8xf32>
    %118 = arith.mulf %113, %117 : vector<2x8x8xf32>
    "tpu.trace_start"() <{level = 10 : i32, message = "bqk,bkd->bqd"}> : () -> ()
    %cst_91 = arith.constant dense<0.000000e+00> : vector<2x8x16xf32>
    %119 = tpu.matmul %118, %106, %cst_91 {dimension_numbers = #tpu.dot_dimension_numbers<[2], [1], [1], [2], [0, 0, 0, 1, 1, 2], [0], [0]>} : vector<2x8x8xf32>, vector<2x8x16xf32>, vector<2x8x16xf32> -> vector<2x8x16xf32>
    "tpu.trace_stop"() : () -> ()
    %120 = vector.shape_cast %119 : vector<2x8x16xf32> to vector<16x16xf32>
    %c0_92 = arith.constant 0 : index
    %c1_93 = arith.constant 1 : index
    %c0_94 = arith.constant 0 : index
    %c0_95 = arith.constant 0 : index
    %121 = vector.load %arg5[%c0_92, %c1_93, %c0_94, %c0_95] : memref<2x2x16x32xf32, #tpu.memory_space<vmem>>, vector<1x1x16x32xf32>
    %122 = vector.shape_cast %121 : vector<1x1x16x32xf32> to vector<16x32xf32>
    %cst_96 = arith.constant dense<0.000000e+00> : vector<16x32xf32>
    %123 = tpu.matmul %120, %122, %cst_96 {dimension_numbers = #tpu.dot_dimension_numbers<[1], [0], [0], [1], [0, 0, 1, 1], [], []>} : vector<16x16xf32>, vector<16x32xf32>, vector<16x32xf32> -> vector<16x32xf32>
    %124 = arith.addf %82, %123 : vector<16x32xf32>
    %125 = vector.extract_strided_slice %39 {offsets = [0, 0], sizes = [1, 32], strides = [1, 1]} : vector<7x64xf32> to vector<1x32xf32>
    %126 = vector.shape_cast %125 : vector<1x32xf32> to vector<32xf32>
    %127 = vector.shape_cast %126 : vector<32xf32> to vector<1x32xf32>
    %128 = vector.broadcast %127 : vector<1x32xf32> to vector<16x32xf32>
    %129 = arith.addf %124, %128 : vector<16x32xf32>
    %130 = arith.addf %29, %129 : vector<16x32xf32>
    %131 = vector.extract_strided_slice %39 {offsets = [3, 0], sizes = [1, 32], strides = [1, 1]} : vector<7x64xf32> to vector<1x32xf32>
    %132 = vector.shape_cast %131 : vector<1x32xf32> to vector<32xf32>
    %133 = vector.extract_strided_slice %39 {offsets = [4, 0], sizes = [1, 32], strides = [1, 1]} : vector<7x64xf32> to vector<1x32xf32>
    %134 = vector.shape_cast %133 : vector<1x32xf32> to vector<32xf32>
    %cst_97 = arith.constant dense<0.000000e+00> : vector<16xf32>
    %135 = vector.multi_reduction <add>, %130, %cst_97 [1] : vector<16x32xf32> to vector<16xf32>
    %136 = vector.shape_cast %135 : vector<16xf32> to vector<16x1xf32>
    %cst_98 = arith.constant 3.200000e+01 : f32
    %137 = vector.broadcast %cst_98 : f32 to vector<16x1xf32>
    %138 = arith.divf %136, %137 : vector<16x1xf32>
    %139 = vector.broadcast %138 : vector<16x1xf32> to vector<16x32xf32>
    %140 = arith.subf %130, %139 : vector<16x32xf32>
    %141 = arith.mulf %140, %140 : vector<16x32xf32>
    %cst_99 = arith.constant dense<0.000000e+00> : vector<16xf32>
    %142 = vector.multi_reduction <add>, %141, %cst_99 [1] : vector<16x32xf32> to vector<16xf32>
    %143 = vector.shape_cast %142 : vector<16xf32> to vector<16x1xf32>
    %cst_100 = arith.constant 3.200000e+01 : f32
    %144 = vector.broadcast %cst_100 : f32 to vector<16x1xf32>
    %145 = arith.divf %143, %144 : vector<16x1xf32>
    %146 = vector.broadcast %138 : vector<16x1xf32> to vector<16x32xf32>
    %147 = arith.subf %130, %146 : vector<16x32xf32>
    %cst_101 = arith.constant 9.99999996E-13 : f32
    %148 = vector.broadcast %cst_101 : f32 to vector<16x1xf32>
    %149 = arith.addf %145, %148 : vector<16x1xf32>
    %150 = math.rsqrt %149 : vector<16x1xf32>
    %151 = vector.broadcast %150 : vector<16x1xf32> to vector<16x32xf32>
    %152 = arith.mulf %147, %151 : vector<16x32xf32>
    %153 = vector.shape_cast %132 : vector<32xf32> to vector<1x32xf32>
    %154 = vector.broadcast %153 : vector<1x32xf32> to vector<16x32xf32>
    %155 = arith.mulf %152, %154 : vector<16x32xf32>
    %156 = vector.shape_cast %134 : vector<32xf32> to vector<1x32xf32>
    %157 = vector.broadcast %156 : vector<1x32xf32> to vector<16x32xf32>
    %158 = arith.addf %155, %157 : vector<16x32xf32>
    %c0_102 = arith.constant 0 : index
    %c0_103 = arith.constant 0 : index
    %c0_104 = arith.constant 0 : index
    %159 = vector.load %arg6[%c0_102, %c0_103, %c0_104] : memref<2x32x64xf32, #tpu.memory_space<vmem>>, vector<1x32x64xf32>
    %160 = vector.shape_cast %159 : vector<1x32x64xf32> to vector<32x64xf32>
    %cst_105 = arith.constant dense<0.000000e+00> : vector<16x64xf32>
    %161 = tpu.matmul %158, %160, %cst_105 {dimension_numbers = #tpu.dot_dimension_numbers<[1], [0], [0], [1], [0, 0, 1, 1], [], []>} : vector<16x32xf32>, vector<32x64xf32>, vector<16x64xf32> -> vector<16x64xf32>
    %162 = vector.extract_strided_slice %39 {offsets = [1, 0], sizes = [1, 64], strides = [1, 1]} : vector<7x64xf32> to vector<1x64xf32>
    %163 = vector.shape_cast %162 : vector<1x64xf32> to vector<64xf32>
    %164 = vector.shape_cast %163 : vector<64xf32> to vector<1x64xf32>
    %165 = vector.broadcast %164 : vector<1x64xf32> to vector<16x64xf32>
    %166 = arith.addf %161, %165 : vector<16x64xf32>
    %167 = arith.mulf %166, %166 : vector<16x64xf32>
    %168 = arith.mulf %166, %167 : vector<16x64xf32>
    %cst_106 = arith.constant 4.471500e-02 : f32
    %169 = vector.broadcast %cst_106 : f32 to vector<16x64xf32>
    %170 = arith.mulf %169, %168 : vector<16x64xf32>
    %171 = arith.addf %166, %170 : vector<16x64xf32>
    %cst_107 = arith.constant 0.797884583 : f32
    %172 = vector.broadcast %cst_107 : f32 to vector<16x64xf32>
    %173 = arith.mulf %172, %171 : vector<16x64xf32>
    %174 = math.tanh %173 : vector<16x64xf32>
    %cst_108 = arith.constant 1.000000e+00 : f32
    %175 = vector.broadcast %cst_108 : f32 to vector<16x64xf32>
    %176 = arith.addf %175, %174 : vector<16x64xf32>
    %cst_109 = arith.constant 5.000000e-01 : f32
    %177 = vector.broadcast %cst_109 : f32 to vector<16x64xf32>
    %178 = arith.mulf %177, %176 : vector<16x64xf32>
    %179 = arith.mulf %166, %178 : vector<16x64xf32>
    %c0_110 = arith.constant 0 : index
    %c0_111 = arith.constant 0 : index
    %c0_112 = arith.constant 0 : index
    %180 = vector.load %arg7[%c0_110, %c0_111, %c0_112] : memref<2x64x32xf32, #tpu.memory_space<vmem>>, vector<1x64x32xf32>
    %181 = vector.shape_cast %180 : vector<1x64x32xf32> to vector<64x32xf32>
    %cst_113 = arith.constant dense<0.000000e+00> : vector<16x32xf32>
    %182 = tpu.matmul %179, %181, %cst_113 {dimension_numbers = #tpu.dot_dimension_numbers<[1], [0], [0], [1], [0, 0, 1, 1], [], []>} : vector<16x64xf32>, vector<64x32xf32>, vector<16x32xf32> -> vector<16x32xf32>
    %183 = vector.extract_strided_slice %39 {offsets = [2, 0], sizes = [1, 32], strides = [1, 1]} : vector<7x64xf32> to vector<1x32xf32>
    %184 = vector.shape_cast %183 : vector<1x32xf32> to vector<32xf32>
    %185 = vector.shape_cast %184 : vector<32xf32> to vector<1x32xf32>
    %186 = vector.broadcast %185 : vector<1x32xf32> to vector<16x32xf32>
    %187 = arith.addf %182, %186 : vector<16x32xf32>
    %188 = arith.addf %158, %187 : vector<16x32xf32>
    %189 = vector.extract_strided_slice %39 {offsets = [5, 0], sizes = [1, 32], strides = [1, 1]} : vector<7x64xf32> to vector<1x32xf32>
    %190 = vector.shape_cast %189 : vector<1x32xf32> to vector<32xf32>
    %191 = vector.extract_strided_slice %39 {offsets = [6, 0], sizes = [1, 32], strides = [1, 1]} : vector<7x64xf32> to vector<1x32xf32>
    %192 = vector.shape_cast %191 : vector<1x32xf32> to vector<32xf32>
    %cst_114 = arith.constant dense<0.000000e+00> : vector<16xf32>
    %193 = vector.multi_reduction <add>, %188, %cst_114 [1] : vector<16x32xf32> to vector<16xf32>
    %194 = vector.shape_cast %193 : vector<16xf32> to vector<16x1xf32>
    %cst_115 = arith.constant 3.200000e+01 : f32
    %195 = vector.broadcast %cst_115 : f32 to vector<16x1xf32>
    %196 = arith.divf %194, %195 : vector<16x1xf32>
    %197 = vector.broadcast %196 : vector<16x1xf32> to vector<16x32xf32>
    %198 = arith.subf %188, %197 : vector<16x32xf32>
    %199 = arith.mulf %198, %198 : vector<16x32xf32>
    %cst_116 = arith.constant dense<0.000000e+00> : vector<16xf32>
    %200 = vector.multi_reduction <add>, %199, %cst_116 [1] : vector<16x32xf32> to vector<16xf32>
    %201 = vector.shape_cast %200 : vector<16xf32> to vector<16x1xf32>
    %cst_117 = arith.constant 3.200000e+01 : f32
    %202 = vector.broadcast %cst_117 : f32 to vector<16x1xf32>
    %203 = arith.divf %201, %202 : vector<16x1xf32>
    %204 = vector.broadcast %196 : vector<16x1xf32> to vector<16x32xf32>
    %205 = arith.subf %188, %204 : vector<16x32xf32>
    %cst_118 = arith.constant 9.99999996E-13 : f32
    %206 = vector.broadcast %cst_118 : f32 to vector<16x1xf32>
    %207 = arith.addf %203, %206 : vector<16x1xf32>
    %208 = math.rsqrt %207 : vector<16x1xf32>
    %209 = vector.broadcast %208 : vector<16x1xf32> to vector<16x32xf32>
    %210 = arith.mulf %205, %209 : vector<16x32xf32>
    %211 = vector.shape_cast %190 : vector<32xf32> to vector<1x32xf32>
    %212 = vector.broadcast %211 : vector<1x32xf32> to vector<16x32xf32>
    %213 = arith.mulf %210, %212 : vector<16x32xf32>
    %214 = vector.shape_cast %192 : vector<32xf32> to vector<1x32xf32>
    %215 = vector.broadcast %214 : vector<1x32xf32> to vector<16x32xf32>
    %216 = arith.addf %213, %215 : vector<16x32xf32>
    %c1_119 = arith.constant 1 : index
    %c0_120 = arith.constant 0 : index
    %c0_121 = arith.constant 0 : index
    %217 = vector.load %arg8[%c1_119, %c0_120, %c0_121] : memref<2x7x64xf32, #tpu.memory_space<vmem>>, vector<1x7x64xf32>
    %218 = vector.shape_cast %217 : vector<1x7x64xf32> to vector<7x64xf32>
    %cst_122 = arith.constant 0.000000e+00 : f32
    %219 = vector.broadcast %cst_122 : f32 to vector<16x32xf32>
    %c1_123 = arith.constant 1 : index
    %c0_124 = arith.constant 0 : index
    %c0_125 = arith.constant 0 : index
    %c0_126 = arith.constant 0 : index
    %c0_127 = arith.constant 0 : index
    %220 = vector.load %arg3[%c1_123, %c0_124, %c0_125, %c0_126, %c0_127] : memref<2x3x2x32x16xf32, #tpu.memory_space<vmem>>, vector<1x1x1x32x16xf32>
    %221 = vector.shape_cast %220 : vector<1x1x1x32x16xf32> to vector<32x16xf32>
    %cst_128 = arith.constant dense<0.000000e+00> : vector<16x16xf32>
    %222 = tpu.matmul %216, %221, %cst_128 {dimension_numbers = #tpu.dot_dimension_numbers<[1], [0], [0], [1], [0, 0, 1, 1], [], []>} : vector<16x32xf32>, vector<32x16xf32>, vector<16x16xf32> -> vector<16x16xf32>
    %c1_129 = arith.constant 1 : index
    %c0_130 = arith.constant 0 : index
    %c0_131 = arith.constant 0 : index
    %c0_132 = arith.constant 0 : index
    %c0_133 = arith.constant 0 : index
    %223 = vector.load %arg4[%c1_129, %c0_130, %c0_131, %c0_132, %c0_133] : memref<2x3x2x1x16xf32, #tpu.memory_space<vmem>>, vector<1x1x1x1x16xf32>
    %224 = vector.shape_cast %223 : vector<1x1x1x1x16xf32> to vector<1x16xf32>
    %225 = vector.broadcast %224 : vector<1x16xf32> to vector<16x16xf32>
    %226 = arith.addf %222, %225 : vector<16x16xf32>
    %227 = vector.shape_cast %226 : vector<16x16xf32> to vector<2x8x16xf32>
    %c1_134 = arith.constant 1 : index
    %c1_135 = arith.constant 1 : index
    %c0_136 = arith.constant 0 : index
    %c0_137 = arith.constant 0 : index
    %c0_138 = arith.constant 0 : index
    %228 = vector.load %arg3[%c1_134, %c1_135, %c0_136, %c0_137, %c0_138] : memref<2x3x2x32x16xf32, #tpu.memory_space<vmem>>, vector<1x1x1x32x16xf32>
    %229 = vector.shape_cast %228 : vector<1x1x1x32x16xf32> to vector<32x16xf32>
    %cst_139 = arith.constant dense<0.000000e+00> : vector<16x16xf32>
    %230 = tpu.matmul %216, %229, %cst_139 {dimension_numbers = #tpu.dot_dimension_numbers<[1], [0], [0], [1], [0, 0, 1, 1], [], []>} : vector<16x32xf32>, vector<32x16xf32>, vector<16x16xf32> -> vector<16x16xf32>
    %c1_140 = arith.constant 1 : index
    %c1_141 = arith.constant 1 : index
    %c0_142 = arith.constant 0 : index
    %c0_143 = arith.constant 0 : index
    %c0_144 = arith.constant 0 : index
    %231 = vector.load %arg4[%c1_140, %c1_141, %c0_142, %c0_143, %c0_144] : memref<2x3x2x1x16xf32, #tpu.memory_space<vmem>>, vector<1x1x1x1x16xf32>
    %232 = vector.shape_cast %231 : vector<1x1x1x1x16xf32> to vector<1x16xf32>
    %233 = vector.broadcast %232 : vector<1x16xf32> to vector<16x16xf32>
    %234 = arith.addf %230, %233 : vector<16x16xf32>
    %235 = vector.shape_cast %234 : vector<16x16xf32> to vector<2x8x16xf32>
    %c1_145 = arith.constant 1 : index
    %c2_146 = arith.constant 2 : index
    %c0_147 = arith.constant 0 : index
    %c0_148 = arith.constant 0 : index
    %c0_149 = arith.constant 0 : index
    %236 = vector.load %arg3[%c1_145, %c2_146, %c0_147, %c0_148, %c0_149] : memref<2x3x2x32x16xf32, #tpu.memory_space<vmem>>, vector<1x1x1x32x16xf32>
    %237 = vector.shape_cast %236 : vector<1x1x1x32x16xf32> to vector<32x16xf32>
    %cst_150 = arith.constant dense<0.000000e+00> : vector<16x16xf32>
    %238 = tpu.matmul %216, %237, %cst_150 {dimension_numbers = #tpu.dot_dimension_numbers<[1], [0], [0], [1], [0, 0, 1, 1], [], []>} : vector<16x32xf32>, vector<32x16xf32>, vector<16x16xf32> -> vector<16x16xf32>
    %c1_151 = arith.constant 1 : index
    %c2_152 = arith.constant 2 : index
    %c0_153 = arith.constant 0 : index
    %c0_154 = arith.constant 0 : index
    %c0_155 = arith.constant 0 : index
    %239 = vector.load %arg4[%c1_151, %c2_152, %c0_153, %c0_154, %c0_155] : memref<2x3x2x1x16xf32, #tpu.memory_space<vmem>>, vector<1x1x1x1x16xf32>
    %240 = vector.shape_cast %239 : vector<1x1x1x1x16xf32> to vector<1x16xf32>
    %241 = vector.broadcast %240 : vector<1x16xf32> to vector<16x16xf32>
    %242 = arith.addf %238, %241 : vector<16x16xf32>
    %243 = vector.shape_cast %242 : vector<16x16xf32> to vector<2x8x16xf32>
    "tpu.trace_start"() <{level = 10 : i32, message = "bqd,bkd->bqk"}> : () -> ()
    %cst_156 = arith.constant dense<0.000000e+00> : vector<2x8x8xf32>
    %244 = tpu.matmul %227, %235, %cst_156 {dimension_numbers = #tpu.dot_dimension_numbers<[2], [2], [1], [1], [0, 0, 0, 1, 1, 1], [0], [0]>} : vector<2x8x16xf32>, vector<2x8x16xf32>, vector<2x8x8xf32> -> vector<2x8x8xf32>
    "tpu.trace_stop"() : () -> ()
    %245 = arith.addf %244, %37 : vector<2x8x8xf32>
    %cst_157 = arith.constant dense<0xFF800000> : vector<2x8xf32>
    %246 = vector.multi_reduction <maximumf>, %245, %cst_157 [2] : vector<2x8x8xf32> to vector<2x8xf32>
    %247 = vector.shape_cast %246 : vector<2x8xf32> to vector<2x8x1xf32>
    %248 = vector.broadcast %247 : vector<2x8x1xf32> to vector<2x8x8xf32>
    %249 = arith.subf %245, %248 : vector<2x8x8xf32>
    %250 = math.exp %249 : vector<2x8x8xf32>
    %cst_158 = arith.constant dense<0.000000e+00> : vector<2x8xf32>
    %251 = vector.multi_reduction <add>, %250, %cst_158 [2] : vector<2x8x8xf32> to vector<2x8xf32>
    %252 = vector.shape_cast %251 : vector<2x8xf32> to vector<2x8x1xf32>
    %253 = tpu.reciprocal %252 {approx = true} : vector<2x8x1xf32> -> vector<2x8x1xf32>
    %254 = vector.broadcast %253 : vector<2x8x1xf32> to vector<2x8x8xf32>
    %255 = arith.mulf %250, %254 : vector<2x8x8xf32>
    "tpu.trace_start"() <{level = 10 : i32, message = "bqk,bkd->bqd"}> : () -> ()
    %cst_159 = arith.constant dense<0.000000e+00> : vector<2x8x16xf32>
    %256 = tpu.matmul %255, %243, %cst_159 {dimension_numbers = #tpu.dot_dimension_numbers<[2], [1], [1], [2], [0, 0, 0, 1, 1, 2], [0], [0]>} : vector<2x8x8xf32>, vector<2x8x16xf32>, vector<2x8x16xf32> -> vector<2x8x16xf32>
    "tpu.trace_stop"() : () -> ()
    %257 = vector.shape_cast %256 : vector<2x8x16xf32> to vector<16x16xf32>
    %c1_160 = arith.constant 1 : index
    %c0_161 = arith.constant 0 : index
    %c0_162 = arith.constant 0 : index
    %c0_163 = arith.constant 0 : index
    %258 = vector.load %arg5[%c1_160, %c0_161, %c0_162, %c0_163] : memref<2x2x16x32xf32, #tpu.memory_space<vmem>>, vector<1x1x16x32xf32>
    %259 = vector.shape_cast %258 : vector<1x1x16x32xf32> to vector<16x32xf32>
    %cst_164 = arith.constant dense<0.000000e+00> : vector<16x32xf32>
    %260 = tpu.matmul %257, %259, %cst_164 {dimension_numbers = #tpu.dot_dimension_numbers<[1], [0], [0], [1], [0, 0, 1, 1], [], []>} : vector<16x16xf32>, vector<16x32xf32>, vector<16x32xf32> -> vector<16x32xf32>
    %261 = arith.addf %219, %260 : vector<16x32xf32>
    %c1_165 = arith.constant 1 : index
    %c0_166 = arith.constant 0 : index
    %c1_167 = arith.constant 1 : index
    %c0_168 = arith.constant 0 : index
    %c0_169 = arith.constant 0 : index
    %262 = vector.load %arg3[%c1_165, %c0_166, %c1_167, %c0_168, %c0_169] : memref<2x3x2x32x16xf32, #tpu.memory_space<vmem>>, vector<1x1x1x32x16xf32>
    %263 = vector.shape_cast %262 : vector<1x1x1x32x16xf32> to vector<32x16xf32>
    %cst_170 = arith.constant dense<0.000000e+00> : vector<16x16xf32>
    %264 = tpu.matmul %216, %263, %cst_170 {dimension_numbers = #tpu.dot_dimension_numbers<[1], [0], [0], [1], [0, 0, 1, 1], [], []>} : vector<16x32xf32>, vector<32x16xf32>, vector<16x16xf32> -> vector<16x16xf32>
    %c1_171 = arith.constant 1 : index
    %c0_172 = arith.constant 0 : index
    %c1_173 = arith.constant 1 : index
    %c0_174 = arith.constant 0 : index
    %c0_175 = arith.constant 0 : index
    %265 = vector.load %arg4[%c1_171, %c0_172, %c1_173, %c0_174, %c0_175] : memref<2x3x2x1x16xf32, #tpu.memory_space<vmem>>, vector<1x1x1x1x16xf32>
    %266 = vector.shape_cast %265 : vector<1x1x1x1x16xf32> to vector<1x16xf32>
    %267 = vector.broadcast %266 : vector<1x16xf32> to vector<16x16xf32>
    %268 = arith.addf %264, %267 : vector<16x16xf32>
    %269 = vector.shape_cast %268 : vector<16x16xf32> to vector<2x8x16xf32>
    %c1_176 = arith.constant 1 : index
    %c1_177 = arith.constant 1 : index
    %c1_178 = arith.constant 1 : index
    %c0_179 = arith.constant 0 : index
    %c0_180 = arith.constant 0 : index
    %270 = vector.load %arg3[%c1_176, %c1_177, %c1_178, %c0_179, %c0_180] : memref<2x3x2x32x16xf32, #tpu.memory_space<vmem>>, vector<1x1x1x32x16xf32>
    %271 = vector.shape_cast %270 : vector<1x1x1x32x16xf32> to vector<32x16xf32>
    %cst_181 = arith.constant dense<0.000000e+00> : vector<16x16xf32>
    %272 = tpu.matmul %216, %271, %cst_181 {dimension_numbers = #tpu.dot_dimension_numbers<[1], [0], [0], [1], [0, 0, 1, 1], [], []>} : vector<16x32xf32>, vector<32x16xf32>, vector<16x16xf32> -> vector<16x16xf32>
    %c1_182 = arith.constant 1 : index
    %c1_183 = arith.constant 1 : index
    %c1_184 = arith.constant 1 : index
    %c0_185 = arith.constant 0 : index
    %c0_186 = arith.constant 0 : index
    %273 = vector.load %arg4[%c1_182, %c1_183, %c1_184, %c0_185, %c0_186] : memref<2x3x2x1x16xf32, #tpu.memory_space<vmem>>, vector<1x1x1x1x16xf32>
    %274 = vector.shape_cast %273 : vector<1x1x1x1x16xf32> to vector<1x16xf32>
    %275 = vector.broadcast %274 : vector<1x16xf32> to vector<16x16xf32>
    %276 = arith.addf %272, %275 : vector<16x16xf32>
    %277 = vector.shape_cast %276 : vector<16x16xf32> to vector<2x8x16xf32>
    %c1_187 = arith.constant 1 : index
    %c2_188 = arith.constant 2 : index
    %c1_189 = arith.constant 1 : index
    %c0_190 = arith.constant 0 : index
    %c0_191 = arith.constant 0 : index
    %278 = vector.load %arg3[%c1_187, %c2_188, %c1_189, %c0_190, %c0_191] : memref<2x3x2x32x16xf32, #tpu.memory_space<vmem>>, vector<1x1x1x32x16xf32>
    %279 = vector.shape_cast %278 : vector<1x1x1x32x16xf32> to vector<32x16xf32>
    %cst_192 = arith.constant dense<0.000000e+00> : vector<16x16xf32>
    %280 = tpu.matmul %216, %279, %cst_192 {dimension_numbers = #tpu.dot_dimension_numbers<[1], [0], [0], [1], [0, 0, 1, 1], [], []>} : vector<16x32xf32>, vector<32x16xf32>, vector<16x16xf32> -> vector<16x16xf32>
    %c1_193 = arith.constant 1 : index
    %c2_194 = arith.constant 2 : index
    %c1_195 = arith.constant 1 : index
    %c0_196 = arith.constant 0 : index
    %c0_197 = arith.constant 0 : index
    %281 = vector.load %arg4[%c1_193, %c2_194, %c1_195, %c0_196, %c0_197] : memref<2x3x2x1x16xf32, #tpu.memory_space<vmem>>, vector<1x1x1x1x16xf32>
    %282 = vector.shape_cast %281 : vector<1x1x1x1x16xf32> to vector<1x16xf32>
    %283 = vector.broadcast %282 : vector<1x16xf32> to vector<16x16xf32>
    %284 = arith.addf %280, %283 : vector<16x16xf32>
    %285 = vector.shape_cast %284 : vector<16x16xf32> to vector<2x8x16xf32>
    "tpu.trace_start"() <{level = 10 : i32, message = "bqd,bkd->bqk"}> : () -> ()
    %cst_198 = arith.constant dense<0.000000e+00> : vector<2x8x8xf32>
    %286 = tpu.matmul %269, %277, %cst_198 {dimension_numbers = #tpu.dot_dimension_numbers<[2], [2], [1], [1], [0, 0, 0, 1, 1, 1], [0], [0]>} : vector<2x8x16xf32>, vector<2x8x16xf32>, vector<2x8x8xf32> -> vector<2x8x8xf32>
    "tpu.trace_stop"() : () -> ()
    %287 = arith.addf %286, %37 : vector<2x8x8xf32>
    %cst_199 = arith.constant dense<0xFF800000> : vector<2x8xf32>
    %288 = vector.multi_reduction <maximumf>, %287, %cst_199 [2] : vector<2x8x8xf32> to vector<2x8xf32>
    %289 = vector.shape_cast %288 : vector<2x8xf32> to vector<2x8x1xf32>
    %290 = vector.broadcast %289 : vector<2x8x1xf32> to vector<2x8x8xf32>
    %291 = arith.subf %287, %290 : vector<2x8x8xf32>
    %292 = math.exp %291 : vector<2x8x8xf32>
    %cst_200 = arith.constant dense<0.000000e+00> : vector<2x8xf32>
    %293 = vector.multi_reduction <add>, %292, %cst_200 [2] : vector<2x8x8xf32> to vector<2x8xf32>
    %294 = vector.shape_cast %293 : vector<2x8xf32> to vector<2x8x1xf32>
    %295 = tpu.reciprocal %294 {approx = true} : vector<2x8x1xf32> -> vector<2x8x1xf32>
    %296 = vector.broadcast %295 : vector<2x8x1xf32> to vector<2x8x8xf32>
    %297 = arith.mulf %292, %296 : vector<2x8x8xf32>
    "tpu.trace_start"() <{level = 10 : i32, message = "bqk,bkd->bqd"}> : () -> ()
    %cst_201 = arith.constant dense<0.000000e+00> : vector<2x8x16xf32>
    %298 = tpu.matmul %297, %285, %cst_201 {dimension_numbers = #tpu.dot_dimension_numbers<[2], [1], [1], [2], [0, 0, 0, 1, 1, 2], [0], [0]>} : vector<2x8x8xf32>, vector<2x8x16xf32>, vector<2x8x16xf32> -> vector<2x8x16xf32>
    "tpu.trace_stop"() : () -> ()
    %299 = vector.shape_cast %298 : vector<2x8x16xf32> to vector<16x16xf32>
    %c1_202 = arith.constant 1 : index
    %c1_203 = arith.constant 1 : index
    %c0_204 = arith.constant 0 : index
    %c0_205 = arith.constant 0 : index
    %300 = vector.load %arg5[%c1_202, %c1_203, %c0_204, %c0_205] : memref<2x2x16x32xf32, #tpu.memory_space<vmem>>, vector<1x1x16x32xf32>
    %301 = vector.shape_cast %300 : vector<1x1x16x32xf32> to vector<16x32xf32>
    %cst_206 = arith.constant dense<0.000000e+00> : vector<16x32xf32>
    %302 = tpu.matmul %299, %301, %cst_206 {dimension_numbers = #tpu.dot_dimension_numbers<[1], [0], [0], [1], [0, 0, 1, 1], [], []>} : vector<16x16xf32>, vector<16x32xf32>, vector<16x32xf32> -> vector<16x32xf32>
    %303 = arith.addf %261, %302 : vector<16x32xf32>
    %304 = vector.extract_strided_slice %218 {offsets = [0, 0], sizes = [1, 32], strides = [1, 1]} : vector<7x64xf32> to vector<1x32xf32>
    %305 = vector.shape_cast %304 : vector<1x32xf32> to vector<32xf32>
    %306 = vector.shape_cast %305 : vector<32xf32> to vector<1x32xf32>
    %307 = vector.broadcast %306 : vector<1x32xf32> to vector<16x32xf32>
    %308 = arith.addf %303, %307 : vector<16x32xf32>
    %309 = arith.addf %216, %308 : vector<16x32xf32>
    %310 = vector.extract_strided_slice %218 {offsets = [3, 0], sizes = [1, 32], strides = [1, 1]} : vector<7x64xf32> to vector<1x32xf32>
    %311 = vector.shape_cast %310 : vector<1x32xf32> to vector<32xf32>
    %312 = vector.extract_strided_slice %218 {offsets = [4, 0], sizes = [1, 32], strides = [1, 1]} : vector<7x64xf32> to vector<1x32xf32>
    %313 = vector.shape_cast %312 : vector<1x32xf32> to vector<32xf32>
    %cst_207 = arith.constant dense<0.000000e+00> : vector<16xf32>
    %314 = vector.multi_reduction <add>, %309, %cst_207 [1] : vector<16x32xf32> to vector<16xf32>
    %315 = vector.shape_cast %314 : vector<16xf32> to vector<16x1xf32>
    %cst_208 = arith.constant 3.200000e+01 : f32
    %316 = vector.broadcast %cst_208 : f32 to vector<16x1xf32>
    %317 = arith.divf %315, %316 : vector<16x1xf32>
    %318 = vector.broadcast %317 : vector<16x1xf32> to vector<16x32xf32>
    %319 = arith.subf %309, %318 : vector<16x32xf32>
    %320 = arith.mulf %319, %319 : vector<16x32xf32>
    %cst_209 = arith.constant dense<0.000000e+00> : vector<16xf32>
    %321 = vector.multi_reduction <add>, %320, %cst_209 [1] : vector<16x32xf32> to vector<16xf32>
    %322 = vector.shape_cast %321 : vector<16xf32> to vector<16x1xf32>
    %cst_210 = arith.constant 3.200000e+01 : f32
    %323 = vector.broadcast %cst_210 : f32 to vector<16x1xf32>
    %324 = arith.divf %322, %323 : vector<16x1xf32>
    %325 = vector.broadcast %317 : vector<16x1xf32> to vector<16x32xf32>
    %326 = arith.subf %309, %325 : vector<16x32xf32>
    %cst_211 = arith.constant 9.99999996E-13 : f32
    %327 = vector.broadcast %cst_211 : f32 to vector<16x1xf32>
    %328 = arith.addf %324, %327 : vector<16x1xf32>
    %329 = math.rsqrt %328 : vector<16x1xf32>
    %330 = vector.broadcast %329 : vector<16x1xf32> to vector<16x32xf32>
    %331 = arith.mulf %326, %330 : vector<16x32xf32>
    %332 = vector.shape_cast %311 : vector<32xf32> to vector<1x32xf32>
    %333 = vector.broadcast %332 : vector<1x32xf32> to vector<16x32xf32>
    %334 = arith.mulf %331, %333 : vector<16x32xf32>
    %335 = vector.shape_cast %313 : vector<32xf32> to vector<1x32xf32>
    %336 = vector.broadcast %335 : vector<1x32xf32> to vector<16x32xf32>
    %337 = arith.addf %334, %336 : vector<16x32xf32>
    %c1_212 = arith.constant 1 : index
    %c0_213 = arith.constant 0 : index
    %c0_214 = arith.constant 0 : index
    %338 = vector.load %arg6[%c1_212, %c0_213, %c0_214] : memref<2x32x64xf32, #tpu.memory_space<vmem>>, vector<1x32x64xf32>
    %339 = vector.shape_cast %338 : vector<1x32x64xf32> to vector<32x64xf32>
    %cst_215 = arith.constant dense<0.000000e+00> : vector<16x64xf32>
    %340 = tpu.matmul %337, %339, %cst_215 {dimension_numbers = #tpu.dot_dimension_numbers<[1], [0], [0], [1], [0, 0, 1, 1], [], []>} : vector<16x32xf32>, vector<32x64xf32>, vector<16x64xf32> -> vector<16x64xf32>
    %341 = vector.extract_strided_slice %218 {offsets = [1, 0], sizes = [1, 64], strides = [1, 1]} : vector<7x64xf32> to vector<1x64xf32>
    %342 = vector.shape_cast %341 : vector<1x64xf32> to vector<64xf32>
    %343 = vector.shape_cast %342 : vector<64xf32> to vector<1x64xf32>
    %344 = vector.broadcast %343 : vector<1x64xf32> to vector<16x64xf32>
    %345 = arith.addf %340, %344 : vector<16x64xf32>
    %346 = arith.mulf %345, %345 : vector<16x64xf32>
    %347 = arith.mulf %345, %346 : vector<16x64xf32>
    %cst_216 = arith.constant 4.471500e-02 : f32
    %348 = vector.broadcast %cst_216 : f32 to vector<16x64xf32>
    %349 = arith.mulf %348, %347 : vector<16x64xf32>
    %350 = arith.addf %345, %349 : vector<16x64xf32>
    %cst_217 = arith.constant 0.797884583 : f32
    %351 = vector.broadcast %cst_217 : f32 to vector<16x64xf32>
    %352 = arith.mulf %351, %350 : vector<16x64xf32>
    %353 = math.tanh %352 : vector<16x64xf32>
    %cst_218 = arith.constant 1.000000e+00 : f32
    %354 = vector.broadcast %cst_218 : f32 to vector<16x64xf32>
    %355 = arith.addf %354, %353 : vector<16x64xf32>
    %cst_219 = arith.constant 5.000000e-01 : f32
    %356 = vector.broadcast %cst_219 : f32 to vector<16x64xf32>
    %357 = arith.mulf %356, %355 : vector<16x64xf32>
    %358 = arith.mulf %345, %357 : vector<16x64xf32>
    %c1_220 = arith.constant 1 : index
    %c0_221 = arith.constant 0 : index
    %c0_222 = arith.constant 0 : index
    %359 = vector.load %arg7[%c1_220, %c0_221, %c0_222] : memref<2x64x32xf32, #tpu.memory_space<vmem>>, vector<1x64x32xf32>
    %360 = vector.shape_cast %359 : vector<1x64x32xf32> to vector<64x32xf32>
    %cst_223 = arith.constant dense<0.000000e+00> : vector<16x32xf32>
    %361 = tpu.matmul %358, %360, %cst_223 {dimension_numbers = #tpu.dot_dimension_numbers<[1], [0], [0], [1], [0, 0, 1, 1], [], []>} : vector<16x64xf32>, vector<64x32xf32>, vector<16x32xf32> -> vector<16x32xf32>
    %362 = vector.extract_strided_slice %218 {offsets = [2, 0], sizes = [1, 32], strides = [1, 1]} : vector<7x64xf32> to vector<1x32xf32>
    %363 = vector.shape_cast %362 : vector<1x32xf32> to vector<32xf32>
    %364 = vector.shape_cast %363 : vector<32xf32> to vector<1x32xf32>
    %365 = vector.broadcast %364 : vector<1x32xf32> to vector<16x32xf32>
    %366 = arith.addf %361, %365 : vector<16x32xf32>
    %367 = arith.addf %337, %366 : vector<16x32xf32>
    %368 = vector.extract_strided_slice %218 {offsets = [5, 0], sizes = [1, 32], strides = [1, 1]} : vector<7x64xf32> to vector<1x32xf32>
    %369 = vector.shape_cast %368 : vector<1x32xf32> to vector<32xf32>
    %370 = vector.extract_strided_slice %218 {offsets = [6, 0], sizes = [1, 32], strides = [1, 1]} : vector<7x64xf32> to vector<1x32xf32>
    %371 = vector.shape_cast %370 : vector<1x32xf32> to vector<32xf32>
    %cst_224 = arith.constant dense<0.000000e+00> : vector<16xf32>
    %372 = vector.multi_reduction <add>, %367, %cst_224 [1] : vector<16x32xf32> to vector<16xf32>
    %373 = vector.shape_cast %372 : vector<16xf32> to vector<16x1xf32>
    %cst_225 = arith.constant 3.200000e+01 : f32
    %374 = vector.broadcast %cst_225 : f32 to vector<16x1xf32>
    %375 = arith.divf %373, %374 : vector<16x1xf32>
    %376 = vector.broadcast %375 : vector<16x1xf32> to vector<16x32xf32>
    %377 = arith.subf %367, %376 : vector<16x32xf32>
    %378 = arith.mulf %377, %377 : vector<16x32xf32>
    %cst_226 = arith.constant dense<0.000000e+00> : vector<16xf32>
    %379 = vector.multi_reduction <add>, %378, %cst_226 [1] : vector<16x32xf32> to vector<16xf32>
    %380 = vector.shape_cast %379 : vector<16xf32> to vector<16x1xf32>
    %cst_227 = arith.constant 3.200000e+01 : f32
    %381 = vector.broadcast %cst_227 : f32 to vector<16x1xf32>
    %382 = arith.divf %380, %381 : vector<16x1xf32>
    %383 = vector.broadcast %375 : vector<16x1xf32> to vector<16x32xf32>
    %384 = arith.subf %367, %383 : vector<16x32xf32>
    %cst_228 = arith.constant 9.99999996E-13 : f32
    %385 = vector.broadcast %cst_228 : f32 to vector<16x1xf32>
    %386 = arith.addf %382, %385 : vector<16x1xf32>
    %387 = math.rsqrt %386 : vector<16x1xf32>
    %388 = vector.broadcast %387 : vector<16x1xf32> to vector<16x32xf32>
    %389 = arith.mulf %384, %388 : vector<16x32xf32>
    %390 = vector.shape_cast %369 : vector<32xf32> to vector<1x32xf32>
    %391 = vector.broadcast %390 : vector<1x32xf32> to vector<16x32xf32>
    %392 = arith.mulf %389, %391 : vector<16x32xf32>
    %393 = vector.shape_cast %371 : vector<32xf32> to vector<1x32xf32>
    %394 = vector.broadcast %393 : vector<1x32xf32> to vector<16x32xf32>
    %395 = arith.addf %392, %394 : vector<16x32xf32>
    %396 = vector.extract_strided_slice %0 {offsets = [0, 0], sizes = [1, 32], strides = [1, 1]} : vector<4x32xf32> to vector<1x32xf32>
    %397 = vector.shape_cast %396 : vector<1x32xf32> to vector<32xf32>
    %398 = vector.shape_cast %397 : vector<32xf32> to vector<1x32xf32>
    %399 = vector.broadcast %398 : vector<1x32xf32> to vector<16x32xf32>
    %400 = arith.mulf %395, %399 : vector<16x32xf32>
    %cst_229 = arith.constant dense<0.000000e+00> : vector<16xf32>
    %401 = vector.multi_reduction <add>, %400, %cst_229 [1] : vector<16x32xf32> to vector<16xf32>
    %402 = vector.shape_cast %401 : vector<16xf32> to vector<16x1xf32>
    %c0_230 = arith.constant 0 : index
    %c0_231 = arith.constant 0 : index
    %403 = memref.load %arg10[%c0_230, %c0_231] : memref<1x2xf32, #tpu.memory_space<smem>>
    %404 = vector.broadcast %403 : f32 to vector<16x1xf32>
    %405 = arith.addf %402, %404 : vector<16x1xf32>
    %406 = vector.extract_strided_slice %0 {offsets = [1, 0], sizes = [1, 32], strides = [1, 1]} : vector<4x32xf32> to vector<1x32xf32>
    %407 = vector.shape_cast %406 : vector<1x32xf32> to vector<32xf32>
    %408 = vector.shape_cast %407 : vector<32xf32> to vector<1x32xf32>
    %409 = vector.broadcast %408 : vector<1x32xf32> to vector<16x32xf32>
    %410 = arith.mulf %395, %409 : vector<16x32xf32>
    %cst_232 = arith.constant dense<0.000000e+00> : vector<16xf32>
    %411 = vector.multi_reduction <add>, %410, %cst_232 [1] : vector<16x32xf32> to vector<16xf32>
    %412 = vector.shape_cast %411 : vector<16xf32> to vector<16x1xf32>
    %c0_233 = arith.constant 0 : index
    %c1_234 = arith.constant 1 : index
    %413 = memref.load %arg10[%c0_233, %c1_234] : memref<1x2xf32, #tpu.memory_space<smem>>
    %414 = vector.broadcast %413 : f32 to vector<16x1xf32>
    %415 = arith.addf %412, %414 : vector<16x1xf32>
    %c0_235 = arith.constant 0 : index
    %c0_236 = arith.constant 0 : index
    %416 = vector.load %arg2[%c0_235, %c0_236] : memref<16x1xi32, #tpu.memory_space<vmem>>, vector<16x1xi32>
    %417 = arith.maximumf %405, %415 : vector<16x1xf32>
    %418 = arith.subf %405, %415 : vector<16x1xf32>
    %419 = math.absf %418 : vector<16x1xf32>
    %cst_237 = arith.constant 0.000000e+00 : f32
    %420 = vector.broadcast %cst_237 : f32 to vector<16x1xf32>
    %421 = arith.subf %420, %419 : vector<16x1xf32>
    %422 = math.exp %421 : vector<16x1xf32>
    %cst_238 = arith.constant 1.000000e+00 : f32
    %423 = vector.broadcast %cst_238 : f32 to vector<16x1xf32>
    %424 = arith.addf %423, %422 : vector<16x1xf32>
    %425 = math.log %424 : vector<16x1xf32>
    %426 = arith.addf %417, %425 : vector<16x1xf32>
    %c0_i32 = arith.constant 0 : i32
    %427 = vector.broadcast %c0_i32 : i32 to vector<16x1xi32>
    %428 = arith.cmpi eq, %416, %427 : vector<16x1xi32>
    %429 = arith.select %428, %405, %415 : vector<16x1xi1>, vector<16x1xf32>
    %430 = arith.subf %426, %429 : vector<16x1xf32>
    %431 = vector.shape_cast %430 : vector<16x1xf32> to vector<1x16x1xf32>
    %cst_239 = arith.constant dense<0.000000e+00> : vector<1xf32>
    %432 = vector.multi_reduction <add>, %431, %cst_239 [1, 2] : vector<1x16x1xf32> to vector<1xf32>
    %433 = vector.shape_cast %432 : vector<1xf32> to vector<1x1x1xf32>
    %434 = vector.extract %433[0, 0, 0] : f32 from vector<1x1x1xf32>
    %cst_240 = arith.constant 1.600000e+01 : f32
    %435 = arith.divf %434, %cst_240 : f32
    %c0_241 = arith.constant 0 : index
    %c0_242 = arith.constant 0 : index
    %436 = memref.load %arg11[%c0_241, %c0_242] : memref<1x1xf32, #tpu.memory_space<smem>>
    memref.store %435, %arg11[%c0_241, %c0_242] : memref<1x1xf32, #tpu.memory_space<smem>>
    return
  }
}

</mosaic_0001>

<llo_original>
// kernel: forward.1
$region0: #{forward.1}
  #allocation0 [shape = 'u32[]', space=smem, size = 0x4, offset = 0x4, fixed_abs, tag = 'smem constant byte address 0x4 - core index']
  #allocation1 [shape = 'u32[144,128]{1,0:T(1,128)}', space=vmem, size = 0x12000, scoped, tag = 'internal scratch']
  %s0 = inlined_call_operand.vmem [shape: f32[16,32], index: 0, kind: input, shape index: {}]
  %s1 = inlined_call_operand.vmem [shape: f32[2,8], index: 1, kind: input, shape index: {}]
  %s2 = inlined_call_operand.vmem [shape: s32[16,1], index: 2, kind: input, shape index: {}]
  %s3 = inlined_call_operand.vmem [shape: f32[2,3,2,32,16], index: 3, kind: input, shape index: {}]
  %s4 = inlined_call_operand.vmem [shape: f32[2,3,2,1,16], index: 4, kind: input, shape index: {}]
  %s5 = inlined_call_operand.vmem [shape: f32[2,2,16,32], index: 5, kind: input, shape index: {}]
  %s6 = inlined_call_operand.vmem [shape: f32[2,32,64], index: 6, kind: input, shape index: {}]
  %s7 = inlined_call_operand.vmem [shape: f32[2,64,32], index: 7, kind: input, shape index: {}]
  %s8 = inlined_call_operand.vmem [shape: f32[2,7,64], index: 8, kind: input, shape index: {}]
  %s9 = inlined_call_operand.vmem [shape: f32[4,32], index: 9, kind: input, shape index: {}]
  %s10 = inlined_call_operand.vmem [shape: f32[1,2], index: 10, kind: input, shape index: {}]
  %s11 = inlined_call_operand.hbm [shape: f32[1,1], index: 11, kind: output, shape index: {}]
  %s12 = sld [smem:[#allocation0]]
  $region58: #{forward.1} parent=0
    _
  %s14 = ssub.s32 1, %s12
  %s15 = scalar_select 0, %s14, %s12
  $region1: #{forward.1} parent=0
    #allocation2 [shape = 'u8[512]{0}', space=smem, size = 0x200, scoped, tag = 'input window, operand 10, single buffered']
    #allocation3 [shape = 's32[1]{0}', space=sflag, size = 0x4, scoped, tag = 'scoped memory for forward.1']
    #allocation4 [shape = 's32[1]{0}', space=sflag, size = 0x4, scoped, tag = 'scoped memory for forward.1']
    #allocation5 [shape = 'u8[512]{0}', space=smem, size = 0x200, scoped, tag = 'output window, operand 0, single buffered']
    %16 = vsyncpa [#allocation4], 0
    %17 = vsyncpa [#allocation3], 0
    // Predicated region
    $region2: #{forward.1} parent=1 // pred_check
      _
    $region3: #{forward.1} parent=1 // pred_check_branch
      %19 = sbr.rel (0) target = $region5
    $region4: #{forward.1} parent=1 // pred_region
      _
    $region5: #{forward.1} parent=1 // pred_fallthru
      _
    // Predicated region
    $region6: #{forward.1} parent=1 // pred_check
      _
    $region7: #{forward.1} parent=1 // pred_check_branch
      %21 = sbr.rel (0) target = $region9
    $region8: #{forward.1} parent=1 // pred_region
      _
    $region9: #{forward.1} parent=1 // pred_fallthru
      _
    // Predicated region
    $region10: #{forward.1} parent=1 // pred_check
      _
    $region11: #{forward.1} parent=1 // pred_check_branch
      %23 = sbr.rel (0) target = $region13
    $region12: #{forward.1} parent=1 // pred_region
      _
    $region13: #{forward.1} parent=1 // pred_fallthru
      _
    // Predicated region
    $region14: #{forward.1} parent=1 // pred_check
      _
    $region15: #{forward.1} parent=1 // pred_check_branch
      %25 = sbr.rel (0) target = $region17
    $region16: #{forward.1} parent=1 // pred_region
      _
    $region17: #{forward.1} parent=1 // pred_fallthru
      _
    // Predicated region
    $region18: #{forward.1} parent=1 // pred_check
      _
    $region19: #{forward.1} parent=1 // pred_check_branch
      %27 = sbr.rel (0) target = $region21
    $region20: #{forward.1} parent=1 // pred_region
      _
    $region21: #{forward.1} parent=1 // pred_fallthru
      _
    // Predicated region
    $region22: #{forward.1} parent=1 // pred_check
      _
    $region23: #{forward.1} parent=1 // pred_check_branch
      %29 = sbr.rel (0) target = $region25
    $region24: #{forward.1} parent=1 // pred_region
      _
    $region25: #{forward.1} parent=1 // pred_fallthru
      _
    // Predicated region
    $region26: #{forward.1} parent=1 // pred_check
      _
    $region27: #{forward.1} parent=1 // pred_check_branch
      %31 = sbr.rel (0) target = $region29
    $region28: #{forward.1} parent=1 // pred_region
      _
    $region29: #{forward.1} parent=1 // pred_fallthru
      _
    // Predicated region
    $region30: #{forward.1} parent=1 // pred_check
      _
    $region31: #{forward.1} parent=1 // pred_check_branch
      %33 = sbr.rel (0) target = $region33
    $region32: #{forward.1} parent=1 // pred_region
      _
    $region33: #{forward.1} parent=1 // pred_fallthru
      _
    // Predicated region
    $region34: #{forward.1} parent=1 // pred_check
      _
    $region35: #{forward.1} parent=1 // pred_check_branch
      %35 = sbr.rel (0) target = $region37
    $region36: #{forward.1} parent=1 // pred_region
      _
    $region37: #{forward.1} parent=1 // pred_fallthru
      _
    // Predicated region
    $region38: #{forward.1} parent=1 // pred_check
      _
    $region39: #{forward.1} parent=1 // pred_check_branch
      %37 = sbr.rel (0) target = $region41
    $region40: #{forward.1} parent=1 // pred_region
      _
    $region41: #{forward.1} parent=1 // pred_fallthru
      _
    // Predicated region
    $region42: #{forward.1} parent=1 // pred_check
      _
    $region43: #{forward.1} parent=1 // pred_check_branch
      %39 = sbr.rel (0) target = $region45
    $region44: #{forward.1} parent=1 // pred_region
      %s41 = ssub.s32 16, 16
      %42 = vsyncadd [#allocation4], %s41
      %s44 = sshll.u32 %s10, 4
      %s45 = int_to_ptr.vmem [resolvable:$true] %s44
      %47 = dma.vmem_to_smem %s45, 16, [#allocation2], [#allocation4]
    $region45: #{forward.1} parent=1 // pred_fallthru
      _
    // Predicated region
    $region46: #{forward.1} parent=1 // pred_check
      _
    $region47: #{forward.1} parent=1 // pred_check_branch
      %49 = sbr.rel (0) target = $region49
    $region48: #{forward.1} parent=1 // pred_region
      %50 = dma.done [#allocation4], 16
    $region49: #{forward.1} parent=1 // pred_fallthru
      _
    %51 = sfence
    %v52 = vld [vmem:[%s9] sm:$0xf]
    %v53 = vld [vmem:[%s0] sm:$0xff]
    %v54 = vld [vmem:[%s0 + $0x8] sm:$0xff]
    %vm55 = vcmask 261120
    %v56 = vsel %vm55, %v53, 0.0
    %57 = vadd.xlane.f32.xlu0 %v56
    %v58 = vpop.xlane.xlu0 %57
    %v59 = vsel %vm55, %v54, 0.0
    %60 = vadd.xlane.f32.xlu0 %v59
    %v61 = vpop.xlane.xlu0 %60
    %v62 = vrcp.pop 32.0
    %v63 = vmul.f32 %v58, %v62
    %v64 = vmul.f32 %v61, %v62
    %v65 = vsub.f32 %v53, %v63
    %v66 = vsub.f32 %v54, %v64
    %v67 = vmul.f32 %v65, %v65
    %v68 = vmul.f32 %v66, %v66
    %v69 = vsel %vm55, %v67, 0.0
    %70 = vadd.xlane.f32.xlu0 %v69
    %v71 = vpop.xlane.xlu0 %70
    %v72 = vsel %vm55, %v68, 0.0
    %73 = vadd.xlane.f32.xlu0 %v72
    %v74 = vpop.xlane.xlu0 %73
    %v75 = vmul.f32 %v71, %v62
    %v76 = vmul.f32 %v74, %v62
    %v77 = vadd.f32 %v75, 1e-12
    %v78 = vadd.f32 %v76, 1e-12
    %v79 = vrsqrt.pop %v77
    %v80 = vrsqrt.pop %v78
    %v81 = vmul.f32 %v65, %v79
    %v82 = vmul.f32 %v66, %v80
    %v83 = vlaneseq
    %v84 = vshrl.u32 %v83, 7
    %v85 = vsub.s32 2, %v84
    %v86 = vrot.slane %v52, %v85
    %v87 = vmul.f32 %v81, %v86
    %v88 = vmul.f32 %v82, %v86
    %v89 = vlaneseq
    %v90 = vshrl.u32 %v89, 7
    %v91 = vsub.s32 3, %v90
    %v92 = vrot.slane %v52, %v91
    %v93 = vadd.f32 %v87, %v92
    %v94 = vadd.f32 %v88, %v92
    %v95 = vld [vmem:[%s1] sm:$0x3]
    %v96 = vsub.f32 1.0, %v95
    %v97 = vmul.f32 %v96, -1e+09
    %v100 = vunpack.c.l.s4 1966171168
    %v101 = vunpack.c.0.s8 %v100
    %v102 = vlaneseq
    %v103 = vshrl.u32 %v102, 7
    %v104 = vsub.s32 %v101, %v103
    %v105 = vrot.slane %v97, %v104
    %v106 = vcombine.high %v105, %v105
    %v108 = vunpack.c.l.s4 1966171168
    %v109 = vunpack.c.0.s8 %v108
    %v110 = vlaneseq
    %v111 = vshrl.u32 %v110, 7
    %v112 = vsub.s32 %v109, %v111
    %v113 = vrot.slane %v105, %v112
    %v115 = vunpack.c.l.s4 1966171168
    %v116 = vunpack.c.0.s8 %v115
    %v117 = vlaneseq
    %v118 = vshrl.u32 %v117, 7
    %v119 = vsub.s32 %v116, %v118
    %v120 = vrot.slane %v106, %v119
    %v121 = vlaneseq
    %v122 = vshrl.u32 %v121, 7
    %v123 = vsub.s32 0, %v122
    %v124 = vrot.slane %v113, %v123
    %v125 = vlaneseq
    %v126 = vshrl.u32 %v125, 7
    %v127 = vsub.s32 0, %v126
    %v128 = vrot.slane %v120, %v127
    %v131 = vld [vmem:[%s8] sm:$0x7f]
    %v132 = vld [vmem:[%s3] sm:$0xff]
    %v133 = vld [vmem:[%s3 + $0x8] sm:$0xff]
    %v134 = vld [vmem:[%s3 + $0x10] sm:$0xff]
    %v135 = vld [vmem:[%s3 + $0x18] sm:$0xff]
    %v136 = vld [vmem:[%s4] sm:$0x1]
    %v138 = vlaneseq
    %v139 = vshrl.u32 %v138, 7
    %v140 = vsub.s32 0, %v139
    %v141 = vrot.slane %v136, %v140
    %v144 = vsel %vm55, %v93, 0
    %v147 = vsel %vm55, %v94, 0
    %149 = vmatprep.subr.mxu0 0.0
    %150 = vmatpush1.msra.mxu0 %v132
    %151 = vmatprep.subr.mxu0 0.0
    %152 = vmatpush1.msra.mxu0 %v133
    %153 = vmatprep.subr.mxu0 0.0
    %154 = vmatpush1.msra.mxu0 %v134
    %155 = vmatprep.subr.mxu0 0.0
    %156 = vmatpush1.msra.mxu0 %v135
    %157 = vmatprep.subr.mxu0 0.0
    %158 = vmatpush1.msra.mxu0 0.0
    %159 = vmatprep.subr.mxu0 0.0
    %160 = vmatpush1.msra.mxu0 0.0
    %161 = vmatprep.subr.mxu0 0.0
    %162 = vmatpush1.msra.mxu0 0.0
    %163 = vmatprep.subr.mxu0 0.0
    %164 = vmatpush1.msra.mxu0 0.0
    %165 = vmatprep.subr.mxu0 0.0
    %166 = vmatpush1.msra.mxu0 0.0
    %167 = vmatprep.subr.mxu0 0.0
    %168 = vmatpush1.msra.mxu0 0.0
    %169 = vmatprep.subr.mxu0 0.0
    %170 = vmatpush1.msra.mxu0 0.0
    %171 = vmatprep.subr.mxu0 0.0
    %172 = vmatpush1.msra.mxu0 0.0
    %173 = vmatprep.subr.mxu0 0.0
    %174 = vmatpush1.msra.mxu0 0.0
    %175 = vmatprep.subr.mxu0 0.0
    %176 = vmatpush1.msra.mxu0 0.0
    %177 = vmatprep.subr.mxu0 0.0
    %178 = vmatpush1.msra.mxu0 0.0
    %179 = vmatprep.subr.mxu0 0.0
    %180 = vmatpush1.msra.mxu0 0.0
    %181 = vmatprep.subr.mxu0 0.0
    %182 = vmatpush1.msra.mxu0 0.0
    %183 = vmatprep.subr.mxu0 0.0
    %184 = vmatpush1.msra.mxu0 0.0
    %185 = vmatprep.subr.mxu0 0.0
    %186 = vmatpush1.msra.mxu0 0.0
    %187 = vmatprep.subr.mxu0 0.0
    %188 = vmatpush1.msra.mxu0 0.0
    %189 = vmatprep.subr.mxu0 0.0
    %190 = vmatpush1.msra.mxu0 0.0
    %191 = vmatprep.subr.mxu0 0.0
    %192 = vmatpush1.msra.mxu0 0.0
    %193 = vmatprep.subr.mxu0 0.0
    %194 = vmatpush1.msra.mxu0 0.0
    %195 = vmatprep.subr.mxu0 0.0
    %196 = vmatpush1.msra.mxu0 0.0
    %197 = vmatprep.subr.mxu0 0.0
    %198 = vmatpush1.msra.mxu0 0.0
    %199 = vmatprep.subr.mxu0 0.0
    %200 = vmatpush1.msra.mxu0 0.0
    %201 = vmatprep.subr.mxu0 0.0
    %202 = vmatpush1.msra.mxu0 0.0
    %203 = vmatprep.subr.mxu0 0.0
    %204 = vmatpush1.msra.mxu0 0.0
    %205 = vmatprep.subr.mxu0 0.0
    %206 = vmatpush1.msra.mxu0 0.0
    %207 = vmatprep.subr.mxu0 0.0
    %208 = vmatpush1.msra.mxu0 0.0
    %209 = vmatprep.subr.mxu0 0.0
    %210 = vmatpush1.msra.mxu0 0.0
    %211 = vmatprep.subr.mxu0 0.0
    %212 = vmatpush1.msra.mxu0 0.0
    %213 = vmatprep.mubr.f32.mxu0 0.0
    %214 = vmatmul.mubr.f32.gmra.mrb[0].mxu0 %v144
    %v215 = vpop.f32.mrb[0].mxu0
    %v216 = vadd.f32 %v141, %v215
    %v217 = vpop.f32.mrb[0].mxu0
    %218 = vmatprep.mubr.f32.mxu0 0.0
    %219 = vmatmul.mubr.f32.gmra.mrb[0].mxu0 %v147
    %v220 = vpop.f32.mrb[0].mxu0
    %v221 = vadd.f32 %v141, %v220
    %v222 = vpop.f32.mrb[0].mxu0
    %223 = vdwg.mxu0
    %s224 = scalar_lea.vmem %s3, 64
    %v225 = vld [vmem:[%s224] sm:$0xff]
    %v226 = vld [vmem:[%s224 + $0x8] sm:$0xff]
    %v227 = vld [vmem:[%s224 + $0x10] sm:$0xff]
    %v228 = vld [vmem:[%s224 + $0x18] sm:$0xff]
    %s229 = scalar_lea.vmem %s4, 2
    %v230 = vld [vmem:[%s229] sm:$0x1]
    %v232 = vlaneseq
    %v233 = vshrl.u32 %v232, 7
    %v234 = vsub.s32 0, %v233
    %v235 = vrot.slane %v230, %v234
    %237 = vmatprep.subr.mxu0 0.0
    %238 = vmatpush1.msra.mxu0 %v225
    %239 = vmatprep.subr.mxu0 0.0
    %240 = vmatpush1.msra.mxu0 %v226
    %241 = vmatprep.subr.mxu0 0.0
    %242 = vmatpush1.msra.mxu0 %v227
    %243 = vmatprep.subr.mxu0 0.0
    %244 = vmatpush1.msra.mxu0 %v228
    %245 = vmatprep.subr.mxu0 0.0
    %246 = vmatpush1.msra.mxu0 0.0
    %247 = vmatprep.subr.mxu0 0.0
    %248 = vmatpush1.msra.mxu0 0.0
    %249 = vmatprep.subr.mxu0 0.0
    %250 = vmatpush1.msra.mxu0 0.0
    %251 = vmatprep.subr.mxu0 0.0
    %252 = vmatpush1.msra.mxu0 0.0
    %253 = vmatprep.subr.mxu0 0.0
    %254 = vmatpush1.msra.mxu0 0.0
    %255 = vmatprep.subr.mxu0 0.0
    %256 = vmatpush1.msra.mxu0 0.0
    %257 = vmatprep.subr.mxu0 0.0
    %258 = vmatpush1.msra.mxu0 0.0
    %259 = vmatprep.subr.mxu0 0.0
    %260 = vmatpush1.msra.mxu0 0.0
    %261 = vmatprep.subr.mxu0 0.0
    %262 = vmatpush1.msra.mxu0 0.0
    %263 = vmatprep.subr.mxu0 0.0
    %264 = vmatpush1.msra.mxu0 0.0
    %265 = vmatprep.subr.mxu0 0.0
    %266 = vmatpush1.msra.mxu0 0.0
    %267 = vmatprep.subr.mxu0 0.0
    %268 = vmatpush1.msra.mxu0 0.0
    %269 = vmatprep.subr.mxu0 0.0
    %270 = vmatpush1.msra.mxu0 0.0
    %271 = vmatprep.subr.mxu0 0.0
    %272 = vmatpush1.msra.mxu0 0.0
    %273 = vmatprep.subr.mxu0 0.0
    %274 = vmatpush1.msra.mxu0 0.0
    %275 = vmatprep.subr.mxu0 0.0
    %276 = vmatpush1.msra.mxu0 0.0
    %277 = vmatprep.subr.mxu0 0.0
    %278 = vmatpush1.msra.mxu0 0.0
    %279 = vmatprep.subr.mxu0 0.0
    %280 = vmatpush1.msra.mxu0 0.0
    %281 = vmatprep.subr.mxu0 0.0
    %282 = vmatpush1.msra.mxu0 0.0
    %283 = vmatprep.subr.mxu0 0.0
    %284 = vmatpush1.msra.mxu0 0.0
    %285 = vmatprep.subr.mxu0 0.0
    %286 = vmatpush1.msra.mxu0 0.0
    %287 = vmatprep.subr.mxu0 0.0
    %288 = vmatpush1.msra.mxu0 0.0
    %289 = vmatprep.subr.mxu0 0.0
    %290 = vmatpush1.msra.mxu0 0.0
    %291 = vmatprep.subr.mxu0 0.0
    %292 = vmatpush1.msra.mxu0 0.0
    %293 = vmatprep.subr.mxu0 0.0
    %294 = vmatpush1.msra.mxu0 0.0
    %295 = vmatprep.subr.mxu0 0.0
    %296 = vmatpush1.msra.mxu0 0.0
    %297 = vmatprep.subr.mxu0 0.0
    %298 = vmatpush1.msra.mxu0 0.0
    %299 = vmatprep.subr.mxu0 0.0
    %300 = vmatpush1.msra.mxu0 0.0
    %301 = vmatprep.mubr.f32.mxu0 0.0
    %302 = vmatmul.mubr.f32.gmra.mrb[0].mxu0 %v144
    %v303 = vpop.f32.mrb[0].mxu0
    %v304 = vadd.f32 %v235, %v303
    %v305 = vpop.f32.mrb[0].mxu0
    %306 = vmatprep.mubr.f32.mxu0 0.0
    %307 = vmatmul.mubr.f32.gmra.mrb[0].mxu0 %v147
    %v308 = vpop.f32.mrb[0].mxu0
    %v309 = vadd.f32 %v235, %v308
    %v310 = vpop.f32.mrb[0].mxu0
    %311 = vdwg.mxu0
    %s312 = scalar_lea.vmem %s3, 128
    %v313 = vld [vmem:[%s312] sm:$0xff]
    %v314 = vld [vmem:[%s312 + $0x8] sm:$0xff]
    %v315 = vld [vmem:[%s312 + $0x10] sm:$0xff]
    %v316 = vld [vmem:[%s312 + $0x18] sm:$0xff]
    %s317 = scalar_lea.vmem %s4, 4
    %v318 = vld [vmem:[%s317] sm:$0x1]
    %v320 = vlaneseq
    %v321 = vshrl.u32 %v320, 7
    %v322 = vsub.s32 0, %v321
    %v323 = vrot.slane %v318, %v322
    %325 = vmatprep.subr.mxu0 0.0
    %326 = vmatpush1.msra.mxu0 %v313
    %327 = vmatprep.subr.mxu0 0.0
    %328 = vmatpush1.msra.mxu0 %v314
    %329 = vmatprep.subr.mxu0 0.0
    %330 = vmatpush1.msra.mxu0 %v315
    %331 = vmatprep.subr.mxu0 0.0
    %332 = vmatpush1.msra.mxu0 %v316
    %333 = vmatprep.subr.mxu0 0.0
    %334 = vmatpush1.msra.mxu0 0.0
    %335 = vmatprep.subr.mxu0 0.0
    %336 = vmatpush1.msra.mxu0 0.0
    %337 = vmatprep.subr.mxu0 0.0
    %338 = vmatpush1.msra.mxu0 0.0
    %339 = vmatprep.subr.mxu0 0.0
    %340 = vmatpush1.msra.mxu0 0.0
    %341 = vmatprep.subr.mxu0 0.0
    %342 = vmatpush1.msra.mxu0 0.0
    %343 = vmatprep.subr.mxu0 0.0
    %344 = vmatpush1.msra.mxu0 0.0
    %345 = vmatprep.subr.mxu0 0.0
    %346 = vmatpush1.msra.mxu0 0.0
    %347 = vmatprep.subr.mxu0 0.0
    %348 = vmatpush1.msra.mxu0 0.0
    %349 = vmatprep.subr.mxu0 0.0
    %350 = vmatpush1.msra.mxu0 0.0
    %351 = vmatprep.subr.mxu0 0.0
    %352 = vmatpush1.msra.mxu0 0.0
    %353 = vmatprep.subr.mxu0 0.0
    %354 = vmatpush1.msra.mxu0 0.0
    %355 = vmatprep.subr.mxu0 0.0
    %356 = vmatpush1.msra.mxu0 0.0
    %357 = vmatprep.subr.mxu0 0.0
    %358 = vmatpush1.msra.mxu0 0.0
    %359 = vmatprep.subr.mxu0 0.0
    %360 = vmatpush1.msra.mxu0 0.0
    %361 = vmatprep.subr.mxu0 0.0
    %362 = vmatpush1.msra.mxu0 0.0
    %363 = vmatprep.subr.mxu0 0.0
    %364 = vmatpush1.msra.mxu0 0.0
    %365 = vmatprep.subr.mxu0 0.0
    %366 = vmatpush1.msra.mxu0 0.0
    %367 = vmatprep.subr.mxu0 0.0
    %368 = vmatpush1.msra.mxu0 0.0
    %369 = vmatprep.subr.mxu0 0.0
    %370 = vmatpush1.msra.mxu0 0.0
    %371 = vmatprep.subr.mxu0 0.0
    %372 = vmatpush1.msra.mxu0 0.0
    %373 = vmatprep.subr.mxu0 0.0
    %374 = vmatpush1.msra.mxu0 0.0
    %375 = vmatprep.subr.mxu0 0.0
    %376 = vmatpush1.msra.mxu0 0.0
    %377 = vmatprep.subr.mxu0 0.0
    %378 = vmatpush1.msra.mxu0 0.0
    %379 = vmatprep.subr.mxu0 0.0
    %380 = vmatpush1.msra.mxu0 0.0
    %381 = vmatprep.subr.mxu0 0.0
    %382 = vmatpush1.msra.mxu0 0.0
    %383 = vmatprep.subr.mxu0 0.0
    %384 = vmatpush1.msra.mxu0 0.0
    %385 = vmatprep.subr.mxu0 0.0
    %386 = vmatpush1.msra.mxu0 0.0
    %387 = vmatprep.subr.mxu0 0.0
    %388 = vmatpush1.msra.mxu0 0.0
    %389 = vmatprep.mubr.f32.mxu0 0.0
    %390 = vmatmul.mubr.f32.gmra.mrb[0].mxu0 %v144
    %v391 = vpop.f32.mrb[0].mxu0
    %v392 = vadd.f32 %v323, %v391
    %v393 = vpop.f32.mrb[0].mxu0
    %394 = vmatprep.mubr.f32.mxu0 0.0
    %395 = vmatmul.mubr.f32.gmra.mrb[0].mxu0 %v147
    %v396 = vpop.f32.mrb[0].mxu0
    %v397 = vadd.f32 %v323, %v396
    %v398 = vpop.f32.mrb[0].mxu0
    %399 = vdwg.mxu0
    %vm400 = vcmask 130048
    %v402 = vsel %vm400, %v216, 0
    %v405 = vsel %vm400, %v304, 0
    %407 = vmatprep.subr.mxu0 0.0
    %408 = vmatpush1.xpose.msra.mxu0 %v405
    %409 = vmatprep.subr.mxu0 0.0
    %410 = vmatpush1.xpose.msra.mxu0 0.0
    %411 = vmatprep.subr.mxu0 0.0
    %412 = vmatpush1.xpose.msra.mxu0 0.0
    %413 = vmatprep.subr.mxu0 0.0
    %414 = vmatpush1.xpose.msra.mxu0 0.0
    %415 = vmatprep.subr.mxu0 0.0
    %416 = vmatpush1.xpose.msra.mxu0 0.0
    %417 = vmatprep.subr.mxu0 0.0
    %418 = vmatpush1.xpose.msra.mxu0 0.0
    %419 = vmatprep.subr.mxu0 0.0
    %420 = vmatpush1.xpose.msra.mxu0 0.0
    %421 = vmatprep.subr.mxu0 0.0
    %422 = vmatpush1.xpose.msra.mxu0 0.0
    %423 = vmatprep.subr.mxu0 0.0
    %424 = vmatpush1.xpose.msra.mxu0 0.0
    %425 = vmatprep.subr.mxu0 0.0
    %426 = vmatpush1.xpose.msra.mxu0 0.0
    %427 = vmatprep.subr.mxu0 0.0
    %428 = vmatpush1.xpose.msra.mxu0 0.0
    %429 = vmatprep.subr.mxu0 0.0
    %430 = vmatpush1.xpose.msra.mxu0 0.0
    %431 = vmatprep.subr.mxu0 0.0
    %432 = vmatpush1.xpose.msra.mxu0 0.0
    %433 = vmatprep.subr.mxu0 0.0
    %434 = vmatpush1.xpose.msra.mxu0 0.0
    %435 = vmatprep.subr.mxu0 0.0
    %436 = vmatpush1.xpose.msra.mxu0 0.0
    %437 = vmatprep.subr.mxu0 0.0
    %438 = vmatpush1.xpose.msra.mxu0 0.0
    %439 = vmatprep.subr.mxu0 0.0
    %440 = vmatpush1.xpose.msra.mxu0 0.0
    %441 = vmatprep.subr.mxu0 0.0
    %442 = vmatpush1.xpose.msra.mxu0 0.0
    %443 = vmatprep.subr.mxu0 0.0
    %444 = vmatpush1.xpose.msra.mxu0 0.0
    %445 = vmatprep.subr.mxu0 0.0
    %446 = vmatpush1.xpose.msra.mxu0 0.0
    %447 = vmatprep.subr.mxu0 0.0
    %448 = vmatpush1.xpose.msra.mxu0 0.0
    %449 = vmatprep.subr.mxu0 0.0
    %450 = vmatpush1.xpose.msra.mxu0 0.0
    %451 = vmatprep.subr.mxu0 0.0
    %452 = vmatpush1.xpose.msra.mxu0 0.0
    %453 = vmatprep.subr.mxu0 0.0
    %454 = vmatpush1.xpose.msra.mxu0 0.0
    %455 = vmatprep.subr.mxu0 0.0
    %456 = vmatpush1.xpose.msra.mxu0 0.0
    %457 = vmatprep.subr.mxu0 0.0
    %458 = vmatpush1.xpose.msra.mxu0 0.0
    %459 = vmatprep.subr.mxu0 0.0
    %460 = vmatpush1.xpose.msra.mxu0 0.0
    %461 = vmatprep.subr.mxu0 0.0
    %462 = vmatpush1.xpose.msra.mxu0 0.0
    %463 = vmatprep.subr.mxu0 0.0
    %464 = vmatpush1.xpose.msra.mxu0 0.0
    %465 = vmatprep.subr.mxu0 0.0
    %466 = vmatpush1.xpose.msra.mxu0 0.0
    %467 = vmatprep.subr.mxu0 0.0
    %468 = vmatpush1.xpose.msra.mxu0 0.0
    %469 = vmatprep.subr.mxu0 0.0
    %470 = vmatpush1.xpose.msra.mxu0 0.0
    %471 = vmatprep.mubr.f32.mxu0 0.0
    %472 = vmatmul.mubr.f32.gmra.mrb[0].mxu0 %v402
    %v473 = vpop.f32.mrb[0].mxu0
    %v474 = vadd.f32 %v124, %v473
    %v475 = vpop.f32.mrb[0].mxu0
    %476 = vdwg.mxu0
    %v478 = vsel %vm400, %v221, 0
    %v481 = vsel %vm400, %v309, 0
    %483 = vmatprep.subr.mxu0 0.0
    %484 = vmatpush1.xpose.msra.mxu0 %v481
    %485 = vmatprep.subr.mxu0 0.0
    %486 = vmatpush1.xpose.msra.mxu0 0.0
    %487 = vmatprep.subr.mxu0 0.0
    %488 = vmatpush1.xpose.msra.mxu0 0.0
    %489 = vmatprep.subr.mxu0 0.0
    %490 = vmatpush1.xpose.msra.mxu0 0.0
    %491 = vmatprep.subr.mxu0 0.0
    %492 = vmatpush1.xpose.msra.mxu0 0.0
    %493 = vmatprep.subr.mxu0 0.0
    %494 = vmatpush1.xpose.msra.mxu0 0.0
    %495 = vmatprep.subr.mxu0 0.0
    %496 = vmatpush1.xpose.msra.mxu0 0.0
    %497 = vmatprep.subr.mxu0 0.0
    %498 = vmatpush1.xpose.msra.mxu0 0.0
    %499 = vmatprep.subr.mxu0 0.0
    %500 = vmatpush1.xpose.msra.mxu0 0.0
    %501 = vmatprep.subr.mxu0 0.0
    %502 = vmatpush1.xpose.msra.mxu0 0.0
    %503 = vmatprep.subr.mxu0 0.0
    %504 = vmatpush1.xpose.msra.mxu0 0.0
    %505 = vmatprep.subr.mxu0 0.0
    %506 = vmatpush1.xpose.msra.mxu0 0.0
    %507 = vmatprep.subr.mxu0 0.0
    %508 = vmatpush1.xpose.msra.mxu0 0.0
    %509 = vmatprep.subr.mxu0 0.0
    %510 = vmatpush1.xpose.msra.mxu0 0.0
    %511 = vmatprep.subr.mxu0 0.0
    %512 = vmatpush1.xpose.msra.mxu0 0.0
    %513 = vmatprep.subr.mxu0 0.0
    %514 = vmatpush1.xpose.msra.mxu0 0.0
    %515 = vmatprep.subr.mxu0 0.0
    %516 = vmatpush1.xpose.msra.mxu0 0.0
    %517 = vmatprep.subr.mxu0 0.0
    %518 = vmatpush1.xpose.msra.mxu0 0.0
    %519 = vmatprep.subr.mxu0 0.0
    %520 = vmatpush1.xpose.msra.mxu0 0.0
    %521 = vmatprep.subr.mxu0 0.0
    %522 = vmatpush1.xpose.msra.mxu0 0.0
    %523 = vmatprep.subr.mxu0 0.0
    %524 = vmatpush1.xpose.msra.mxu0 0.0
    %525 = vmatprep.subr.mxu0 0.0
    %526 = vmatpush1.xpose.msra.mxu0 0.0
    %527 = vmatprep.subr.mxu0 0.0
    %528 = vmatpush1.xpose.msra.mxu0 0.0
    %529 = vmatprep.subr.mxu0 0.0
    %530 = vmatpush1.xpose.msra.mxu0 0.0
    %531 = vmatprep.subr.mxu0 0.0
    %532 = vmatpush1.xpose.msra.mxu0 0.0
    %533 = vmatprep.subr.mxu0 0.0
    %534 = vmatpush1.xpose.msra.mxu0 0.0
    %535 = vmatprep.subr.mxu0 0.0
    %536 = vmatpush1.xpose.msra.mxu0 0.0
    %537 = vmatprep.subr.mxu0 0.0
    %538 = vmatpush1.xpose.msra.mxu0 0.0
    %539 = vmatprep.subr.mxu0 0.0
    %540 = vmatpush1.xpose.msra.mxu0 0.0
    %541 = vmatprep.subr.mxu0 0.0
    %542 = vmatpush1.xpose.msra.mxu0 0.0
    %543 = vmatprep.subr.mxu0 0.0
    %544 = vmatpush1.xpose.msra.mxu0 0.0
    %545 = vmatprep.subr.mxu0 0.0
    %546 = vmatpush1.xpose.msra.mxu0 0.0
    %547 = vmatprep.mubr.f32.mxu0 0.0
    %548 = vmatmul.mubr.f32.gmra.mrb[0].mxu0 %v478
    %v549 = vpop.f32.mrb[0].mxu0
    %v550 = vadd.f32 %v128, %v549
    %v551 = vpop.f32.mrb[0].mxu0
    %552 = vdwg.mxu0
    %vm553 = vcmask 64512
    %v554 = vsel %vm553, %v474, -inf
    %555 = vmax.xlane.f32.xlu0 %v554
    %v556 = vpop.xlane.xlu0 %555
    %v557 = vsel %vm553, %v550, -inf
    %558 = vmax.xlane.f32.xlu0 %v557
    %v559 = vpop.xlane.xlu0 %558
    %v560 = vsub.f32 %v474, %v556
    %v561 = vsub.f32 %v550, %v559
    %v562 = vmul.f32 %v560, 1.442695
    %v563 = vpow.pop %v562
    %v564 = vmul.f32 %v561, 1.442695
    %v565 = vpow.pop %v564
    %v566 = vsel %vm553, %v563, 0.0
    %567 = vadd.xlane.f32.xlu0 %v566
    %v568 = vpop.xlane.xlu0 %567
    %v569 = vsel %vm553, %v565, 0.0
    %570 = vadd.xlane.f32.xlu0 %v569
    %v571 = vpop.xlane.xlu0 %570
    %v572 = vrcp.pop %v568
    %v573 = vrcp.pop %v571
    %v574 = vmul.f32 %v563, %v572
    %v575 = vmul.f32 %v565, %v573
    %v577 = vsel %vm553, %v574, 0
    %579 = vmatprep.subr.mxu0 0.0
    %580 = vmatpush1.msra.mxu0 %v392
    %581 = vmatprep.subr.mxu0 0.0
    %582 = vmatpush1.msra.mxu0 0.0
    %583 = vmatprep.subr.mxu0 0.0
    %584 = vmatpush1.msra.mxu0 0.0
    %585 = vmatprep.subr.mxu0 0.0
    %586 = vmatpush1.msra.mxu0 0.0
    %587 = vmatprep.subr.mxu0 0.0
    %588 = vmatpush1.msra.mxu0 0.0
    %589 = vmatprep.subr.mxu0 0.0
    %590 = vmatpush1.msra.mxu0 0.0
    %591 = vmatprep.subr.mxu0 0.0
    %592 = vmatpush1.msra.mxu0 0.0
    %593 = vmatprep.subr.mxu0 0.0
    %594 = vmatpush1.msra.mxu0 0.0
    %595 = vmatprep.subr.mxu0 0.0
    %596 = vmatpush1.msra.mxu0 0.0
    %597 = vmatprep.subr.mxu0 0.0
    %598 = vmatpush1.msra.mxu0 0.0
    %599 = vmatprep.subr.mxu0 0.0
    %600 = vmatpush1.msra.mxu0 0.0
    %601 = vmatprep.subr.mxu0 0.0
    %602 = vmatpush1.msra.mxu0 0.0
    %603 = vmatprep.subr.mxu0 0.0
    %604 = vmatpush1.msra.mxu0 0.0
    %605 = vmatprep.subr.mxu0 0.0
    %606 = vmatpush1.msra.mxu0 0.0
    %607 = vmatprep.subr.mxu0 0.0
    %608 = vmatpush1.msra.mxu0 0.0
    %609 = vmatprep.subr.mxu0 0.0
    %610 = vmatpush1.msra.mxu0 0.0
    %611 = vmatprep.subr.mxu0 0.0
    %612 = vmatpush1.msra.mxu0 0.0
    %613 = vmatprep.subr.mxu0 0.0
    %614 = vmatpush1.msra.mxu0 0.0
    %615 = vmatprep.subr.mxu0 0.0
    %616 = vmatpush1.msra.mxu0 0.0
    %617 = vmatprep.subr.mxu0 0.0
    %618 = vmatpush1.msra.mxu0 0.0
    %619 = vmatprep.subr.mxu0 0.0
    %620 = vmatpush1.msra.mxu0 0.0
    %621 = vmatprep.subr.mxu0 0.0
    %622 = vmatpush1.msra.mxu0 0.0
    %623 = vmatprep.subr.mxu0 0.0
    %624 = vmatpush1.msra.mxu0 0.0
    %625 = vmatprep.subr.mxu0 0.0
    %626 = vmatpush1.msra.mxu0 0.0
    %627 = vmatprep.subr.mxu0 0.0
    %628 = vmatpush1.msra.mxu0 0.0
    %629 = vmatprep.subr.mxu0 0.0
    %630 = vmatpush1.msra.mxu0 0.0
    %631 = vmatprep.subr.mxu0 0.0
    %632 = vmatpush1.msra.mxu0 0.0
    %633 = vmatprep.subr.mxu0 0.0
    %634 = vmatpush1.msra.mxu0 0.0
    %635 = vmatprep.subr.mxu0 0.0
    %636 = vmatpush1.msra.mxu0 0.0
    %637 = vmatprep.subr.mxu0 0.0
    %638 = vmatpush1.msra.mxu0 0.0
    %639 = vmatprep.subr.mxu0 0.0
    %640 = vmatpush1.msra.mxu0 0.0
    %641 = vmatprep.subr.mxu0 0.0
    %642 = vmatpush1.msra.mxu0 0.0
    %643 = vmatprep.mubr.f32.mxu0 0.0
    %644 = vmatmul.mubr.f32.gmra.mrb[0].mxu0 %v577
    %v645 = vpop.f32.mrb[0].mxu0
    %v646 = vadd.f32 0.0, %v645
    %v647 = vpop.f32.mrb[0].mxu0
    %648 = vdwg.mxu0
    %v650 = vsel %vm553, %v575, 0
    %652 = vmatprep.subr.mxu0 0.0
    %653 = vmatpush1.msra.mxu0 %v397
    %654 = vmatprep.subr.mxu0 0.0
    %655 = vmatpush1.msra.mxu0 0.0
    %656 = vmatprep.subr.mxu0 0.0
    %657 = vmatpush1.msra.mxu0 0.0
    %658 = vmatprep.subr.mxu0 0.0
    %659 = vmatpush1.msra.mxu0 0.0
    %660 = vmatprep.subr.mxu0 0.0
    %661 = vmatpush1.msra.mxu0 0.0
    %662 = vmatprep.subr.mxu0 0.0
    %663 = vmatpush1.msra.mxu0 0.0
    %664 = vmatprep.subr.mxu0 0.0
    %665 = vmatpush1.msra.mxu0 0.0
    %666 = vmatprep.subr.mxu0 0.0
    %667 = vmatpush1.msra.mxu0 0.0
    %668 = vmatprep.subr.mxu0 0.0
    %669 = vmatpush1.msra.mxu0 0.0
    %670 = vmatprep.subr.mxu0 0.0
    %671 = vmatpush1.msra.mxu0 0.0
    %672 = vmatprep.subr.mxu0 0.0
    %673 = vmatpush1.msra.mxu0 0.0
    %674 = vmatprep.subr.mxu0 0.0
    %675 = vmatpush1.msra.mxu0 0.0
    %676 = vmatprep.subr.mxu0 0.0
    %677 = vmatpush1.msra.mxu0 0.0
    %678 = vmatprep.subr.mxu0 0.0
    %679 = vmatpush1.msra.mxu0 0.0
    %680 = vmatprep.subr.mxu0 0.0
    %681 = vmatpush1.msra.mxu0 0.0
    %682 = vmatprep.subr.mxu0 0.0
    %683 = vmatpush1.msra.mxu0 0.0
    %684 = vmatprep.subr.mxu0 0.0
    %685 = vmatpush1.msra.mxu0 0.0
    %686 = vmatprep.subr.mxu0 0.0
    %687 = vmatpush1.msra.mxu0 0.0
    %688 = vmatprep.subr.mxu0 0.0
    %689 = vmatpush1.msra.mxu0 0.0
    %690 = vmatprep.subr.mxu0 0.0
    %691 = vmatpush1.msra.mxu0 0.0
    %692 = vmatprep.subr.mxu0 0.0
    %693 = vmatpush1.msra.mxu0 0.0
    %694 = vmatprep.subr.mxu0 0.0
    %695 = vmatpush1.msra.mxu0 0.0
    %696 = vmatprep.subr.mxu0 0.0
    %697 = vmatpush1.msra.mxu0 0.0
    %698 = vmatprep.subr.mxu0 0.0
    %699 = vmatpush1.msra.mxu0 0.0
    %700 = vmatprep.subr.mxu0 0.0
    %701 = vmatpush1.msra.mxu0 0.0
    %702 = vmatprep.subr.mxu0 0.0
    %703 = vmatpush1.msra.mxu0 0.0
    %704 = vmatprep.subr.mxu0 0.0
    %705 = vmatpush1.msra.mxu0 0.0
    %706 = vmatprep.subr.mxu0 0.0
    %707 = vmatpush1.msra.mxu0 0.0
    %708 = vmatprep.subr.mxu0 0.0
    %709 = vmatpush1.msra.mxu0 0.0
    %710 = vmatprep.subr.mxu0 0.0
    %711 = vmatpush1.msra.mxu0 0.0
    %712 = vmatprep.subr.mxu0 0.0
    %713 = vmatpush1.msra.mxu0 0.0
    %714 = vmatprep.subr.mxu0 0.0
    %715 = vmatpush1.msra.mxu0 0.0
    %716 = vmatprep.mubr.f32.mxu0 0.0
    %717 = vmatmul.mubr.f32.gmra.mrb[0].mxu0 %v650
    %v718 = vpop.f32.mrb[0].mxu0
    %v719 = vadd.f32 0.0, %v718
    %v720 = vpop.f32.mrb[0].mxu0
    %721 = vdwg.mxu0
    %v722 = vld [vmem:[%s5] sm:$0xff]
    %v723 = vld [vmem:[%s5 + $0x8] sm:$0xff]
    %s724 = scalar_lea.vmem %s3, 32
    %v725 = vld [vmem:[%s724] sm:$0xff]
    %v726 = vld [vmem:[%s724 + $0x8] sm:$0xff]
    %v727 = vld [vmem:[%s724 + $0x10] sm:$0xff]
    %v728 = vld [vmem:[%s724 + $0x18] sm:$0xff]
    %s729 = scalar_lea.vmem %s4, 1
    %v730 = vld [vmem:[%s729] sm:$0x1]
    %v732 = vlaneseq
    %v733 = vshrl.u32 %v732, 7
    %v734 = vsub.s32 0, %v733
    %v735 = vrot.slane %v730, %v734
    %737 = vmatprep.subr.mxu0 0.0
    %738 = vmatpush1.msra.mxu0 %v725
    %739 = vmatprep.subr.mxu0 0.0
    %740 = vmatpush1.msra.mxu0 %v726
    %741 = vmatprep.subr.mxu0 0.0
    %742 = vmatpush1.msra.mxu0 %v727
    %743 = vmatprep.subr.mxu0 0.0
    %744 = vmatpush1.msra.mxu0 %v728
    %745 = vmatprep.subr.mxu0 0.0
    %746 = vmatpush1.msra.mxu0 0.0
    %747 = vmatprep.subr.mxu0 0.0
    %748 = vmatpush1.msra.mxu0 0.0
    %749 = vmatprep.subr.mxu0 0.0
    %750 = vmatpush1.msra.mxu0 0.0
    %751 = vmatprep.subr.mxu0 0.0
    %752 = vmatpush1.msra.mxu0 0.0
    %753 = vmatprep.subr.mxu0 0.0
    %754 = vmatpush1.msra.mxu0 0.0
    %755 = vmatprep.subr.mxu0 0.0
    %756 = vmatpush1.msra.mxu0 0.0
    %757 = vmatprep.subr.mxu0 0.0
    %758 = vmatpush1.msra.mxu0 0.0
    %759 = vmatprep.subr.mxu0 0.0
    %760 = vmatpush1.msra.mxu0 0.0
    %761 = vmatprep.subr.mxu0 0.0
    %762 = vmatpush1.msra.mxu0 0.0
    %763 = vmatprep.subr.mxu0 0.0
    %764 = vmatpush1.msra.mxu0 0.0
    %765 = vmatprep.subr.mxu0 0.0
    %766 = vmatpush1.msra.mxu0 0.0
    %767 = vmatprep.subr.mxu0 0.0
    %768 = vmatpush1.msra.mxu0 0.0
    %769 = vmatprep.subr.mxu0 0.0
    %770 = vmatpush1.msra.mxu0 0.0
    %771 = vmatprep.subr.mxu0 0.0
    %772 = vmatpush1.msra.mxu0 0.0
    %773 = vmatprep.subr.mxu0 0.0
    %774 = vmatpush1.msra.mxu0 0.0
    %775 = vmatprep.subr.mxu0 0.0
    %776 = vmatpush1.msra.mxu0 0.0
    %777 = vmatprep.subr.mxu0 0.0
    %778 = vmatpush1.msra.mxu0 0.0
    %779 = vmatprep.subr.mxu0 0.0
    %780 = vmatpush1.msra.mxu0 0.0
    %781 = vmatprep.subr.mxu0 0.0
    %782 = vmatpush1.msra.mxu0 0.0
    %783 = vmatprep.subr.mxu0 0.0
    %784 = vmatpush1.msra.mxu0 0.0
    %785 = vmatprep.subr.mxu0 0.0
    %786 = vmatpush1.msra.mxu0 0.0
    %787 = vmatprep.subr.mxu0 0.0
    %788 = vmatpush1.msra.mxu0 0.0
    %789 = vmatprep.subr.mxu0 0.0
    %790 = vmatpush1.msra.mxu0 0.0
    %791 = vmatprep.subr.mxu0 0.0
    %792 = vmatpush1.msra.mxu0 0.0
    %793 = vmatprep.subr.mxu0 0.0
    %794 = vmatpush1.msra.mxu0 0.0
    %795 = vmatprep.subr.mxu0 0.0
    %796 = vmatpush1.msra.mxu0 0.0
    %797 = vmatprep.subr.mxu0 0.0
    %798 = vmatpush1.msra.mxu0 0.0
    %799 = vmatprep.subr.mxu0 0.0
    %800 = vmatpush1.msra.mxu0 0.0
    %801 = vmatprep.mubr.f32.mxu0 0.0
    %802 = vmatmul.mubr.f32.gmra.mrb[0].mxu0 %v144
    %v803 = vpop.f32.mrb[0].mxu0
    %v804 = vadd.f32 %v735, %v803
    %v805 = vpop.f32.mrb[0].mxu0
    %806 = vmatprep.mubr.f32.mxu0 0.0
    %807 = vmatmul.mubr.f32.gmra.mrb[0].mxu0 %v147
    %v808 = vpop.f32.mrb[0].mxu0
    %v809 = vadd.f32 %v735, %v808
    %v810 = vpop.f32.mrb[0].mxu0
    %811 = vdwg.mxu0
    %s812 = scalar_lea.vmem %s3, 96
    %v813 = vld [vmem:[%s812] sm:$0xff]
    %v814 = vld [vmem:[%s812 + $0x8] sm:$0xff]
    %v815 = vld [vmem:[%s812 + $0x10] sm:$0xff]
    %v816 = vld [vmem:[%s812 + $0x18] sm:$0xff]
    %s817 = scalar_lea.vmem %s4, 3
    %v818 = vld [vmem:[%s817] sm:$0x1]
    %v820 = vlaneseq
    %v821 = vshrl.u32 %v820, 7
    %v822 = vsub.s32 0, %v821
    %v823 = vrot.slane %v818, %v822
    %825 = vmatprep.subr.mxu0 0.0
    %826 = vmatpush1.msra.mxu0 %v813
    %827 = vmatprep.subr.mxu0 0.0
    %828 = vmatpush1.msra.mxu0 %v814
    %829 = vmatprep.subr.mxu0 0.0
    %830 = vmatpush1.msra.mxu0 %v815
    %831 = vmatprep.subr.mxu0 0.0
    %832 = vmatpush1.msra.mxu0 %v816
    %833 = vmatprep.subr.mxu0 0.0
    %834 = vmatpush1.msra.mxu0 0.0
    %835 = vmatprep.subr.mxu0 0.0
    %836 = vmatpush1.msra.mxu0 0.0
    %837 = vmatprep.subr.mxu0 0.0
    %838 = vmatpush1.msra.mxu0 0.0
    %839 = vmatprep.subr.mxu0 0.0
    %840 = vmatpush1.msra.mxu0 0.0
    %841 = vmatprep.subr.mxu0 0.0
    %842 = vmatpush1.msra.mxu0 0.0
    %843 = vmatprep.subr.mxu0 0.0
    %844 = vmatpush1.msra.mxu0 0.0
    %845 = vmatprep.subr.mxu0 0.0
    %846 = vmatpush1.msra.mxu0 0.0
    %847 = vmatprep.subr.mxu0 0.0
    %848 = vmatpush1.msra.mxu0 0.0
    %849 = vmatprep.subr.mxu0 0.0
    %850 = vmatpush1.msra.mxu0 0.0
    %851 = vmatprep.subr.mxu0 0.0
    %852 = vmatpush1.msra.mxu0 0.0
    %853 = vmatprep.subr.mxu0 0.0
    %854 = vmatpush1.msra.mxu0 0.0
    %855 = vmatprep.subr.mxu0 0.0
    %856 = vmatpush1.msra.mxu0 0.0
    %857 = vmatprep.subr.mxu0 0.0
    %858 = vmatpush1.msra.mxu0 0.0
    %859 = vmatprep.subr.mxu0 0.0
    %860 = vmatpush1.msra.mxu0 0.0
    %861 = vmatprep.subr.mxu0 0.0
    %862 = vmatpush1.msra.mxu0 0.0
    %863 = vmatprep.subr.mxu0 0.0
    %864 = vmatpush1.msra.mxu0 0.0
    %865 = vmatprep.subr.mxu0 0.0
    %866 = vmatpush1.msra.mxu0 0.0
    %867 = vmatprep.subr.mxu0 0.0
    %868 = vmatpush1.msra.mxu0 0.0
    %869 = vmatprep.subr.mxu0 0.0
    %870 = vmatpush1.msra.mxu0 0.0
    %871 = vmatprep.subr.mxu0 0.0
    %872 = vmatpush1.msra.mxu0 0.0
    %873 = vmatprep.subr.mxu0 0.0
    %874 = vmatpush1.msra.mxu0 0.0
    %875 = vmatprep.subr.mxu0 0.0
    %876 = vmatpush1.msra.mxu0 0.0
    %877 = vmatprep.subr.mxu0 0.0
    %878 = vmatpush1.msra.mxu0 0.0
    %879 = vmatprep.subr.mxu0 0.0
    %880 = vmatpush1.msra.mxu0 0.0
    %881 = vmatprep.subr.mxu0 0.0
    %882 = vmatpush1.msra.mxu0 0.0
    %883 = vmatprep.subr.mxu0 0.0
    %884 = vmatpush1.msra.mxu0 0.0
    %885 = vmatprep.subr.mxu0 0.0
    %886 = vmatpush1.msra.mxu0 0.0
    %887 = vmatprep.subr.mxu0 0.0
    %888 = vmatpush1.msra.mxu0 0.0
    %889 = vmatprep.mubr.f32.mxu0 0.0
    %890 = vmatmul.mubr.f32.gmra.mrb[0].mxu0 %v144
    %v891 = vpop.f32.mrb[0].mxu0
    %v892 = vadd.f32 %v823, %v891
    %v893 = vpop.f32.mrb[0].mxu0
    %894 = vmatprep.mubr.f32.mxu0 0.0
    %895 = vmatmul.mubr.f32.gmra.mrb[0].mxu0 %v147
    %v896 = vpop.f32.mrb[0].mxu0
    %v897 = vadd.f32 %v823, %v896
    %v898 = vpop.f32.mrb[0].mxu0
    %899 = vdwg.mxu0
    %s900 = scalar_lea.vmem %s3, 160
    %v901 = vld [vmem:[%s900] sm:$0xff]
    %v902 = vld [vmem:[%s900 + $0x8] sm:$0xff]
    %v903 = vld [vmem:[%s900 + $0x10] sm:$0xff]
    %v904 = vld [vmem:[%s900 + $0x18] sm:$0xff]
    %s905 = scalar_lea.vmem %s4, 5
    %v906 = vld [vmem:[%s905] sm:$0x1]
    %v908 = vlaneseq
    %v909 = vshrl.u32 %v908, 7
    %v910 = vsub.s32 0, %v909
    %v911 = vrot.slane %v906, %v910
    %913 = vmatprep.subr.mxu0 0.0
    %914 = vmatpush1.msra.mxu0 %v901
    %915 = vmatprep.subr.mxu0 0.0
    %916 = vmatpush1.msra.mxu0 %v902
    %917 = vmatprep.subr.mxu0 0.0
    %918 = vmatpush1.msra.mxu0 %v903
    %919 = vmatprep.subr.mxu0 0.0
    %920 = vmatpush1.msra.mxu0 %v904
    %921 = vmatprep.subr.mxu0 0.0
    %922 = vmatpush1.msra.mxu0 0.0
    %923 = vmatprep.subr.mxu0 0.0
    %924 = vmatpush1.msra.mxu0 0.0
    %925 = vmatprep.subr.mxu0 0.0
    %926 = vmatpush1.msra.mxu0 0.0
    %927 = vmatprep.subr.mxu0 0.0
    %928 = vmatpush1.msra.mxu0 0.0
    %929 = vmatprep.subr.mxu0 0.0
    %930 = vmatpush1.msra.mxu0 0.0
    %931 = vmatprep.subr.mxu0 0.0
    %932 = vmatpush1.msra.mxu0 0.0
    %933 = vmatprep.subr.mxu0 0.0
    %934 = vmatpush1.msra.mxu0 0.0
    %935 = vmatprep.subr.mxu0 0.0
    %936 = vmatpush1.msra.mxu0 0.0
    %937 = vmatprep.subr.mxu0 0.0
    %938 = vmatpush1.msra.mxu0 0.0
    %939 = vmatprep.subr.mxu0 0.0
    %940 = vmatpush1.msra.mxu0 0.0
    %941 = vmatprep.subr.mxu0 0.0
    %942 = vmatpush1.msra.mxu0 0.0
    %943 = vmatprep.subr.mxu0 0.0
    %944 = vmatpush1.msra.mxu0 0.0
    %945 = vmatprep.subr.mxu0 0.0
    %946 = vmatpush1.msra.mxu0 0.0
    %947 = vmatprep.subr.mxu0 0.0
    %948 = vmatpush1.msra.mxu0 0.0
    %949 = vmatprep.subr.mxu0 0.0
    %950 = vmatpush1.msra.mxu0 0.0
    %951 = vmatprep.subr.mxu0 0.0
    %952 = vmatpush1.msra.mxu0 0.0
    %953 = vmatprep.subr.mxu0 0.0
    %954 = vmatpush1.msra.mxu0 0.0
    %955 = vmatprep.subr.mxu0 0.0
    %956 = vmatpush1.msra.mxu0 0.0
    %957 = vmatprep.subr.mxu0 0.0
    %958 = vmatpush1.msra.mxu0 0.0
    %959 = vmatprep.subr.mxu0 0.0
    %960 = vmatpush1.msra.mxu0 0.0
    %961 = vmatprep.subr.mxu0 0.0
    %962 = vmatpush1.msra.mxu0 0.0
    %963 = vmatprep.subr.mxu0 0.0
    %964 = vmatpush1.msra.mxu0 0.0
    %965 = vmatprep.subr.mxu0 0.0
    %966 = vmatpush1.msra.mxu0 0.0
    %967 = vmatprep.subr.mxu0 0.0
    %968 = vmatpush1.msra.mxu0 0.0
    %969 = vmatprep.subr.mxu0 0.0
    %970 = vmatpush1.msra.mxu0 0.0
    %971 = vmatprep.subr.mxu0 0.0
    %972 = vmatpush1.msra.mxu0 0.0
    %973 = vmatprep.subr.mxu0 0.0
    %974 = vmatpush1.msra.mxu0 0.0
    %975 = vmatprep.subr.mxu0 0.0
    %976 = vmatpush1.msra.mxu0 0.0
    %977 = vmatprep.mubr.f32.mxu0 0.0
    %978 = vmatmul.mubr.f32.gmra.mrb[0].mxu0 %v144
    %v979 = vpop.f32.mrb[0].mxu0
    %v980 = vadd.f32 %v911, %v979
    %v981 = vpop.f32.mrb[0].mxu0
    %982 = vmatprep.mubr.f32.mxu0 0.0
    %983 = vmatmul.mubr.f32.gmra.mrb[0].mxu0 %v147
    %v984 = vpop.f32.mrb[0].mxu0
    %v985 = vadd.f32 %v911, %v984
    %v986 = vpop.f32.mrb[0].mxu0
    %987 = vdwg.mxu0
    %v989 = vsel %vm400, %v804, 0
    %v992 = vsel %vm400, %v892, 0
    %994 = vmatprep.subr.mxu0 0.0
    %995 = vmatpush1.xpose.msra.mxu0 %v992
    %996 = vmatprep.subr.mxu0 0.0
    %997 = vmatpush1.xpose.msra.mxu0 0.0
    %998 = vmatprep.subr.mxu0 0.0
    %999 = vmatpush1.xpose.msra.mxu0 0.0
    %1000 = vmatprep.subr.mxu0 0.0
    %1001 = vmatpush1.xpose.msra.mxu0 0.0
    %1002 = vmatprep.subr.mxu0 0.0
    %1003 = vmatpush1.xpose.msra.mxu0 0.0
    %1004 = vmatprep.subr.mxu0 0.0
    %1005 = vmatpush1.xpose.msra.mxu0 0.0
    %1006 = vmatprep.subr.mxu0 0.0
    %1007 = vmatpush1.xpose.msra.mxu0 0.0
    %1008 = vmatprep.subr.mxu0 0.0
    %1009 = vmatpush1.xpose.msra.mxu0 0.0
    %1010 = vmatprep.subr.mxu0 0.0
    %1011 = vmatpush1.xpose.msra.mxu0 0.0
    %1012 = vmatprep.subr.mxu0 0.0
    %1013 = vmatpush1.xpose.msra.mxu0 0.0
    %1014 = vmatprep.subr.mxu0 0.0
    %1015 = vmatpush1.xpose.msra.mxu0 0.0
    %1016 = vmatprep.subr.mxu0 0.0
    %1017 = vmatpush1.xpose.msra.mxu0 0.0
    %1018 = vmatprep.subr.mxu0 0.0
    %1019 = vmatpush1.xpose.msra.mxu0 0.0
    %1020 = vmatprep.subr.mxu0 0.0
    %1021 = vmatpush1.xpose.msra.mxu0 0.0
    %1022 = vmatprep.subr.mxu0 0.0
    %1023 = vmatpush1.xpose.msra.mxu0 0.0
    %1024 = vmatprep.subr.mxu0 0.0
    %1025 = vmatpush1.xpose.msra.mxu0 0.0
    %1026 = vmatprep.subr.mxu0 0.0
    %1027 = vmatpush1.xpose.msra.mxu0 0.0
    %1028 = vmatprep.subr.mxu0 0.0
    %1029 = vmatpush1.xpose.msra.mxu0 0.0
    %1030 = vmatprep.subr.mxu0 0.0
    %1031 = vmatpush1.xpose.msra.mxu0 0.0
    %1032 = vmatprep.subr.mxu0 0.0
    %1033 = vmatpush1.xpose.msra.mxu0 0.0
    %1034 = vmatprep.subr.mxu0 0.0
    %1035 = vmatpush1.xpose.msra.mxu0 0.0
    %1036 = vmatprep.subr.mxu0 0.0
    %1037 = vmatpush1.xpose.msra.mxu0 0.0
    %1038 = vmatprep.subr.mxu0 0.0
    %1039 = vmatpush1.xpose.msra.mxu0 0.0
    %1040 = vmatprep.subr.mxu0 0.0
    %1041 = vmatpush1.xpose.msra.mxu0 0.0
    %1042 = vmatprep.subr.mxu0 0.0
    %1043 = vmatpush1.xpose.msra.mxu0 0.0
    %1044 = vmatprep.subr.mxu0 0.0
    %1045 = vmatpush1.xpose.msra.mxu0 0.0
    %1046 = vmatprep.subr.mxu0 0.0
    %1047 = vmatpush1.xpose.msra.mxu0 0.0
    %1048 = vmatprep.subr.mxu0 0.0
    %1049 = vmatpush1.xpose.msra.mxu0 0.0
    %1050 = vmatprep.subr.mxu0 0.0
    %1051 = vmatpush1.xpose.msra.mxu0 0.0
    %1052 = vmatprep.subr.mxu0 0.0
    %1053 = vmatpush1.xpose.msra.mxu0 0.0
    %1054 = vmatprep.subr.mxu0 0.0
    %1055 = vmatpush1.xpose.msra.mxu0 0.0
    %1056 = vmatprep.subr.mxu0 0.0
    %1057 = vmatpush1.xpose.msra.mxu0 0.0
    %1058 = vmatprep.mubr.f32.mxu0 0.0
    %1059 = vmatmul.mubr.f32.gmra.mrb[0].mxu0 %v989
    %v1060 = vpop.f32.mrb[0].mxu0
    %v1061 = vadd.f32 %v124, %v1060
    %v1062 = vpop.f32.mrb[0].mxu0
    %1063 = vdwg.mxu0
    %v1065 = vsel %vm400, %v809, 0
    %v1068 = vsel %vm400, %v897, 0
    %1070 = vmatprep.subr.mxu0 0.0
    %1071 = vmatpush1.xpose.msra.mxu0 %v1068
    %1072 = vmatprep.subr.mxu0 0.0
    %1073 = vmatpush1.xpose.msra.mxu0 0.0
    %1074 = vmatprep.subr.mxu0 0.0
    %1075 = vmatpush1.xpose.msra.mxu0 0.0
    %1076 = vmatprep.subr.mxu0 0.0
    %1077 = vmatpush1.xpose.msra.mxu0 0.0
    %1078 = vmatprep.subr.mxu0 0.0
    %1079 = vmatpush1.xpose.msra.mxu0 0.0
    %1080 = vmatprep.subr.mxu0 0.0
    %1081 = vmatpush1.xpose.msra.mxu0 0.0
    %1082 = vmatprep.subr.mxu0 0.0
    %1083 = vmatpush1.xpose.msra.mxu0 0.0
    %1084 = vmatprep.subr.mxu0 0.0
    %1085 = vmatpush1.xpose.msra.mxu0 0.0
    %1086 = vmatprep.subr.mxu0 0.0
    %1087 = vmatpush1.xpose.msra.mxu0 0.0
    %1088 = vmatprep.subr.mxu0 0.0
    %1089 = vmatpush1.xpose.msra.mxu0 0.0
    %1090 = vmatprep.subr.mxu0 0.0
    %1091 = vmatpush1.xpose.msra.mxu0 0.0
    %1092 = vmatprep.subr.mxu0 0.0
    %1093 = vmatpush1.xpose.msra.mxu0 0.0
    %1094 = vmatprep.subr.mxu0 0.0
    %1095 = vmatpush1.xpose.msra.mxu0 0.0
    %1096 = vmatprep.subr.mxu0 0.0
    %1097 = vmatpush1.xpose.msra.mxu0 0.0
    %1098 = vmatprep.subr.mxu0 0.0
    %1099 = vmatpush1.xpose.msra.mxu0 0.0
    %1100 = vmatprep.subr.mxu0 0.0
    %1101 = vmatpush1.xpose.msra.mxu0 0.0
    %1102 = vmatprep.subr.mxu0 0.0
    %1103 = vmatpush1.xpose.msra.mxu0 0.0
    %1104 = vmatprep.subr.mxu0 0.0
    %1105 = vmatpush1.xpose.msra.mxu0 0.0
    %1106 = vmatprep.subr.mxu0 0.0
    %1107 = vmatpush1.xpose.msra.mxu0 0.0
    %1108 = vmatprep.subr.mxu0 0.0
    %1109 = vmatpush1.xpose.msra.mxu0 0.0
    %1110 = vmatprep.subr.mxu0 0.0
    %1111 = vmatpush1.xpose.msra.mxu0 0.0
    %1112 = vmatprep.subr.mxu0 0.0
    %1113 = vmatpush1.xpose.msra.mxu0 0.0
    %1114 = vmatprep.subr.mxu0 0.0
    %1115 = vmatpush1.xpose.msra.mxu0 0.0
    %1116 = vmatprep.subr.mxu0 0.0
    %1117 = vmatpush1.xpose.msra.mxu0 0.0
    %1118 = vmatprep.subr.mxu0 0.0
    %1119 = vmatpush1.xpose.msra.mxu0 0.0
    %1120 = vmatprep.subr.mxu0 0.0
    %1121 = vmatpush1.xpose.msra.mxu0 0.0
    %1122 = vmatprep.subr.mxu0 0.0
    %1123 = vmatpush1.xpose.msra.mxu0 0.0
    %1124 = vmatprep.subr.mxu0 0.0
    %1125 = vmatpush1.xpose.msra.mxu0 0.0
    %1126 = vmatprep.subr.mxu0 0.0
    %1127 = vmatpush1.xpose.msra.mxu0 0.0
    %1128 = vmatprep.subr.mxu0 0.0
    %1129 = vmatpush1.xpose.msra.mxu0 0.0
    %1130 = vmatprep.subr.mxu0 0.0
    %1131 = vmatpush1.xpose.msra.mxu0 0.0
    %1132 = vmatprep.subr.mxu0 0.0
    %1133 = vmatpush1.xpose.msra.mxu0 0.0
    %1134 = vmatprep.mubr.f32.mxu0 0.0
    %1135 = vmatmul.mubr.f32.gmra.mrb[0].mxu0 %v1065
    %v1136 = vpop.f32.mrb[0].mxu0
    %v1137 = vadd.f32 %v128, %v1136
    %v1138 = vpop.f32.mrb[0].mxu0
    %1139 = vdwg.mxu0
    %v1140 = vsel %vm553, %v1061, -inf
    %1141 = vmax.xlane.f32.xlu0 %v1140
    %v1142 = vpop.xlane.xlu0 %1141
    %v1143 = vsel %vm553, %v1137, -inf
    %1144 = vmax.xlane.f32.xlu0 %v1143
    %v1145 = vpop.xlane.xlu0 %1144
    %v1146 = vsub.f32 %v1061, %v1142
    %v1147 = vsub.f32 %v1137, %v1145
    %v1148 = vmul.f32 %v1146, 1.442695
    %v1149 = vpow.pop %v1148
    %v1150 = vmul.f32 %v1147, 1.442695
    %v1151 = vpow.pop %v1150
    %v1152 = vsel %vm553, %v1149, 0.0
    %1153 = vadd.xlane.f32.xlu0 %v1152
    %v1154 = vpop.xlane.xlu0 %1153
    %v1155 = vsel %vm553, %v1151, 0.0
    %1156 = vadd.xlane.f32.xlu0 %v1155
    %v1157 = vpop.xlane.xlu0 %1156
    %v1158 = vrcp.pop %v1154
    %v1159 = vrcp.pop %v1157
    %v1160 = vmul.f32 %v1149, %v1158
    %v1161 = vmul.f32 %v1151, %v1159
    %v1163 = vsel %vm553, %v1160, 0
    %1165 = vmatprep.subr.mxu0 0.0
    %1166 = vmatpush1.msra.mxu0 %v980
    %1167 = vmatprep.subr.mxu0 0.0
    %1168 = vmatpush1.msra.mxu0 0.0
    %1169 = vmatprep.subr.mxu0 0.0
    %1170 = vmatpush1.msra.mxu0 0.0
    %1171 = vmatprep.subr.mxu0 0.0
    %1172 = vmatpush1.msra.mxu0 0.0
    %1173 = vmatprep.subr.mxu0 0.0
    %1174 = vmatpush1.msra.mxu0 0.0
    %1175 = vmatprep.subr.mxu0 0.0
    %1176 = vmatpush1.msra.mxu0 0.0
    %1177 = vmatprep.subr.mxu0 0.0
    %1178 = vmatpush1.msra.mxu0 0.0
    %1179 = vmatprep.subr.mxu0 0.0
    %1180 = vmatpush1.msra.mxu0 0.0
    %1181 = vmatprep.subr.mxu0 0.0
    %1182 = vmatpush1.msra.mxu0 0.0
    %1183 = vmatprep.subr.mxu0 0.0
    %1184 = vmatpush1.msra.mxu0 0.0
    %1185 = vmatprep.subr.mxu0 0.0
    %1186 = vmatpush1.msra.mxu0 0.0
    %1187 = vmatprep.subr.mxu0 0.0
    %1188 = vmatpush1.msra.mxu0 0.0
    %1189 = vmatprep.subr.mxu0 0.0
    %1190 = vmatpush1.msra.mxu0 0.0
    %1191 = vmatprep.subr.mxu0 0.0
    %1192 = vmatpush1.msra.mxu0 0.0
    %1193 = vmatprep.subr.mxu0 0.0
    %1194 = vmatpush1.msra.mxu0 0.0
    %1195 = vmatprep.subr.mxu0 0.0
    %1196 = vmatpush1.msra.mxu0 0.0
    %1197 = vmatprep.subr.mxu0 0.0
    %1198 = vmatpush1.msra.mxu0 0.0
    %1199 = vmatprep.subr.mxu0 0.0
    %1200 = vmatpush1.msra.mxu0 0.0
    %1201 = vmatprep.subr.mxu0 0.0
    %1202 = vmatpush1.msra.mxu0 0.0
    %1203 = vmatprep.subr.mxu0 0.0
    %1204 = vmatpush1.msra.mxu0 0.0
    %1205 = vmatprep.subr.mxu0 0.0
    %1206 = vmatpush1.msra.mxu0 0.0
    %1207 = vmatprep.subr.mxu0 0.0
    %1208 = vmatpush1.msra.mxu0 0.0
    %1209 = vmatprep.subr.mxu0 0.0
    %1210 = vmatpush1.msra.mxu0 0.0
    %1211 = vmatprep.subr.mxu0 0.0
    %1212 = vmatpush1.msra.mxu0 0.0
    %1213 = vmatprep.subr.mxu0 0.0
    %1214 = vmatpush1.msra.mxu0 0.0
    %1215 = vmatprep.subr.mxu0 0.0
    %1216 = vmatpush1.msra.mxu0 0.0
    %1217 = vmatprep.subr.mxu0 0.0
    %1218 = vmatpush1.msra.mxu0 0.0
    %1219 = vmatprep.subr.mxu0 0.0
    %1220 = vmatpush1.msra.mxu0 0.0
    %1221 = vmatprep.subr.mxu0 0.0
    %1222 = vmatpush1.msra.mxu0 0.0
    %1223 = vmatprep.subr.mxu0 0.0
    %1224 = vmatpush1.msra.mxu0 0.0
    %1225 = vmatprep.subr.mxu0 0.0
    %1226 = vmatpush1.msra.mxu0 0.0
    %1227 = vmatprep.subr.mxu0 0.0
    %1228 = vmatpush1.msra.mxu0 0.0
    %1229 = vmatprep.mubr.f32.mxu0 0.0
    %1230 = vmatmul.mubr.f32.gmra.mrb[0].mxu0 %v1163
    %v1231 = vpop.f32.mrb[0].mxu0
    %v1232 = vadd.f32 0.0, %v1231
    %v1233 = vpop.f32.mrb[0].mxu0
    %1234 = vdwg.mxu0
    %v1236 = vsel %vm553, %v1161, 0
    %1238 = vmatprep.subr.mxu0 0.0
    %1239 = vmatpush1.msra.mxu0 %v985
    %1240 = vmatprep.subr.mxu0 0.0
    %1241 = vmatpush1.msra.mxu0 0.0
    %1242 = vmatprep.subr.mxu0 0.0
    %1243 = vmatpush1.msra.mxu0 0.0
    %1244 = vmatprep.subr.mxu0 0.0
    %1245 = vmatpush1.msra.mxu0 0.0
    %1246 = vmatprep.subr.mxu0 0.0
    %1247 = vmatpush1.msra.mxu0 0.0
    %1248 = vmatprep.subr.mxu0 0.0
    %1249 = vmatpush1.msra.mxu0 0.0
    %1250 = vmatprep.subr.mxu0 0.0
    %1251 = vmatpush1.msra.mxu0 0.0
    %1252 = vmatprep.subr.mxu0 0.0
    %1253 = vmatpush1.msra.mxu0 0.0
    %1254 = vmatprep.subr.mxu0 0.0
    %1255 = vmatpush1.msra.mxu0 0.0
    %1256 = vmatprep.subr.mxu0 0.0
    %1257 = vmatpush1.msra.mxu0 0.0
    %1258 = vmatprep.subr.mxu0 0.0
    %1259 = vmatpush1.msra.mxu0 0.0
    %1260 = vmatprep.subr.mxu0 0.0
    %1261 = vmatpush1.msra.mxu0 0.0
    %1262 = vmatprep.subr.mxu0 0.0
    %1263 = vmatpush1.msra.mxu0 0.0
    %1264 = vmatprep.subr.mxu0 0.0
    %1265 = vmatpush1.msra.mxu0 0.0
    %1266 = vmatprep.subr.mxu0 0.0
    %1267 = vmatpush1.msra.mxu0 0.0
    %1268 = vmatprep.subr.mxu0 0.0
    %1269 = vmatpush1.msra.mxu0 0.0
    %1270 = vmatprep.subr.mxu0 0.0
    %1271 = vmatpush1.msra.mxu0 0.0
    %1272 = vmatprep.subr.mxu0 0.0
    %1273 = vmatpush1.msra.mxu0 0.0
    %1274 = vmatprep.subr.mxu0 0.0
    %1275 = vmatpush1.msra.mxu0 0.0
    %1276 = vmatprep.subr.mxu0 0.0
    %1277 = vmatpush1.msra.mxu0 0.0
    %1278 = vmatprep.subr.mxu0 0.0
    %1279 = vmatpush1.msra.mxu0 0.0
    %1280 = vmatprep.subr.mxu0 0.0
    %1281 = vmatpush1.msra.mxu0 0.0
    %1282 = vmatprep.subr.mxu0 0.0
    %1283 = vmatpush1.msra.mxu0 0.0
    %1284 = vmatprep.subr.mxu0 0.0
    %1285 = vmatpush1.msra.mxu0 0.0
    %1286 = vmatprep.subr.mxu0 0.0
    %1287 = vmatpush1.msra.mxu0 0.0
    %1288 = vmatprep.subr.mxu0 0.0
    %1289 = vmatpush1.msra.mxu0 0.0
    %1290 = vmatprep.subr.mxu0 0.0
    %1291 = vmatpush1.msra.mxu0 0.0
    %1292 = vmatprep.subr.mxu0 0.0
    %1293 = vmatpush1.msra.mxu0 0.0
    %1294 = vmatprep.subr.mxu0 0.0
    %1295 = vmatpush1.msra.mxu0 0.0
    %1296 = vmatprep.subr.mxu0 0.0
    %1297 = vmatpush1.msra.mxu0 0.0
    %1298 = vmatprep.subr.mxu0 0.0
    %1299 = vmatpush1.msra.mxu0 0.0
    %1300 = vmatprep.subr.mxu0 0.0
    %1301 = vmatpush1.msra.mxu0 0.0
    %1302 = vmatprep.mubr.f32.mxu0 0.0
    %1303 = vmatmul.mubr.f32.gmra.mrb[0].mxu0 %v1236
    %v1304 = vpop.f32.mrb[0].mxu0
    %v1305 = vadd.f32 0.0, %v1304
    %v1306 = vpop.f32.mrb[0].mxu0
    %1307 = vdwg.mxu0
    %s1308 = scalar_lea.vmem %s5, 16
    %v1309 = vld [vmem:[%s1308] sm:$0xff]
    %v1310 = vld [vmem:[%s1308 + $0x8] sm:$0xff]
    %v1312 = vsel %vm400, %v1232, 0
    %v1315 = vsel %vm400, %v1305, 0
    %1317 = vmatprep.subr.mxu0 0.0
    %1318 = vmatpush1.msra.mxu0 %v1309
    %1319 = vmatprep.subr.mxu0 0.0
    %1320 = vmatpush1.msra.mxu0 %v1310
    %1321 = vmatprep.subr.mxu0 0.0
    %1322 = vmatpush1.msra.mxu0 0.0
    %1323 = vmatprep.subr.mxu0 0.0
    %1324 = vmatpush1.msra.mxu0 0.0
    %1325 = vmatprep.subr.mxu0 0.0
    %1326 = vmatpush1.msra.mxu0 0.0
    %1327 = vmatprep.subr.mxu0 0.0
    %1328 = vmatpush1.msra.mxu0 0.0
    %1329 = vmatprep.subr.mxu0 0.0
    %1330 = vmatpush1.msra.mxu0 0.0
    %1331 = vmatprep.subr.mxu0 0.0
    %1332 = vmatpush1.msra.mxu0 0.0
    %1333 = vmatprep.subr.mxu0 0.0
    %1334 = vmatpush1.msra.mxu0 0.0
    %1335 = vmatprep.subr.mxu0 0.0
    %1336 = vmatpush1.msra.mxu0 0.0
    %1337 = vmatprep.subr.mxu0 0.0
    %1338 = vmatpush1.msra.mxu0 0.0
    %1339 = vmatprep.subr.mxu0 0.0
    %1340 = vmatpush1.msra.mxu0 0.0
    %1341 = vmatprep.subr.mxu0 0.0
    %1342 = vmatpush1.msra.mxu0 0.0
    %1343 = vmatprep.subr.mxu0 0.0
    %1344 = vmatpush1.msra.mxu0 0.0
    %1345 = vmatprep.subr.mxu0 0.0
    %1346 = vmatpush1.msra.mxu0 0.0
    %1347 = vmatprep.subr.mxu0 0.0
    %1348 = vmatpush1.msra.mxu0 0.0
    %1349 = vmatprep.subr.mxu0 0.0
    %1350 = vmatpush1.msra.mxu0 0.0
    %1351 = vmatprep.subr.mxu0 0.0
    %1352 = vmatpush1.msra.mxu0 0.0
    %1353 = vmatprep.subr.mxu0 0.0
    %1354 = vmatpush1.msra.mxu0 0.0
    %1355 = vmatprep.subr.mxu0 0.0
    %1356 = vmatpush1.msra.mxu0 0.0
    %1357 = vmatprep.subr.mxu0 0.0
    %1358 = vmatpush1.msra.mxu0 0.0
    %1359 = vmatprep.subr.mxu0 0.0
    %1360 = vmatpush1.msra.mxu0 0.0
    %1361 = vmatprep.subr.mxu0 0.0
    %1362 = vmatpush1.msra.mxu0 0.0
    %1363 = vmatprep.subr.mxu0 0.0
    %1364 = vmatpush1.msra.mxu0 0.0
    %1365 = vmatprep.subr.mxu0 0.0
    %1366 = vmatpush1.msra.mxu0 0.0
    %1367 = vmatprep.subr.mxu0 0.0
    %1368 = vmatpush1.msra.mxu0 0.0
    %1369 = vmatprep.subr.mxu0 0.0
    %1370 = vmatpush1.msra.mxu0 0.0
    %1371 = vmatprep.subr.mxu0 0.0
    %1372 = vmatpush1.msra.mxu0 0.0
    %1373 = vmatprep.subr.mxu0 0.0
    %1374 = vmatpush1.msra.mxu0 0.0
    %1375 = vmatprep.subr.mxu0 0.0
    %1376 = vmatpush1.msra.mxu0 0.0
    %1377 = vmatprep.subr.mxu0 0.0
    %1378 = vmatpush1.msra.mxu0 0.0
    %1379 = vmatprep.subr.mxu0 0.0
    %1380 = vmatpush1.msra.mxu0 0.0
    %1381 = vmatprep.mubr.f32.mxu0 0.0
    %1382 = vmatmul.mubr.f32.gmra.mrb[0].mxu0 %v1312
    %v1383 = vpop.f32.mrb[0].mxu0
    %v1384 = vadd.f32 0.0, %v1383
    %v1385 = vpop.f32.mrb[0].mxu0
    %1386 = vmatprep.mubr.f32.mxu0 0.0
    %1387 = vmatmul.mubr.f32.gmra.mrb[0].mxu0 %v1315
    %v1388 = vpop.f32.mrb[0].mxu0
    %v1389 = vadd.f32 0.0, %v1388
    %v1390 = vpop.f32.mrb[0].mxu0
    %1391 = vdwg.mxu0
    %v1393 = vsel %vm400, %v646, 0
    %v1396 = vsel %vm400, %v719, 0
    %1398 = vmatprep.subr.mxu0 0.0
    %1399 = vmatpush1.msra.mxu0 %v722
    %1400 = vmatprep.subr.mxu0 0.0
    %1401 = vmatpush1.msra.mxu0 %v723
    %1402 = vmatprep.subr.mxu0 0.0
    %1403 = vmatpush1.msra.mxu0 0.0
    %1404 = vmatprep.subr.mxu0 0.0
    %1405 = vmatpush1.msra.mxu0 0.0
    %1406 = vmatprep.subr.mxu0 0.0
    %1407 = vmatpush1.msra.mxu0 0.0
    %1408 = vmatprep.subr.mxu0 0.0
    %1409 = vmatpush1.msra.mxu0 0.0
    %1410 = vmatprep.subr.mxu0 0.0
    %1411 = vmatpush1.msra.mxu0 0.0
    %1412 = vmatprep.subr.mxu0 0.0
    %1413 = vmatpush1.msra.mxu0 0.0
    %1414 = vmatprep.subr.mxu0 0.0
    %1415 = vmatpush1.msra.mxu0 0.0
    %1416 = vmatprep.subr.mxu0 0.0
    %1417 = vmatpush1.msra.mxu0 0.0
    %1418 = vmatprep.subr.mxu0 0.0
    %1419 = vmatpush1.msra.mxu0 0.0
    %1420 = vmatprep.subr.mxu0 0.0
    %1421 = vmatpush1.msra.mxu0 0.0
    %1422 = vmatprep.subr.mxu0 0.0
    %1423 = vmatpush1.msra.mxu0 0.0
    %1424 = vmatprep.subr.mxu0 0.0
    %1425 = vmatpush1.msra.mxu0 0.0
    %1426 = vmatprep.subr.mxu0 0.0
    %1427 = vmatpush1.msra.mxu0 0.0
    %1428 = vmatprep.subr.mxu0 0.0
    %1429 = vmatpush1.msra.mxu0 0.0
    %1430 = vmatprep.subr.mxu0 0.0
    %1431 = vmatpush1.msra.mxu0 0.0
    %1432 = vmatprep.subr.mxu0 0.0
    %1433 = vmatpush1.msra.mxu0 0.0
    %1434 = vmatprep.subr.mxu0 0.0
    %1435 = vmatpush1.msra.mxu0 0.0
    %1436 = vmatprep.subr.mxu0 0.0
    %1437 = vmatpush1.msra.mxu0 0.0
    %1438 = vmatprep.subr.mxu0 0.0
    %1439 = vmatpush1.msra.mxu0 0.0
    %1440 = vmatprep.subr.mxu0 0.0
    %1441 = vmatpush1.msra.mxu0 0.0
    %1442 = vmatprep.subr.mxu0 0.0
    %1443 = vmatpush1.msra.mxu0 0.0
    %1444 = vmatprep.subr.mxu0 0.0
    %1445 = vmatpush1.msra.mxu0 0.0
    %1446 = vmatprep.subr.mxu0 0.0
    %1447 = vmatpush1.msra.mxu0 0.0
    %1448 = vmatprep.subr.mxu0 0.0
    %1449 = vmatpush1.msra.mxu0 0.0
    %1450 = vmatprep.subr.mxu0 0.0
    %1451 = vmatpush1.msra.mxu0 0.0
    %1452 = vmatprep.subr.mxu0 0.0
    %1453 = vmatpush1.msra.mxu0 0.0
    %1454 = vmatprep.subr.mxu0 0.0
    %1455 = vmatpush1.msra.mxu0 0.0
    %1456 = vmatprep.subr.mxu0 0.0
    %1457 = vmatpush1.msra.mxu0 0.0
    %1458 = vmatprep.subr.mxu0 0.0
    %1459 = vmatpush1.msra.mxu0 0.0
    %1460 = vmatprep.subr.mxu0 0.0
    %1461 = vmatpush1.msra.mxu0 0.0
    %1462 = vmatprep.mubr.f32.mxu0 0.0
    %1463 = vmatmul.mubr.f32.gmra.mrb[0].mxu0 %v1393
    %v1464 = vpop.f32.mrb[0].mxu0
    %v1465 = vadd.f32 %v1384, %v1464
    %v1466 = vpop.f32.mrb[0].mxu0
    %1467 = vmatprep.mubr.f32.mxu0 0.0
    %1468 = vmatmul.mubr.f32.gmra.mrb[0].mxu0 %v1396
    %v1469 = vpop.f32.mrb[0].mxu0
    %v1470 = vadd.f32 %v1389, %v1469
    %v1471 = vpop.f32.mrb[0].mxu0
    %1472 = vdwg.mxu0
    %v1473 = vlaneseq
    %v1474 = vshrl.u32 %v1473, 7
    %v1475 = vsub.s32 0, %v1474
    %v1476 = vrot.slane %v131, %v1475
    %v1477 = vadd.f32 %v1465, %v1476
    %v1478 = vadd.f32 %v1470, %v1476
    %v1479 = vadd.f32 %v93, %v1477
    %v1480 = vadd.f32 %v94, %v1478
    %v1481 = vsel %vm55, %v1479, 0.0
    %1482 = vadd.xlane.f32.xlu0 %v1481
    %v1483 = vpop.xlane.xlu0 %1482
    %v1484 = vsel %vm55, %v1480, 0.0
    %1485 = vadd.xlane.f32.xlu0 %v1484
    %v1486 = vpop.xlane.xlu0 %1485
    %v1487 = vmul.f32 %v1483, %v62
    %v1488 = vmul.f32 %v1486, %v62
    %v1489 = vsub.f32 %v1479, %v1487
    %v1490 = vsub.f32 %v1480, %v1488
    %v1491 = vmul.f32 %v1489, %v1489
    %v1492 = vmul.f32 %v1490, %v1490
    %v1493 = vsel %vm55, %v1491, 0.0
    %1494 = vadd.xlane.f32.xlu0 %v1493
    %v1495 = vpop.xlane.xlu0 %1494
    %v1496 = vsel %vm55, %v1492, 0.0
    %1497 = vadd.xlane.f32.xlu0 %v1496
    %v1498 = vpop.xlane.xlu0 %1497
    %v1499 = vmul.f32 %v1495, %v62
    %v1500 = vmul.f32 %v1498, %v62
    %v1501 = vadd.f32 %v1499, 1e-12
    %v1502 = vadd.f32 %v1500, 1e-12
    %v1503 = vrsqrt.pop %v1501
    %v1504 = vrsqrt.pop %v1502
    %v1505 = vmul.f32 %v1489, %v1503
    %v1506 = vmul.f32 %v1490, %v1504
    %v1507 = vlaneseq
    %v1508 = vshrl.u32 %v1507, 7
    %v1509 = vsub.s32 3, %v1508
    %v1510 = vrot.slane %v131, %v1509
    %v1511 = vmul.f32 %v1505, %v1510
    %v1512 = vmul.f32 %v1506, %v1510
    %v1513 = vlaneseq
    %v1514 = vshrl.u32 %v1513, 7
    %v1515 = vsub.s32 4, %v1514
    %v1516 = vrot.slane %v131, %v1515
    %v1517 = vadd.f32 %v1511, %v1516
    %v1518 = vadd.f32 %v1512, %v1516
    %v1519 = vld [vmem:[%s6] sm:$0xff]
    %v1520 = vld [vmem:[%s6 + $0x8] sm:$0xff]
    %v1521 = vld [vmem:[%s6 + $0x10] sm:$0xff]
    %v1522 = vld [vmem:[%s6 + $0x18] sm:$0xff]
    %v1523 = vlaneseq
    %v1524 = vshrl.u32 %v1523, 7
    %v1525 = vsub.s32 1, %v1524
    %v1526 = vrot.slane %v131, %v1525
    %v1528 = vsel %vm55, %v1517, 0
    %v1531 = vsel %vm55, %v1518, 0
    %1533 = vmatprep.subr.mxu0 0.0
    %1534 = vmatpush1.msra.mxu0 %v1519
    %1535 = vmatprep.subr.mxu0 0.0
    %1536 = vmatpush1.msra.mxu0 %v1520
    %1537 = vmatprep.subr.mxu0 0.0
    %1538 = vmatpush1.msra.mxu0 %v1521
    %1539 = vmatprep.subr.mxu0 0.0
    %1540 = vmatpush1.msra.mxu0 %v1522
    %1541 = vmatprep.subr.mxu0 0.0
    %1542 = vmatpush1.msra.mxu0 0.0
    %1543 = vmatprep.subr.mxu0 0.0
    %1544 = vmatpush1.msra.mxu0 0.0
    %1545 = vmatprep.subr.mxu0 0.0
    %1546 = vmatpush1.msra.mxu0 0.0
    %1547 = vmatprep.subr.mxu0 0.0
    %1548 = vmatpush1.msra.mxu0 0.0
    %1549 = vmatprep.subr.mxu0 0.0
    %1550 = vmatpush1.msra.mxu0 0.0
    %1551 = vmatprep.subr.mxu0 0.0
    %1552 = vmatpush1.msra.mxu0 0.0
    %1553 = vmatprep.subr.mxu0 0.0
    %1554 = vmatpush1.msra.mxu0 0.0
    %1555 = vmatprep.subr.mxu0 0.0
    %1556 = vmatpush1.msra.mxu0 0.0
    %1557 = vmatprep.subr.mxu0 0.0
    %1558 = vmatpush1.msra.mxu0 0.0
    %1559 = vmatprep.subr.mxu0 0.0
    %1560 = vmatpush1.msra.mxu0 0.0
    %1561 = vmatprep.subr.mxu0 0.0
    %1562 = vmatpush1.msra.mxu0 0.0
    %1563 = vmatprep.subr.mxu0 0.0
    %1564 = vmatpush1.msra.mxu0 0.0
    %1565 = vmatprep.subr.mxu0 0.0
    %1566 = vmatpush1.msra.mxu0 0.0
    %1567 = vmatprep.subr.mxu0 0.0
    %1568 = vmatpush1.msra.mxu0 0.0
    %1569 = vmatprep.subr.mxu0 0.0
    %1570 = vmatpush1.msra.mxu0 0.0
    %1571 = vmatprep.subr.mxu0 0.0
    %1572 = vmatpush1.msra.mxu0 0.0
    %1573 = vmatprep.subr.mxu0 0.0
    %1574 = vmatpush1.msra.mxu0 0.0
    %1575 = vmatprep.subr.mxu0 0.0
    %1576 = vmatpush1.msra.mxu0 0.0
    %1577 = vmatprep.subr.mxu0 0.0
    %1578 = vmatpush1.msra.mxu0 0.0
    %1579 = vmatprep.subr.mxu0 0.0
    %1580 = vmatpush1.msra.mxu0 0.0
    %1581 = vmatprep.subr.mxu0 0.0
    %1582 = vmatpush1.msra.mxu0 0.0
    %1583 = vmatprep.subr.mxu0 0.0
    %1584 = vmatpush1.msra.mxu0 0.0
    %1585 = vmatprep.subr.mxu0 0.0
    %1586 = vmatpush1.msra.mxu0 0.0
    %1587 = vmatprep.subr.mxu0 0.0
    %1588 = vmatpush1.msra.mxu0 0.0
    %1589 = vmatprep.subr.mxu0 0.0
    %1590 = vmatpush1.msra.mxu0 0.0
    %1591 = vmatprep.subr.mxu0 0.0
    %1592 = vmatpush1.msra.mxu0 0.0
    %1593 = vmatprep.subr.mxu0 0.0
    %1594 = vmatpush1.msra.mxu0 0.0
    %1595 = vmatprep.subr.mxu0 0.0
    %1596 = vmatpush1.msra.mxu0 0.0
    %1597 = vmatprep.mubr.f32.mxu0 0.0
    %1598 = vmatmul.mubr.f32.gmra.mrb[0].mxu0 %v1528
    %v1599 = vpop.f32.mrb[0].mxu0
    %v1600 = vadd.f32 %v1526, %v1599
    %v1601 = vpop.f32.mrb[0].mxu0
    %1602 = vmatprep.mubr.f32.mxu0 0.0
    %1603 = vmatmul.mubr.f32.gmra.mrb[0].mxu0 %v1531
    %v1604 = vpop.f32.mrb[0].mxu0
    %v1605 = vadd.f32 %v1526, %v1604
    %v1606 = vpop.f32.mrb[0].mxu0
    %1607 = vdwg.mxu0
    %v1608 = vmul.f32 %v1600, %v1600
    %v1609 = vmul.f32 %v1605, %v1605
    %v1610 = vmul.f32 %v1600, %v1608
    %v1611 = vmul.f32 %v1605, %v1609
    %v1612 = vmul.f32 %v1610, 0.044715
    %v1613 = vmul.f32 %v1611, 0.044715
    %v1614 = vadd.f32 %v1600, %v1612
    %v1615 = vadd.f32 %v1605, %v1613
    %v1616 = vmul.f32 %v1614, 0.7978846
    %v1617 = vmul.f32 %v1615, 0.7978846
    %v1618 = vtanh.pop %v1616
    %v1619 = vtanh.pop %v1617
    %v1620 = vadd.f32 %v1618, 1.0
    %v1621 = vadd.f32 %v1619, 1.0
    %v1622 = vmul.f32 %v1620, 0.5
    %v1623 = vmul.f32 %v1621, 0.5
    %v1624 = vmul.f32 %v1600, %v1622
    %v1625 = vmul.f32 %v1605, %v1623
    %v1626 = vld [vmem:[%s7] sm:$0xff]
    %v1627 = vld [vmem:[%s7 + $0x8] sm:$0xff]
    %v1628 = vld [vmem:[%s7 + $0x10] sm:$0xff]
    %v1629 = vld [vmem:[%s7 + $0x18] sm:$0xff]
    %v1630 = vld [vmem:[%s7 + $0x20] sm:$0xff]
    %v1631 = vld [vmem:[%s7 + $0x28] sm:$0xff]
    %v1632 = vld [vmem:[%s7 + $0x30] sm:$0xff]
    %v1633 = vld [vmem:[%s7 + $0x38] sm:$0xff]
    %v1634 = vlaneseq
    %v1635 = vshrl.u32 %v1634, 7
    %v1636 = vsub.s32 2, %v1635
    %v1637 = vrot.slane %v131, %v1636
    %vm1638 = vcmask 523264
    %v1640 = vsel %vm1638, %v1624, 0
    %v1643 = vsel %vm1638, %v1625, 0
    %1645 = vmatprep.subr.mxu0 0.0
    %1646 = vmatpush1.msra.mxu0 %v1626
    %1647 = vmatprep.subr.mxu0 0.0
    %1648 = vmatpush1.msra.mxu0 %v1627
    %1649 = vmatprep.subr.mxu0 0.0
    %1650 = vmatpush1.msra.mxu0 %v1628
    %1651 = vmatprep.subr.mxu0 0.0
    %1652 = vmatpush1.msra.mxu0 %v1629
    %1653 = vmatprep.subr.mxu0 0.0
    %1654 = vmatpush1.msra.mxu0 %v1630
    %1655 = vmatprep.subr.mxu0 0.0
    %1656 = vmatpush1.msra.mxu0 %v1631
    %1657 = vmatprep.subr.mxu0 0.0
    %1658 = vmatpush1.msra.mxu0 %v1632
    %1659 = vmatprep.subr.mxu0 0.0
    %1660 = vmatpush1.msra.mxu0 %v1633
    %1661 = vmatprep.subr.mxu0 0.0
    %1662 = vmatpush1.msra.mxu0 0.0
    %1663 = vmatprep.subr.mxu0 0.0
    %1664 = vmatpush1.msra.mxu0 0.0
    %1665 = vmatprep.subr.mxu0 0.0
    %1666 = vmatpush1.msra.mxu0 0.0
    %1667 = vmatprep.subr.mxu0 0.0
    %1668 = vmatpush1.msra.mxu0 0.0
    %1669 = vmatprep.subr.mxu0 0.0
    %1670 = vmatpush1.msra.mxu0 0.0
    %1671 = vmatprep.subr.mxu0 0.0
    %1672 = vmatpush1.msra.mxu0 0.0
    %1673 = vmatprep.subr.mxu0 0.0
    %1674 = vmatpush1.msra.mxu0 0.0
    %1675 = vmatprep.subr.mxu0 0.0
    %1676 = vmatpush1.msra.mxu0 0.0
    %1677 = vmatprep.subr.mxu0 0.0
    %1678 = vmatpush1.msra.mxu0 0.0
    %1679 = vmatprep.subr.mxu0 0.0
    %1680 = vmatpush1.msra.mxu0 0.0
    %1681 = vmatprep.subr.mxu0 0.0
    %1682 = vmatpush1.msra.mxu0 0.0
    %1683 = vmatprep.subr.mxu0 0.0
    %1684 = vmatpush1.msra.mxu0 0.0
    %1685 = vmatprep.subr.mxu0 0.0
    %1686 = vmatpush1.msra.mxu0 0.0
    %1687 = vmatprep.subr.mxu0 0.0
    %1688 = vmatpush1.msra.mxu0 0.0
    %1689 = vmatprep.subr.mxu0 0.0
    %1690 = vmatpush1.msra.mxu0 0.0
    %1691 = vmatprep.subr.mxu0 0.0
    %1692 = vmatpush1.msra.mxu0 0.0
    %1693 = vmatprep.subr.mxu0 0.0
    %1694 = vmatpush1.msra.mxu0 0.0
    %1695 = vmatprep.subr.mxu0 0.0
    %1696 = vmatpush1.msra.mxu0 0.0
    %1697 = vmatprep.subr.mxu0 0.0
    %1698 = vmatpush1.msra.mxu0 0.0
    %1699 = vmatprep.subr.mxu0 0.0
    %1700 = vmatpush1.msra.mxu0 0.0
    %1701 = vmatprep.subr.mxu0 0.0
    %1702 = vmatpush1.msra.mxu0 0.0
    %1703 = vmatprep.subr.mxu0 0.0
    %1704 = vmatpush1.msra.mxu0 0.0
    %1705 = vmatprep.subr.mxu0 0.0
    %1706 = vmatpush1.msra.mxu0 0.0
    %1707 = vmatprep.subr.mxu0 0.0
    %1708 = vmatpush1.msra.mxu0 0.0
    %1709 = vmatprep.mubr.f32.mxu0 0.0
    %1710 = vmatmul.mubr.f32.gmra.mrb[0].mxu0 %v1640
    %v1711 = vpop.f32.mrb[0].mxu0
    %v1712 = vadd.f32 %v1637, %v1711
    %v1713 = vpop.f32.mrb[0].mxu0
    %1714 = vmatprep.mubr.f32.mxu0 0.0
    %1715 = vmatmul.mubr.f32.gmra.mrb[0].mxu0 %v1643
    %v1716 = vpop.f32.mrb[0].mxu0
    %v1717 = vadd.f32 %v1637, %v1716
    %v1718 = vpop.f32.mrb[0].mxu0
    %1719 = vdwg.mxu0
    %v1720 = vadd.f32 %v1517, %v1712
    %v1721 = vadd.f32 %v1518, %v1717
    %v1722 = vsel %vm55, %v1720, 0.0
    %1723 = vadd.xlane.f32.xlu0 %v1722
    %v1724 = vpop.xlane.xlu0 %1723
    %v1725 = vsel %vm55, %v1721, 0.0
    %1726 = vadd.xlane.f32.xlu0 %v1725
    %v1727 = vpop.xlane.xlu0 %1726
    %v1728 = vmul.f32 %v1724, %v62
    %v1729 = vmul.f32 %v1727, %v62
    %v1730 = vsub.f32 %v1720, %v1728
    %v1731 = vsub.f32 %v1721, %v1729
    %v1732 = vmul.f32 %v1730, %v1730
    %v1733 = vmul.f32 %v1731, %v1731
    %v1734 = vsel %vm55, %v1732, 0.0
    %1735 = vadd.xlane.f32.xlu0 %v1734
    %v1736 = vpop.xlane.xlu0 %1735
    %v1737 = vsel %vm55, %v1733, 0.0
    %1738 = vadd.xlane.f32.xlu0 %v1737
    %v1739 = vpop.xlane.xlu0 %1738
    %v1740 = vmul.f32 %v1736, %v62
    %v1741 = vmul.f32 %v1739, %v62
    %v1742 = vadd.f32 %v1740, 1e-12
    %v1743 = vadd.f32 %v1741, 1e-12
    %v1744 = vrsqrt.pop %v1742
    %v1745 = vrsqrt.pop %v1743
    %v1746 = vmul.f32 %v1730, %v1744
    %v1747 = vmul.f32 %v1731, %v1745
    %v1748 = vlaneseq
    %v1749 = vshrl.u32 %v1748, 7
    %v1750 = vsub.s32 5, %v1749
    %v1751 = vrot.slane %v131, %v1750
    %v1752 = vmul.f32 %v1746, %v1751
    %v1753 = vmul.f32 %v1747, %v1751
    %v1754 = vlaneseq
    %v1755 = vshrl.u32 %v1754, 7
    %v1756 = vsub.s32 6, %v1755
    %v1757 = vrot.slane %v131, %v1756
    %v1758 = vadd.f32 %v1752, %v1757
    %v1759 = vadd.f32 %v1753, %v1757
    %s1760 = scalar_lea.vmem %s8, 8
    %v1761 = vld [vmem:[%s1760] sm:$0x7f]
    %s1762 = scalar_lea.vmem %s3, 192
    %v1763 = vld [vmem:[%s1762] sm:$0xff]
    %v1764 = vld [vmem:[%s1762 + $0x8] sm:$0xff]
    %v1765 = vld [vmem:[%s1762 + $0x10] sm:$0xff]
    %v1766 = vld [vmem:[%s1762 + $0x18] sm:$0xff]
    %s1767 = scalar_lea.vmem %s4, 6
    %v1768 = vld [vmem:[%s1767] sm:$0x1]
    %v1770 = vlaneseq
    %v1771 = vshrl.u32 %v1770, 7
    %v1772 = vsub.s32 0, %v1771
    %v1773 = vrot.slane %v1768, %v1772
    %v1776 = vsel %vm55, %v1758, 0
    %v1779 = vsel %vm55, %v1759, 0
    %1781 = vmatprep.subr.mxu0 0.0
    %1782 = vmatpush1.msra.mxu0 %v1763
    %1783 = vmatprep.subr.mxu0 0.0
    %1784 = vmatpush1.msra.mxu0 %v1764
    %1785 = vmatprep.subr.mxu0 0.0
    %1786 = vmatpush1.msra.mxu0 %v1765
    %1787 = vmatprep.subr.mxu0 0.0
    %1788 = vmatpush1.msra.mxu0 %v1766
    %1789 = vmatprep.subr.mxu0 0.0
    %1790 = vmatpush1.msra.mxu0 0.0
    %1791 = vmatprep.subr.mxu0 0.0
    %1792 = vmatpush1.msra.mxu0 0.0
    %1793 = vmatprep.subr.mxu0 0.0
    %1794 = vmatpush1.msra.mxu0 0.0
    %1795 = vmatprep.subr.mxu0 0.0
    %1796 = vmatpush1.msra.mxu0 0.0
    %1797 = vmatprep.subr.mxu0 0.0
    %1798 = vmatpush1.msra.mxu0 0.0
    %1799 = vmatprep.subr.mxu0 0.0
    %1800 = vmatpush1.msra.mxu0 0.0
    %1801 = vmatprep.subr.mxu0 0.0
    %1802 = vmatpush1.msra.mxu0 0.0
    %1803 = vmatprep.subr.mxu0 0.0
    %1804 = vmatpush1.msra.mxu0 0.0
    %1805 = vmatprep.subr.mxu0 0.0
    %1806 = vmatpush1.msra.mxu0 0.0
    %1807 = vmatprep.subr.mxu0 0.0
    %1808 = vmatpush1.msra.mxu0 0.0
    %1809 = vmatprep.subr.mxu0 0.0
    %1810 = vmatpush1.msra.mxu0 0.0
    %1811 = vmatprep.subr.mxu0 0.0
    %1812 = vmatpush1.msra.mxu0 0.0
    %1813 = vmatprep.subr.mxu0 0.0
    %1814 = vmatpush1.msra.mxu0 0.0
    %1815 = vmatprep.subr.mxu0 0.0
    %1816 = vmatpush1.msra.mxu0 0.0
    %1817 = vmatprep.subr.mxu0 0.0
    %1818 = vmatpush1.msra.mxu0 0.0
    %1819 = vmatprep.subr.mxu0 0.0
    %1820 = vmatpush1.msra.mxu0 0.0
    %1821 = vmatprep.subr.mxu0 0.0
    %1822 = vmatpush1.msra.mxu0 0.0
    %1823 = vmatprep.subr.mxu0 0.0
    %1824 = vmatpush1.msra.mxu0 0.0
    %1825 = vmatprep.subr.mxu0 0.0
    %1826 = vmatpush1.msra.mxu0 0.0
    %1827 = vmatprep.subr.mxu0 0.0
    %1828 = vmatpush1.msra.mxu0 0.0
    %1829 = vmatprep.subr.mxu0 0.0
    %1830 = vmatpush1.msra.mxu0 0.0
    %1831 = vmatprep.subr.mxu0 0.0
    %1832 = vmatpush1.msra.mxu0 0.0
    %1833 = vmatprep.subr.mxu0 0.0
    %1834 = vmatpush1.msra.mxu0 0.0
    %1835 = vmatprep.subr.mxu0 0.0
    %1836 = vmatpush1.msra.mxu0 0.0
    %1837 = vmatprep.subr.mxu0 0.0
    %1838 = vmatpush1.msra.mxu0 0.0
    %1839 = vmatprep.subr.mxu0 0.0
    %1840 = vmatpush1.msra.mxu0 0.0
    %1841 = vmatprep.subr.mxu0 0.0
    %1842 = vmatpush1.msra.mxu0 0.0
    %1843 = vmatprep.subr.mxu0 0.0
    %1844 = vmatpush1.msra.mxu0 0.0
    %1845 = vmatprep.mubr.f32.mxu0 0.0
    %1846 = vmatmul.mubr.f32.gmra.mrb[0].mxu0 %v1776
    %v1847 = vpop.f32.mrb[0].mxu0
    %v1848 = vadd.f32 %v1773, %v1847
    %v1849 = vpop.f32.mrb[0].mxu0
    %1850 = vmatprep.mubr.f32.mxu0 0.0
    %1851 = vmatmul.mubr.f32.gmra.mrb[0].mxu0 %v1779
    %v1852 = vpop.f32.mrb[0].mxu0
    %v1853 = vadd.f32 %v1773, %v1852
    %v1854 = vpop.f32.mrb[0].mxu0
    %1855 = vdwg.mxu0
    %s1856 = scalar_lea.vmem %s3, 256
    %v1857 = vld [vmem:[%s1856] sm:$0xff]
    %v1858 = vld [vmem:[%s1856 + $0x8] sm:$0xff]
    %v1859 = vld [vmem:[%s1856 + $0x10] sm:$0xff]
    %v1860 = vld [vmem:[%s1856 + $0x18] sm:$0xff]
    %s1861 = scalar_lea.vmem %s4, 8
    %v1862 = vld [vmem:[%s1861] sm:$0x1]
    %v1864 = vlaneseq
    %v1865 = vshrl.u32 %v1864, 7
    %v1866 = vsub.s32 0, %v1865
    %v1867 = vrot.slane %v1862, %v1866
    %1869 = vmatprep.subr.mxu0 0.0
    %1870 = vmatpush1.msra.mxu0 %v1857
    %1871 = vmatprep.subr.mxu0 0.0
    %1872 = vmatpush1.msra.mxu0 %v1858
    %1873 = vmatprep.subr.mxu0 0.0
    %1874 = vmatpush1.msra.mxu0 %v1859
    %1875 = vmatprep.subr.mxu0 0.0
    %1876 = vmatpush1.msra.mxu0 %v1860
    %1877 = vmatprep.subr.mxu0 0.0
    %1878 = vmatpush1.msra.mxu0 0.0
    %1879 = vmatprep.subr.mxu0 0.0
    %1880 = vmatpush1.msra.mxu0 0.0
    %1881 = vmatprep.subr.mxu0 0.0
    %1882 = vmatpush1.msra.mxu0 0.0
    %1883 = vmatprep.subr.mxu0 0.0
    %1884 = vmatpush1.msra.mxu0 0.0
    %1885 = vmatprep.subr.mxu0 0.0
    %1886 = vmatpush1.msra.mxu0 0.0
    %1887 = vmatprep.subr.mxu0 0.0
    %1888 = vmatpush1.msra.mxu0 0.0
    %1889 = vmatprep.subr.mxu0 0.0
    %1890 = vmatpush1.msra.mxu0 0.0
    %1891 = vmatprep.subr.mxu0 0.0
    %1892 = vmatpush1.msra.mxu0 0.0
    %1893 = vmatprep.subr.mxu0 0.0
    %1894 = vmatpush1.msra.mxu0 0.0
    %1895 = vmatprep.subr.mxu0 0.0
    %1896 = vmatpush1.msra.mxu0 0.0
    %1897 = vmatprep.subr.mxu0 0.0
    %1898 = vmatpush1.msra.mxu0 0.0
    %1899 = vmatprep.subr.mxu0 0.0
    %1900 = vmatpush1.msra.mxu0 0.0
    %1901 = vmatprep.subr.mxu0 0.0
    %1902 = vmatpush1.msra.mxu0 0.0
    %1903 = vmatprep.subr.mxu0 0.0
    %1904 = vmatpush1.msra.mxu0 0.0
    %1905 = vmatprep.subr.mxu0 0.0
    %1906 = vmatpush1.msra.mxu0 0.0
    %1907 = vmatprep.subr.mxu0 0.0
    %1908 = vmatpush1.msra.mxu0 0.0
    %1909 = vmatprep.subr.mxu0 0.0
    %1910 = vmatpush1.msra.mxu0 0.0
    %1911 = vmatprep.subr.mxu0 0.0
    %1912 = vmatpush1.msra.mxu0 0.0
    %1913 = vmatprep.subr.mxu0 0.0
    %1914 = vmatpush1.msra.mxu0 0.0
    %1915 = vmatprep.subr.mxu0 0.0
    %1916 = vmatpush1.msra.mxu0 0.0
    %1917 = vmatprep.subr.mxu0 0.0
    %1918 = vmatpush1.msra.mxu0 0.0
    %1919 = vmatprep.subr.mxu0 0.0
    %1920 = vmatpush1.msra.mxu0 0.0
    %1921 = vmatprep.subr.mxu0 0.0
    %1922 = vmatpush1.msra.mxu0 0.0
    %1923 = vmatprep.subr.mxu0 0.0
    %1924 = vmatpush1.msra.mxu0 0.0
    %1925 = vmatprep.subr.mxu0 0.0
    %1926 = vmatpush1.msra.mxu0 0.0
    %1927 = vmatprep.subr.mxu0 0.0
    %1928 = vmatpush1.msra.mxu0 0.0
    %1929 = vmatprep.subr.mxu0 0.0
    %1930 = vmatpush1.msra.mxu0 0.0
    %1931 = vmatprep.subr.mxu0 0.0
    %1932 = vmatpush1.msra.mxu0 0.0
    %1933 = vmatprep.mubr.f32.mxu0 0.0
    %1934 = vmatmul.mubr.f32.gmra.mrb[0].mxu0 %v1776
    %v1935 = vpop.f32.mrb[0].mxu0
    %v1936 = vadd.f32 %v1867, %v1935
    %v1937 = vpop.f32.mrb[0].mxu0
    %1938 = vmatprep.mubr.f32.mxu0 0.0
    %1939 = vmatmul.mubr.f32.gmra.mrb[0].mxu0 %v1779
    %v1940 = vpop.f32.mrb[0].mxu0
    %v1941 = vadd.f32 %v1867, %v1940
    %v1942 = vpop.f32.mrb[0].mxu0
    %1943 = vdwg.mxu0
    %s1944 = scalar_lea.vmem %s3, 320
    %v1945 = vld [vmem:[%s1944] sm:$0xff]
    %v1946 = vld [vmem:[%s1944 + $0x8] sm:$0xff]
    %v1947 = vld [vmem:[%s1944 + $0x10] sm:$0xff]
    %v1948 = vld [vmem:[%s1944 + $0x18] sm:$0xff]
    %s1949 = scalar_lea.vmem %s4, 10
    %v1950 = vld [vmem:[%s1949] sm:$0x1]
    %v1952 = vlaneseq
    %v1953 = vshrl.u32 %v1952, 7
    %v1954 = vsub.s32 0, %v1953
    %v1955 = vrot.slane %v1950, %v1954
    %1957 = vmatprep.subr.mxu0 0.0
    %1958 = vmatpush1.msra.mxu0 %v1945
    %1959 = vmatprep.subr.mxu0 0.0
    %1960 = vmatpush1.msra.mxu0 %v1946
    %1961 = vmatprep.subr.mxu0 0.0
    %1962 = vmatpush1.msra.mxu0 %v1947
    %1963 = vmatprep.subr.mxu0 0.0
    %1964 = vmatpush1.msra.mxu0 %v1948
    %1965 = vmatprep.subr.mxu0 0.0
    %1966 = vmatpush1.msra.mxu0 0.0
    %1967 = vmatprep.subr.mxu0 0.0
    %1968 = vmatpush1.msra.mxu0 0.0
    %1969 = vmatprep.subr.mxu0 0.0
    %1970 = vmatpush1.msra.mxu0 0.0
    %1971 = vmatprep.subr.mxu0 0.0
    %1972 = vmatpush1.msra.mxu0 0.0
    %1973 = vmatprep.subr.mxu0 0.0
    %1974 = vmatpush1.msra.mxu0 0.0
    %1975 = vmatprep.subr.mxu0 0.0
    %1976 = vmatpush1.msra.mxu0 0.0
    %1977 = vmatprep.subr.mxu0 0.0
    %1978 = vmatpush1.msra.mxu0 0.0
    %1979 = vmatprep.subr.mxu0 0.0
    %1980 = vmatpush1.msra.mxu0 0.0
    %1981 = vmatprep.subr.mxu0 0.0
    %1982 = vmatpush1.msra.mxu0 0.0
    %1983 = vmatprep.subr.mxu0 0.0
    %1984 = vmatpush1.msra.mxu0 0.0
    %1985 = vmatprep.subr.mxu0 0.0
    %1986 = vmatpush1.msra.mxu0 0.0
    %1987 = vmatprep.subr.mxu0 0.0
    %1988 = vmatpush1.msra.mxu0 0.0
    %1989 = vmatprep.subr.mxu0 0.0
    %1990 = vmatpush1.msra.mxu0 0.0
    %1991 = vmatprep.subr.mxu0 0.0
    %1992 = vmatpush1.msra.mxu0 0.0
    %1993 = vmatprep.subr.mxu0 0.0
    %1994 = vmatpush1.msra.mxu0 0.0
    %1995 = vmatprep.subr.mxu0 0.0
    %1996 = vmatpush1.msra.mxu0 0.0
    %1997 = vmatprep.subr.mxu0 0.0
    %1998 = vmatpush1.msra.mxu0 0.0
    %1999 = vmatprep.subr.mxu0 0.0
    %2000 = vmatpush1.msra.mxu0 0.0
    %2001 = vmatprep.subr.mxu0 0.0
    %2002 = vmatpush1.msra.mxu0 0.0
    %2003 = vmatprep.subr.mxu0 0.0
    %2004 = vmatpush1.msra.mxu0 0.0
    %2005 = vmatprep.subr.mxu0 0.0
    %2006 = vmatpush1.msra.mxu0 0.0
    %2007 = vmatprep.subr.mxu0 0.0
    %2008 = vmatpush1.msra.mxu0 0.0
    %2009 = vmatprep.subr.mxu0 0.0
    %2010 = vmatpush1.msra.mxu0 0.0
    %2011 = vmatprep.subr.mxu0 0.0
    %2012 = vmatpush1.msra.mxu0 0.0
    %2013 = vmatprep.subr.mxu0 0.0
    %2014 = vmatpush1.msra.mxu0 0.0
    %2015 = vmatprep.subr.mxu0 0.0
    %2016 = vmatpush1.msra.mxu0 0.0
    %2017 = vmatprep.subr.mxu0 0.0
    %2018 = vmatpush1.msra.mxu0 0.0
    %2019 = vmatprep.subr.mxu0 0.0
    %2020 = vmatpush1.msra.mxu0 0.0
    %2021 = vmatprep.mubr.f32.mxu0 0.0
    %2022 = vmatmul.mubr.f32.gmra.mrb[0].mxu0 %v1776
    %v2023 = vpop.f32.mrb[0].mxu0
    %v2024 = vadd.f32 %v1955, %v2023
    %v2025 = vpop.f32.mrb[0].mxu0
    %2026 = vmatprep.mubr.f32.mxu0 0.0
    %2027 = vmatmul.mubr.f32.gmra.mrb[0].mxu0 %v1779
    %v2028 = vpop.f32.mrb[0].mxu0
    %v2029 = vadd.f32 %v1955, %v2028
    %v2030 = vpop.f32.mrb[0].mxu0
    %2031 = vdwg.mxu0
    %v2033 = vsel %vm400, %v1848, 0
    %v2036 = vsel %vm400, %v1936, 0
    %2038 = vmatprep.subr.mxu0 0.0
    %2039 = vmatpush1.xpose.msra.mxu0 %v2036
    %2040 = vmatprep.subr.mxu0 0.0
    %2041 = vmatpush1.xpose.msra.mxu0 0.0
    %2042 = vmatprep.subr.mxu0 0.0
    %2043 = vmatpush1.xpose.msra.mxu0 0.0
    %2044 = vmatprep.subr.mxu0 0.0
    %2045 = vmatpush1.xpose.msra.mxu0 0.0
    %2046 = vmatprep.subr.mxu0 0.0
    %2047 = vmatpush1.xpose.msra.mxu0 0.0
    %2048 = vmatprep.subr.mxu0 0.0
    %2049 = vmatpush1.xpose.msra.mxu0 0.0
    %2050 = vmatprep.subr.mxu0 0.0
    %2051 = vmatpush1.xpose.msra.mxu0 0.0
    %2052 = vmatprep.subr.mxu0 0.0
    %2053 = vmatpush1.xpose.msra.mxu0 0.0
    %2054 = vmatprep.subr.mxu0 0.0
    %2055 = vmatpush1.xpose.msra.mxu0 0.0
    %2056 = vmatprep.subr.mxu0 0.0
    %2057 = vmatpush1.xpose.msra.mxu0 0.0
    %2058 = vmatprep.subr.mxu0 0.0
    %2059 = vmatpush1.xpose.msra.mxu0 0.0
    %2060 = vmatprep.subr.mxu0 0.0
    %2061 = vmatpush1.xpose.msra.mxu0 0.0
    %2062 = vmatprep.subr.mxu0 0.0
    %2063 = vmatpush1.xpose.msra.mxu0 0.0
    %2064 = vmatprep.subr.mxu0 0.0
    %2065 = vmatpush1.xpose.msra.mxu0 0.0
    %2066 = vmatprep.subr.mxu0 0.0
    %2067 = vmatpush1.xpose.msra.mxu0 0.0
    %2068 = vmatprep.subr.mxu0 0.0
    %2069 = vmatpush1.xpose.msra.mxu0 0.0
    %2070 = vmatprep.subr.mxu0 0.0
    %2071 = vmatpush1.xpose.msra.mxu0 0.0
    %2072 = vmatprep.subr.mxu0 0.0
    %2073 = vmatpush1.xpose.msra.mxu0 0.0
    %2074 = vmatprep.subr.mxu0 0.0
    %2075 = vmatpush1.xpose.msra.mxu0 0.0
    %2076 = vmatprep.subr.mxu0 0.0
    %2077 = vmatpush1.xpose.msra.mxu0 0.0
    %2078 = vmatprep.subr.mxu0 0.0
    %2079 = vmatpush1.xpose.msra.mxu0 0.0
    %2080 = vmatprep.subr.mxu0 0.0
    %2081 = vmatpush1.xpose.msra.mxu0 0.0
    %2082 = vmatprep.subr.mxu0 0.0
    %2083 = vmatpush1.xpose.msra.mxu0 0.0
    %2084 = vmatprep.subr.mxu0 0.0
    %2085 = vmatpush1.xpose.msra.mxu0 0.0
    %2086 = vmatprep.subr.mxu0 0.0
    %2087 = vmatpush1.xpose.msra.mxu0 0.0
    %2088 = vmatprep.subr.mxu0 0.0
    %2089 = vmatpush1.xpose.msra.mxu0 0.0
    %2090 = vmatprep.subr.mxu0 0.0
    %2091 = vmatpush1.xpose.msra.mxu0 0.0
    %2092 = vmatprep.subr.mxu0 0.0
    %2093 = vmatpush1.xpose.msra.mxu0 0.0
    %2094 = vmatprep.subr.mxu0 0.0
    %2095 = vmatpush1.xpose.msra.mxu0 0.0
    %2096 = vmatprep.subr.mxu0 0.0
    %2097 = vmatpush1.xpose.msra.mxu0 0.0
    %2098 = vmatprep.subr.mxu0 0.0
    %2099 = vmatpush1.xpose.msra.mxu0 0.0
    %2100 = vmatprep.subr.mxu0 0.0
    %2101 = vmatpush1.xpose.msra.mxu0 0.0
    %2102 = vmatprep.mubr.f32.mxu0 0.0
    %2103 = vmatmul.mubr.f32.gmra.mrb[0].mxu0 %v2033
    %v2104 = vpop.f32.mrb[0].mxu0
    %v2105 = vadd.f32 %v124, %v2104
    %v2106 = vpop.f32.mrb[0].mxu0
    %2107 = vdwg.mxu0
    %v2109 = vsel %vm400, %v1853, 0
    %v2112 = vsel %vm400, %v1941, 0
    %2114 = vmatprep.subr.mxu0 0.0
    %2115 = vmatpush1.xpose.msra.mxu0 %v2112
    %2116 = vmatprep.subr.mxu0 0.0
    %2117 = vmatpush1.xpose.msra.mxu0 0.0
    %2118 = vmatprep.subr.mxu0 0.0
    %2119 = vmatpush1.xpose.msra.mxu0 0.0
    %2120 = vmatprep.subr.mxu0 0.0
    %2121 = vmatpush1.xpose.msra.mxu0 0.0
    %2122 = vmatprep.subr.mxu0 0.0
    %2123 = vmatpush1.xpose.msra.mxu0 0.0
    %2124 = vmatprep.subr.mxu0 0.0
    %2125 = vmatpush1.xpose.msra.mxu0 0.0
    %2126 = vmatprep.subr.mxu0 0.0
    %2127 = vmatpush1.xpose.msra.mxu0 0.0
    %2128 = vmatprep.subr.mxu0 0.0
    %2129 = vmatpush1.xpose.msra.mxu0 0.0
    %2130 = vmatprep.subr.mxu0 0.0
    %2131 = vmatpush1.xpose.msra.mxu0 0.0
    %2132 = vmatprep.subr.mxu0 0.0
    %2133 = vmatpush1.xpose.msra.mxu0 0.0
    %2134 = vmatprep.subr.mxu0 0.0
    %2135 = vmatpush1.xpose.msra.mxu0 0.0
    %2136 = vmatprep.subr.mxu0 0.0
    %2137 = vmatpush1.xpose.msra.mxu0 0.0
    %2138 = vmatprep.subr.mxu0 0.0
    %2139 = vmatpush1.xpose.msra.mxu0 0.0
    %2140 = vmatprep.subr.mxu0 0.0
    %2141 = vmatpush1.xpose.msra.mxu0 0.0
    %2142 = vmatprep.subr.mxu0 0.0
    %2143 = vmatpush1.xpose.msra.mxu0 0.0
    %2144 = vmatprep.subr.mxu0 0.0
    %2145 = vmatpush1.xpose.msra.mxu0 0.0
    %2146 = vmatprep.subr.mxu0 0.0
    %2147 = vmatpush1.xpose.msra.mxu0 0.0
    %2148 = vmatprep.subr.mxu0 0.0
    %2149 = vmatpush1.xpose.msra.mxu0 0.0
    %2150 = vmatprep.subr.mxu0 0.0
    %2151 = vmatpush1.xpose.msra.mxu0 0.0
    %2152 = vmatprep.subr.mxu0 0.0
    %2153 = vmatpush1.xpose.msra.mxu0 0.0
    %2154 = vmatprep.subr.mxu0 0.0
    %2155 = vmatpush1.xpose.msra.mxu0 0.0
    %2156 = vmatprep.subr.mxu0 0.0
    %2157 = vmatpush1.xpose.msra.mxu0 0.0
    %2158 = vmatprep.subr.mxu0 0.0
    %2159 = vmatpush1.xpose.msra.mxu0 0.0
    %2160 = vmatprep.subr.mxu0 0.0
    %2161 = vmatpush1.xpose.msra.mxu0 0.0
    %2162 = vmatprep.subr.mxu0 0.0
    %2163 = vmatpush1.xpose.msra.mxu0 0.0
    %2164 = vmatprep.subr.mxu0 0.0
    %2165 = vmatpush1.xpose.msra.mxu0 0.0
    %2166 = vmatprep.subr.mxu0 0.0
    %2167 = vmatpush1.xpose.msra.mxu0 0.0
    %2168 = vmatprep.subr.mxu0 0.0
    %2169 = vmatpush1.xpose.msra.mxu0 0.0
    %2170 = vmatprep.subr.mxu0 0.0
    %2171 = vmatpush1.xpose.msra.mxu0 0.0
    %2172 = vmatprep.subr.mxu0 0.0
    %2173 = vmatpush1.xpose.msra.mxu0 0.0
    %2174 = vmatprep.subr.mxu0 0.0
    %2175 = vmatpush1.xpose.msra.mxu0 0.0
    %2176 = vmatprep.subr.mxu0 0.0
    %2177 = vmatpush1.xpose.msra.mxu0 0.0
    %2178 = vmatprep.mubr.f32.mxu0 0.0
    %2179 = vmatmul.mubr.f32.gmra.mrb[0].mxu0 %v2109
    %v2180 = vpop.f32.mrb[0].mxu0
    %v2181 = vadd.f32 %v128, %v2180
    %v2182 = vpop.f32.mrb[0].mxu0
    %2183 = vdwg.mxu0
    %v2184 = vsel %vm553, %v2105, -inf
    %2185 = vmax.xlane.f32.xlu0 %v2184
    %v2186 = vpop.xlane.xlu0 %2185
    %v2187 = vsel %vm553, %v2181, -inf
    %2188 = vmax.xlane.f32.xlu0 %v2187
    %v2189 = vpop.xlane.xlu0 %2188
    %v2190 = vsub.f32 %v2105, %v2186
    %v2191 = vsub.f32 %v2181, %v2189
    %v2192 = vmul.f32 %v2190, 1.442695
    %v2193 = vpow.pop %v2192
    %v2194 = vmul.f32 %v2191, 1.442695
    %v2195 = vpow.pop %v2194
    %v2196 = vsel %vm553, %v2193, 0.0
    %2197 = vadd.xlane.f32.xlu0 %v2196
    %v2198 = vpop.xlane.xlu0 %2197
    %v2199 = vsel %vm553, %v2195, 0.0
    %2200 = vadd.xlane.f32.xlu0 %v2199
    %v2201 = vpop.xlane.xlu0 %2200
    %v2202 = vrcp.pop %v2198
    %v2203 = vrcp.pop %v2201
    %v2204 = vmul.f32 %v2193, %v2202
    %v2205 = vmul.f32 %v2195, %v2203
    %v2207 = vsel %vm553, %v2204, 0
    %2209 = vmatprep.subr.mxu0 0.0
    %2210 = vmatpush1.msra.mxu0 %v2024
    %2211 = vmatprep.subr.mxu0 0.0
    %2212 = vmatpush1.msra.mxu0 0.0
    %2213 = vmatprep.subr.mxu0 0.0
    %2214 = vmatpush1.msra.mxu0 0.0
    %2215 = vmatprep.subr.mxu0 0.0
    %2216 = vmatpush1.msra.mxu0 0.0
    %2217 = vmatprep.subr.mxu0 0.0
    %2218 = vmatpush1.msra.mxu0 0.0
    %2219 = vmatprep.subr.mxu0 0.0
    %2220 = vmatpush1.msra.mxu0 0.0
    %2221 = vmatprep.subr.mxu0 0.0
    %2222 = vmatpush1.msra.mxu0 0.0
    %2223 = vmatprep.subr.mxu0 0.0
    %2224 = vmatpush1.msra.mxu0 0.0
    %2225 = vmatprep.subr.mxu0 0.0
    %2226 = vmatpush1.msra.mxu0 0.0
    %2227 = vmatprep.subr.mxu0 0.0
    %2228 = vmatpush1.msra.mxu0 0.0
    %2229 = vmatprep.subr.mxu0 0.0
    %2230 = vmatpush1.msra.mxu0 0.0
    %2231 = vmatprep.subr.mxu0 0.0
    %2232 = vmatpush1.msra.mxu0 0.0
    %2233 = vmatprep.subr.mxu0 0.0
    %2234 = vmatpush1.msra.mxu0 0.0
    %2235 = vmatprep.subr.mxu0 0.0
    %2236 = vmatpush1.msra.mxu0 0.0
    %2237 = vmatprep.subr.mxu0 0.0
    %2238 = vmatpush1.msra.mxu0 0.0
    %2239 = vmatprep.subr.mxu0 0.0
    %2240 = vmatpush1.msra.mxu0 0.0
    %2241 = vmatprep.subr.mxu0 0.0
    %2242 = vmatpush1.msra.mxu0 0.0
    %2243 = vmatprep.subr.mxu0 0.0
    %2244 = vmatpush1.msra.mxu0 0.0
    %2245 = vmatprep.subr.mxu0 0.0
    %2246 = vmatpush1.msra.mxu0 0.0
    %2247 = vmatprep.subr.mxu0 0.0
    %2248 = vmatpush1.msra.mxu0 0.0
    %2249 = vmatprep.subr.mxu0 0.0
    %2250 = vmatpush1.msra.mxu0 0.0
    %2251 = vmatprep.subr.mxu0 0.0
    %2252 = vmatpush1.msra.mxu0 0.0
    %2253 = vmatprep.subr.mxu0 0.0
    %2254 = vmatpush1.msra.mxu0 0.0
    %2255 = vmatprep.subr.mxu0 0.0
    %2256 = vmatpush1.msra.mxu0 0.0
    %2257 = vmatprep.subr.mxu0 0.0
    %2258 = vmatpush1.msra.mxu0 0.0
    %2259 = vmatprep.subr.mxu0 0.0
    %2260 = vmatpush1.msra.mxu0 0.0
    %2261 = vmatprep.subr.mxu0 0.0
    %2262 = vmatpush1.msra.mxu0 0.0
    %2263 = vmatprep.subr.mxu0 0.0
    %2264 = vmatpush1.msra.mxu0 0.0
    %2265 = vmatprep.subr.mxu0 0.0
    %2266 = vmatpush1.msra.mxu0 0.0
    %2267 = vmatprep.subr.mxu0 0.0
    %2268 = vmatpush1.msra.mxu0 0.0
    %2269 = vmatprep.subr.mxu0 0.0
    %2270 = vmatpush1.msra.mxu0 0.0
    %2271 = vmatprep.subr.mxu0 0.0
    %2272 = vmatpush1.msra.mxu0 0.0
    %2273 = vmatprep.mubr.f32.mxu0 0.0
    %2274 = vmatmul.mubr.f32.gmra.mrb[0].mxu0 %v2207
    %v2275 = vpop.f32.mrb[0].mxu0
    %v2276 = vadd.f32 0.0, %v2275
    %v2277 = vpop.f32.mrb[0].mxu0
    %2278 = vdwg.mxu0
    %v2280 = vsel %vm553, %v2205, 0
    %2282 = vmatprep.subr.mxu0 0.0
    %2283 = vmatpush1.msra.mxu0 %v2029
    %2284 = vmatprep.subr.mxu0 0.0
    %2285 = vmatpush1.msra.mxu0 0.0
    %2286 = vmatprep.subr.mxu0 0.0
    %2287 = vmatpush1.msra.mxu0 0.0
    %2288 = vmatprep.subr.mxu0 0.0
    %2289 = vmatpush1.msra.mxu0 0.0
    %2290 = vmatprep.subr.mxu0 0.0
    %2291 = vmatpush1.msra.mxu0 0.0
    %2292 = vmatprep.subr.mxu0 0.0
    %2293 = vmatpush1.msra.mxu0 0.0
    %2294 = vmatprep.subr.mxu0 0.0
    %2295 = vmatpush1.msra.mxu0 0.0
    %2296 = vmatprep.subr.mxu0 0.0
    %2297 = vmatpush1.msra.mxu0 0.0
    %2298 = vmatprep.subr.mxu0 0.0
    %2299 = vmatpush1.msra.mxu0 0.0
    %2300 = vmatprep.subr.mxu0 0.0
    %2301 = vmatpush1.msra.mxu0 0.0
    %2302 = vmatprep.subr.mxu0 0.0
    %2303 = vmatpush1.msra.mxu0 0.0
    %2304 = vmatprep.subr.mxu0 0.0
    %2305 = vmatpush1.msra.mxu0 0.0
    %2306 = vmatprep.subr.mxu0 0.0
    %2307 = vmatpush1.msra.mxu0 0.0
    %2308 = vmatprep.subr.mxu0 0.0
    %2309 = vmatpush1.msra.mxu0 0.0
    %2310 = vmatprep.subr.mxu0 0.0
    %2311 = vmatpush1.msra.mxu0 0.0
    %2312 = vmatprep.subr.mxu0 0.0
    %2313 = vmatpush1.msra.mxu0 0.0
    %2314 = vmatprep.subr.mxu0 0.0
    %2315 = vmatpush1.msra.mxu0 0.0
    %2316 = vmatprep.subr.mxu0 0.0
    %2317 = vmatpush1.msra.mxu0 0.0
    %2318 = vmatprep.subr.mxu0 0.0
    %2319 = vmatpush1.msra.mxu0 0.0
    %2320 = vmatprep.subr.mxu0 0.0
    %2321 = vmatpush1.msra.mxu0 0.0
    %2322 = vmatprep.subr.mxu0 0.0
    %2323 = vmatpush1.msra.mxu0 0.0
    %2324 = vmatprep.subr.mxu0 0.0
    %2325 = vmatpush1.msra.mxu0 0.0
    %2326 = vmatprep.subr.mxu0 0.0
    %2327 = vmatpush1.msra.mxu0 0.0
    %2328 = vmatprep.subr.mxu0 0.0
    %2329 = vmatpush1.msra.mxu0 0.0
    %2330 = vmatprep.subr.mxu0 0.0
    %2331 = vmatpush1.msra.mxu0 0.0
    %2332 = vmatprep.subr.mxu0 0.0
    %2333 = vmatpush1.msra.mxu0 0.0
    %2334 = vmatprep.subr.mxu0 0.0
    %2335 = vmatpush1.msra.mxu0 0.0
    %2336 = vmatprep.subr.mxu0 0.0
    %2337 = vmatpush1.msra.mxu0 0.0
    %2338 = vmatprep.subr.mxu0 0.0
    %2339 = vmatpush1.msra.mxu0 0.0
    %2340 = vmatprep.subr.mxu0 0.0
    %2341 = vmatpush1.msra.mxu0 0.0
    %2342 = vmatprep.subr.mxu0 0.0
    %2343 = vmatpush1.msra.mxu0 0.0
    %2344 = vmatprep.subr.mxu0 0.0
    %2345 = vmatpush1.msra.mxu0 0.0
    %2346 = vmatprep.mubr.f32.mxu0 0.0
    %2347 = vmatmul.mubr.f32.gmra.mrb[0].mxu0 %v2280
    %v2348 = vpop.f32.mrb[0].mxu0
    %v2349 = vadd.f32 0.0, %v2348
    %v2350 = vpop.f32.mrb[0].mxu0
    %2351 = vdwg.mxu0
    %s2352 = scalar_lea.vmem %s5, 32
    %v2353 = vld [vmem:[%s2352] sm:$0xff]
    %v2354 = vld [vmem:[%s2352 + $0x8] sm:$0xff]
    %s2355 = scalar_lea.vmem %s3, 224
    %v2356 = vld [vmem:[%s2355] sm:$0xff]
    %v2357 = vld [vmem:[%s2355 + $0x8] sm:$0xff]
    %v2358 = vld [vmem:[%s2355 + $0x10] sm:$0xff]
    %v2359 = vld [vmem:[%s2355 + $0x18] sm:$0xff]
    %s2360 = scalar_lea.vmem %s4, 7
    %v2361 = vld [vmem:[%s2360] sm:$0x1]
    %v2363 = vlaneseq
    %v2364 = vshrl.u32 %v2363, 7
    %v2365 = vsub.s32 0, %v2364
    %v2366 = vrot.slane %v2361, %v2365
    %2368 = vmatprep.subr.mxu0 0.0
    %2369 = vmatpush1.msra.mxu0 %v2356
    %2370 = vmatprep.subr.mxu0 0.0
    %2371 = vmatpush1.msra.mxu0 %v2357
    %2372 = vmatprep.subr.mxu0 0.0
    %2373 = vmatpush1.msra.mxu0 %v2358
    %2374 = vmatprep.subr.mxu0 0.0
    %2375 = vmatpush1.msra.mxu0 %v2359
    %2376 = vmatprep.subr.mxu0 0.0
    %2377 = vmatpush1.msra.mxu0 0.0
    %2378 = vmatprep.subr.mxu0 0.0
    %2379 = vmatpush1.msra.mxu0 0.0
    %2380 = vmatprep.subr.mxu0 0.0
    %2381 = vmatpush1.msra.mxu0 0.0
    %2382 = vmatprep.subr.mxu0 0.0
    %2383 = vmatpush1.msra.mxu0 0.0
    %2384 = vmatprep.subr.mxu0 0.0
    %2385 = vmatpush1.msra.mxu0 0.0
    %2386 = vmatprep.subr.mxu0 0.0
    %2387 = vmatpush1.msra.mxu0 0.0
    %2388 = vmatprep.subr.mxu0 0.0
    %2389 = vmatpush1.msra.mxu0 0.0
    %2390 = vmatprep.subr.mxu0 0.0
    %2391 = vmatpush1.msra.mxu0 0.0
    %2392 = vmatprep.subr.mxu0 0.0
    %2393 = vmatpush1.msra.mxu0 0.0
    %2394 = vmatprep.subr.mxu0 0.0
    %2395 = vmatpush1.msra.mxu0 0.0
    %2396 = vmatprep.subr.mxu0 0.0
    %2397 = vmatpush1.msra.mxu0 0.0
    %2398 = vmatprep.subr.mxu0 0.0
    %2399 = vmatpush1.msra.mxu0 0.0
    %2400 = vmatprep.subr.mxu0 0.0
    %2401 = vmatpush1.msra.mxu0 0.0
    %2402 = vmatprep.subr.mxu0 0.0
    %2403 = vmatpush1.msra.mxu0 0.0
    %2404 = vmatprep.subr.mxu0 0.0
    %2405 = vmatpush1.msra.mxu0 0.0
    %2406 = vmatprep.subr.mxu0 0.0
    %2407 = vmatpush1.msra.mxu0 0.0
    %2408 = vmatprep.subr.mxu0 0.0
    %2409 = vmatpush1.msra.mxu0 0.0
    %2410 = vmatprep.subr.mxu0 0.0
    %2411 = vmatpush1.msra.mxu0 0.0
    %2412 = vmatprep.subr.mxu0 0.0
    %2413 = vmatpush1.msra.mxu0 0.0
    %2414 = vmatprep.subr.mxu0 0.0
    %2415 = vmatpush1.msra.mxu0 0.0
    %2416 = vmatprep.subr.mxu0 0.0
    %2417 = vmatpush1.msra.mxu0 0.0
    %2418 = vmatprep.subr.mxu0 0.0
    %2419 = vmatpush1.msra.mxu0 0.0
    %2420 = vmatprep.subr.mxu0 0.0
    %2421 = vmatpush1.msra.mxu0 0.0
    %2422 = vmatprep.subr.mxu0 0.0
    %2423 = vmatpush1.msra.mxu0 0.0
    %2424 = vmatprep.subr.mxu0 0.0
    %2425 = vmatpush1.msra.mxu0 0.0
    %2426 = vmatprep.subr.mxu0 0.0
    %2427 = vmatpush1.msra.mxu0 0.0
    %2428 = vmatprep.subr.mxu0 0.0
    %2429 = vmatpush1.msra.mxu0 0.0
    %2430 = vmatprep.subr.mxu0 0.0
    %2431 = vmatpush1.msra.mxu0 0.0
    %2432 = vmatprep.mubr.f32.mxu0 0.0
    %2433 = vmatmul.mubr.f32.gmra.mrb[0].mxu0 %v1776
    %v2434 = vpop.f32.mrb[0].mxu0
    %v2435 = vadd.f32 %v2366, %v2434
    %v2436 = vpop.f32.mrb[0].mxu0
    %2437 = vmatprep.mubr.f32.mxu0 0.0
    %2438 = vmatmul.mubr.f32.gmra.mrb[0].mxu0 %v1779
    %v2439 = vpop.f32.mrb[0].mxu0
    %v2440 = vadd.f32 %v2366, %v2439
    %v2441 = vpop.f32.mrb[0].mxu0
    %2442 = vdwg.mxu0
    %s2443 = scalar_lea.vmem %s3, 288
    %v2444 = vld [vmem:[%s2443] sm:$0xff]
    %v2445 = vld [vmem:[%s2443 + $0x8] sm:$0xff]
    %v2446 = vld [vmem:[%s2443 + $0x10] sm:$0xff]
    %v2447 = vld [vmem:[%s2443 + $0x18] sm:$0xff]
    %s2448 = scalar_lea.vmem %s4, 9
    %v2449 = vld [vmem:[%s2448] sm:$0x1]
    %v2451 = vlaneseq
    %v2452 = vshrl.u32 %v2451, 7
    %v2453 = vsub.s32 0, %v2452
    %v2454 = vrot.slane %v2449, %v2453
    %2456 = vmatprep.subr.mxu0 0.0
    %2457 = vmatpush1.msra.mxu0 %v2444
    %2458 = vmatprep.subr.mxu0 0.0
    %2459 = vmatpush1.msra.mxu0 %v2445
    %2460 = vmatprep.subr.mxu0 0.0
    %2461 = vmatpush1.msra.mxu0 %v2446
    %2462 = vmatprep.subr.mxu0 0.0
    %2463 = vmatpush1.msra.mxu0 %v2447
    %2464 = vmatprep.subr.mxu0 0.0
    %2465 = vmatpush1.msra.mxu0 0.0
    %2466 = vmatprep.subr.mxu0 0.0
    %2467 = vmatpush1.msra.mxu0 0.0
    %2468 = vmatprep.subr.mxu0 0.0
    %2469 = vmatpush1.msra.mxu0 0.0
    %2470 = vmatprep.subr.mxu0 0.0
    %2471 = vmatpush1.msra.mxu0 0.0
    %2472 = vmatprep.subr.mxu0 0.0
    %2473 = vmatpush1.msra.mxu0 0.0
    %2474 = vmatprep.subr.mxu0 0.0
    %2475 = vmatpush1.msra.mxu0 0.0
    %2476 = vmatprep.subr.mxu0 0.0
    %2477 = vmatpush1.msra.mxu0 0.0
    %2478 = vmatprep.subr.mxu0 0.0
    %2479 = vmatpush1.msra.mxu0 0.0
    %2480 = vmatprep.subr.mxu0 0.0
    %2481 = vmatpush1.msra.mxu0 0.0
    %2482 = vmatprep.subr.mxu0 0.0
    %2483 = vmatpush1.msra.mxu0 0.0
    %2484 = vmatprep.subr.mxu0 0.0
    %2485 = vmatpush1.msra.mxu0 0.0
    %2486 = vmatprep.subr.mxu0 0.0
    %2487 = vmatpush1.msra.mxu0 0.0
    %2488 = vmatprep.subr.mxu0 0.0
    %2489 = vmatpush1.msra.mxu0 0.0
    %2490 = vmatprep.subr.mxu0 0.0
    %2491 = vmatpush1.msra.mxu0 0.0
    %2492 = vmatprep.subr.mxu0 0.0
    %2493 = vmatpush1.msra.mxu0 0.0
    %2494 = vmatprep.subr.mxu0 0.0
    %2495 = vmatpush1.msra.mxu0 0.0
    %2496 = vmatprep.subr.mxu0 0.0
    %2497 = vmatpush1.msra.mxu0 0.0
    %2498 = vmatprep.subr.mxu0 0.0
    %2499 = vmatpush1.msra.mxu0 0.0
    %2500 = vmatprep.subr.mxu0 0.0
    %2501 = vmatpush1.msra.mxu0 0.0
    %2502 = vmatprep.subr.mxu0 0.0
    %2503 = vmatpush1.msra.mxu0 0.0
    %2504 = vmatprep.subr.mxu0 0.0
    %2505 = vmatpush1.msra.mxu0 0.0
    %2506 = vmatprep.subr.mxu0 0.0
    %2507 = vmatpush1.msra.mxu0 0.0
    %2508 = vmatprep.subr.mxu0 0.0
    %2509 = vmatpush1.msra.mxu0 0.0
    %2510 = vmatprep.subr.mxu0 0.0
    %2511 = vmatpush1.msra.mxu0 0.0
    %2512 = vmatprep.subr.mxu0 0.0
    %2513 = vmatpush1.msra.mxu0 0.0
    %2514 = vmatprep.subr.mxu0 0.0
    %2515 = vmatpush1.msra.mxu0 0.0
    %2516 = vmatprep.subr.mxu0 0.0
    %2517 = vmatpush1.msra.mxu0 0.0
    %2518 = vmatprep.subr.mxu0 0.0
    %2519 = vmatpush1.msra.mxu0 0.0
    %2520 = vmatprep.mubr.f32.mxu0 0.0
    %2521 = vmatmul.mubr.f32.gmra.mrb[0].mxu0 %v1776
    %v2522 = vpop.f32.mrb[0].mxu0
    %v2523 = vadd.f32 %v2454, %v2522
    %v2524 = vpop.f32.mrb[0].mxu0
    %2525 = vmatprep.mubr.f32.mxu0 0.0
    %2526 = vmatmul.mubr.f32.gmra.mrb[0].mxu0 %v1779
    %v2527 = vpop.f32.mrb[0].mxu0
    %v2528 = vadd.f32 %v2454, %v2527
    %v2529 = vpop.f32.mrb[0].mxu0
    %2530 = vdwg.mxu0
    %s2531 = scalar_lea.vmem %s3, 352
    %v2532 = vld [vmem:[%s2531] sm:$0xff]
    %v2533 = vld [vmem:[%s2531 + $0x8] sm:$0xff]
    %v2534 = vld [vmem:[%s2531 + $0x10] sm:$0xff]
    %v2535 = vld [vmem:[%s2531 + $0x18] sm:$0xff]
    %s2536 = scalar_lea.vmem %s4, 11
    %v2537 = vld [vmem:[%s2536] sm:$0x1]
    %v2539 = vlaneseq
    %v2540 = vshrl.u32 %v2539, 7
    %v2541 = vsub.s32 0, %v2540
    %v2542 = vrot.slane %v2537, %v2541
    %2544 = vmatprep.subr.mxu0 0.0
    %2545 = vmatpush1.msra.mxu0 %v2532
    %2546 = vmatprep.subr.mxu0 0.0
    %2547 = vmatpush1.msra.mxu0 %v2533
    %2548 = vmatprep.subr.mxu0 0.0
    %2549 = vmatpush1.msra.mxu0 %v2534
    %2550 = vmatprep.subr.mxu0 0.0
    %2551 = vmatpush1.msra.mxu0 %v2535
    %2552 = vmatprep.subr.mxu0 0.0
    %2553 = vmatpush1.msra.mxu0 0.0
    %2554 = vmatprep.subr.mxu0 0.0
    %2555 = vmatpush1.msra.mxu0 0.0
    %2556 = vmatprep.subr.mxu0 0.0
    %2557 = vmatpush1.msra.mxu0 0.0
    %2558 = vmatprep.subr.mxu0 0.0
    %2559 = vmatpush1.msra.mxu0 0.0
    %2560 = vmatprep.subr.mxu0 0.0
    %2561 = vmatpush1.msra.mxu0 0.0
    %2562 = vmatprep.subr.mxu0 0.0
    %2563 = vmatpush1.msra.mxu0 0.0
    %2564 = vmatprep.subr.mxu0 0.0
    %2565 = vmatpush1.msra.mxu0 0.0
    %2566 = vmatprep.subr.mxu0 0.0
    %2567 = vmatpush1.msra.mxu0 0.0
    %2568 = vmatprep.subr.mxu0 0.0
    %2569 = vmatpush1.msra.mxu0 0.0
    %2570 = vmatprep.subr.mxu0 0.0
    %2571 = vmatpush1.msra.mxu0 0.0
    %2572 = vmatprep.subr.mxu0 0.0
    %2573 = vmatpush1.msra.mxu0 0.0
    %2574 = vmatprep.subr.mxu0 0.0
    %2575 = vmatpush1.msra.mxu0 0.0
    %2576 = vmatprep.subr.mxu0 0.0
    %2577 = vmatpush1.msra.mxu0 0.0
    %2578 = vmatprep.subr.mxu0 0.0
    %2579 = vmatpush1.msra.mxu0 0.0
    %2580 = vmatprep.subr.mxu0 0.0
    %2581 = vmatpush1.msra.mxu0 0.0
    %2582 = vmatprep.subr.mxu0 0.0
    %2583 = vmatpush1.msra.mxu0 0.0
    %2584 = vmatprep.subr.mxu0 0.0
    %2585 = vmatpush1.msra.mxu0 0.0
    %2586 = vmatprep.subr.mxu0 0.0
    %2587 = vmatpush1.msra.mxu0 0.0
    %2588 = vmatprep.subr.mxu0 0.0
    %2589 = vmatpush1.msra.mxu0 0.0
    %2590 = vmatprep.subr.mxu0 0.0
    %2591 = vmatpush1.msra.mxu0 0.0
    %2592 = vmatprep.subr.mxu0 0.0
    %2593 = vmatpush1.msra.mxu0 0.0
    %2594 = vmatprep.subr.mxu0 0.0
    %2595 = vmatpush1.msra.mxu0 0.0
    %2596 = vmatprep.subr.mxu0 0.0
    %2597 = vmatpush1.msra.mxu0 0.0
    %2598 = vmatprep.subr.mxu0 0.0
    %2599 = vmatpush1.msra.mxu0 0.0
    %2600 = vmatprep.subr.mxu0 0.0
    %2601 = vmatpush1.msra.mxu0 0.0
    %2602 = vmatprep.subr.mxu0 0.0
    %2603 = vmatpush1.msra.mxu0 0.0
    %2604 = vmatprep.subr.mxu0 0.0
    %2605 = vmatpush1.msra.mxu0 0.0
    %2606 = vmatprep.subr.mxu0 0.0
    %2607 = vmatpush1.msra.mxu0 0.0
    %2608 = vmatprep.mubr.f32.mxu0 0.0
    %2609 = vmatmul.mubr.f32.gmra.mrb[0].mxu0 %v1776
    %v2610 = vpop.f32.mrb[0].mxu0
    %v2611 = vadd.f32 %v2542, %v2610
    %v2612 = vpop.f32.mrb[0].mxu0
    %2613 = vmatprep.mubr.f32.mxu0 0.0
    %2614 = vmatmul.mubr.f32.gmra.mrb[0].mxu0 %v1779
    %v2615 = vpop.f32.mrb[0].mxu0
    %v2616 = vadd.f32 %v2542, %v2615
    %v2617 = vpop.f32.mrb[0].mxu0
    %2618 = vdwg.mxu0
    %v2620 = vsel %vm400, %v2435, 0
    %v2623 = vsel %vm400, %v2523, 0
    %2625 = vmatprep.subr.mxu0 0.0
    %2626 = vmatpush1.xpose.msra.mxu0 %v2623
    %2627 = vmatprep.subr.mxu0 0.0
    %2628 = vmatpush1.xpose.msra.mxu0 0.0
    %2629 = vmatprep.subr.mxu0 0.0
    %2630 = vmatpush1.xpose.msra.mxu0 0.0
    %2631 = vmatprep.subr.mxu0 0.0
    %2632 = vmatpush1.xpose.msra.mxu0 0.0
    %2633 = vmatprep.subr.mxu0 0.0
    %2634 = vmatpush1.xpose.msra.mxu0 0.0
    %2635 = vmatprep.subr.mxu0 0.0
    %2636 = vmatpush1.xpose.msra.mxu0 0.0
    %2637 = vmatprep.subr.mxu0 0.0
    %2638 = vmatpush1.xpose.msra.mxu0 0.0
    %2639 = vmatprep.subr.mxu0 0.0
    %2640 = vmatpush1.xpose.msra.mxu0 0.0
    %2641 = vmatprep.subr.mxu0 0.0
    %2642 = vmatpush1.xpose.msra.mxu0 0.0
    %2643 = vmatprep.subr.mxu0 0.0
    %2644 = vmatpush1.xpose.msra.mxu0 0.0
    %2645 = vmatprep.subr.mxu0 0.0
    %2646 = vmatpush1.xpose.msra.mxu0 0.0
    %2647 = vmatprep.subr.mxu0 0.0
    %2648 = vmatpush1.xpose.msra.mxu0 0.0
    %2649 = vmatprep.subr.mxu0 0.0
    %2650 = vmatpush1.xpose.msra.mxu0 0.0
    %2651 = vmatprep.subr.mxu0 0.0
    %2652 = vmatpush1.xpose.msra.mxu0 0.0
    %2653 = vmatprep.subr.mxu0 0.0
    %2654 = vmatpush1.xpose.msra.mxu0 0.0
    %2655 = vmatprep.subr.mxu0 0.0
    %2656 = vmatpush1.xpose.msra.mxu0 0.0
    %2657 = vmatprep.subr.mxu0 0.0
    %2658 = vmatpush1.xpose.msra.mxu0 0.0
    %2659 = vmatprep.subr.mxu0 0.0
    %2660 = vmatpush1.xpose.msra.mxu0 0.0
    %2661 = vmatprep.subr.mxu0 0.0
    %2662 = vmatpush1.xpose.msra.mxu0 0.0
    %2663 = vmatprep.subr.mxu0 0.0
    %2664 = vmatpush1.xpose.msra.mxu0 0.0
    %2665 = vmatprep.subr.mxu0 0.0
    %2666 = vmatpush1.xpose.msra.mxu0 0.0
    %2667 = vmatprep.subr.mxu0 0.0
    %2668 = vmatpush1.xpose.msra.mxu0 0.0
    %2669 = vmatprep.subr.mxu0 0.0
    %2670 = vmatpush1.xpose.msra.mxu0 0.0
    %2671 = vmatprep.subr.mxu0 0.0
    %2672 = vmatpush1.xpose.msra.mxu0 0.0
    %2673 = vmatprep.subr.mxu0 0.0
    %2674 = vmatpush1.xpose.msra.mxu0 0.0
    %2675 = vmatprep.subr.mxu0 0.0
    %2676 = vmatpush1.xpose.msra.mxu0 0.0
    %2677 = vmatprep.subr.mxu0 0.0
    %2678 = vmatpush1.xpose.msra.mxu0 0.0
    %2679 = vmatprep.subr.mxu0 0.0
    %2680 = vmatpush1.xpose.msra.mxu0 0.0
    %2681 = vmatprep.subr.mxu0 0.0
    %2682 = vmatpush1.xpose.msra.mxu0 0.0
    %2683 = vmatprep.subr.mxu0 0.0
    %2684 = vmatpush1.xpose.msra.mxu0 0.0
    %2685 = vmatprep.subr.mxu0 0.0
    %2686 = vmatpush1.xpose.msra.mxu0 0.0
    %2687 = vmatprep.subr.mxu0 0.0
    %2688 = vmatpush1.xpose.msra.mxu0 0.0
    %2689 = vmatprep.mubr.f32.mxu0 0.0
    %2690 = vmatmul.mubr.f32.gmra.mrb[0].mxu0 %v2620
    %v2691 = vpop.f32.mrb[0].mxu0
    %v2692 = vadd.f32 %v124, %v2691
    %v2693 = vpop.f32.mrb[0].mxu0
    %2694 = vdwg.mxu0
    %v2696 = vsel %vm400, %v2440, 0
    %v2699 = vsel %vm400, %v2528, 0
    %2701 = vmatprep.subr.mxu0 0.0
    %2702 = vmatpush1.xpose.msra.mxu0 %v2699
    %2703 = vmatprep.subr.mxu0 0.0
    %2704 = vmatpush1.xpose.msra.mxu0 0.0
    %2705 = vmatprep.subr.mxu0 0.0
    %2706 = vmatpush1.xpose.msra.mxu0 0.0
    %2707 = vmatprep.subr.mxu0 0.0
    %2708 = vmatpush1.xpose.msra.mxu0 0.0
    %2709 = vmatprep.subr.mxu0 0.0
    %2710 = vmatpush1.xpose.msra.mxu0 0.0
    %2711 = vmatprep.subr.mxu0 0.0
    %2712 = vmatpush1.xpose.msra.mxu0 0.0
    %2713 = vmatprep.subr.mxu0 0.0
    %2714 = vmatpush1.xpose.msra.mxu0 0.0
    %2715 = vmatprep.subr.mxu0 0.0
    %2716 = vmatpush1.xpose.msra.mxu0 0.0
    %2717 = vmatprep.subr.mxu0 0.0
    %2718 = vmatpush1.xpose.msra.mxu0 0.0
    %2719 = vmatprep.subr.mxu0 0.0
    %2720 = vmatpush1.xpose.msra.mxu0 0.0
    %2721 = vmatprep.subr.mxu0 0.0
    %2722 = vmatpush1.xpose.msra.mxu0 0.0
    %2723 = vmatprep.subr.mxu0 0.0
    %2724 = vmatpush1.xpose.msra.mxu0 0.0
    %2725 = vmatprep.subr.mxu0 0.0
    %2726 = vmatpush1.xpose.msra.mxu0 0.0
    %2727 = vmatprep.subr.mxu0 0.0
    %2728 = vmatpush1.xpose.msra.mxu0 0.0
    %2729 = vmatprep.subr.mxu0 0.0
    %2730 = vmatpush1.xpose.msra.mxu0 0.0
    %2731 = vmatprep.subr.mxu0 0.0
    %2732 = vmatpush1.xpose.msra.mxu0 0.0
    %2733 = vmatprep.subr.mxu0 0.0
    %2734 = vmatpush1.xpose.msra.mxu0 0.0
    %2735 = vmatprep.subr.mxu0 0.0
    %2736 = vmatpush1.xpose.msra.mxu0 0.0
    %2737 = vmatprep.subr.mxu0 0.0
    %2738 = vmatpush1.xpose.msra.mxu0 0.0
    %2739 = vmatprep.subr.mxu0 0.0
    %2740 = vmatpush1.xpose.msra.mxu0 0.0
    %2741 = vmatprep.subr.mxu0 0.0
    %2742 = vmatpush1.xpose.msra.mxu0 0.0
    %2743 = vmatprep.subr.mxu0 0.0
    %2744 = vmatpush1.xpose.msra.mxu0 0.0
    %2745 = vmatprep.subr.mxu0 0.0
    %2746 = vmatpush1.xpose.msra.mxu0 0.0
    %2747 = vmatprep.subr.mxu0 0.0
    %2748 = vmatpush1.xpose.msra.mxu0 0.0
    %2749 = vmatprep.subr.mxu0 0.0
    %2750 = vmatpush1.xpose.msra.mxu0 0.0
    %2751 = vmatprep.subr.mxu0 0.0
    %2752 = vmatpush1.xpose.msra.mxu0 0.0
    %2753 = vmatprep.subr.mxu0 0.0
    %2754 = vmatpush1.xpose.msra.mxu0 0.0
    %2755 = vmatprep.subr.mxu0 0.0
    %2756 = vmatpush1.xpose.msra.mxu0 0.0
    %2757 = vmatprep.subr.mxu0 0.0
    %2758 = vmatpush1.xpose.msra.mxu0 0.0
    %2759 = vmatprep.subr.mxu0 0.0
    %2760 = vmatpush1.xpose.msra.mxu0 0.0
    %2761 = vmatprep.subr.mxu0 0.0
    %2762 = vmatpush1.xpose.msra.mxu0 0.0
    %2763 = vmatprep.subr.mxu0 0.0
    %2764 = vmatpush1.xpose.msra.mxu0 0.0
    %2765 = vmatprep.mubr.f32.mxu0 0.0
    %2766 = vmatmul.mubr.f32.gmra.mrb[0].mxu0 %v2696
    %v2767 = vpop.f32.mrb[0].mxu0
    %v2768 = vadd.f32 %v128, %v2767
    %v2769 = vpop.f32.mrb[0].mxu0
    %2770 = vdwg.mxu0
    %v2771 = vsel %vm553, %v2692, -inf
    %2772 = vmax.xlane.f32.xlu0 %v2771
    %v2773 = vpop.xlane.xlu0 %2772
    %v2774 = vsel %vm553, %v2768, -inf
    %2775 = vmax.xlane.f32.xlu0 %v2774
    %v2776 = vpop.xlane.xlu0 %2775
    %v2777 = vsub.f32 %v2692, %v2773
    %v2778 = vsub.f32 %v2768, %v2776
    %v2779 = vmul.f32 %v2777, 1.442695
    %v2780 = vpow.pop %v2779
    %v2781 = vmul.f32 %v2778, 1.442695
    %v2782 = vpow.pop %v2781
    %v2783 = vsel %vm553, %v2780, 0.0
    %2784 = vadd.xlane.f32.xlu0 %v2783
    %v2785 = vpop.xlane.xlu0 %2784
    %v2786 = vsel %vm553, %v2782, 0.0
    %2787 = vadd.xlane.f32.xlu0 %v2786
    %v2788 = vpop.xlane.xlu0 %2787
    %v2789 = vrcp.pop %v2785
    %v2790 = vrcp.pop %v2788
    %v2791 = vmul.f32 %v2780, %v2789
    %v2792 = vmul.f32 %v2782, %v2790
    %v2794 = vsel %vm553, %v2791, 0
    %2796 = vmatprep.subr.mxu0 0.0
    %2797 = vmatpush1.msra.mxu0 %v2611
    %2798 = vmatprep.subr.mxu0 0.0
    %2799 = vmatpush1.msra.mxu0 0.0
    %2800 = vmatprep.subr.mxu0 0.0
    %2801 = vmatpush1.msra.mxu0 0.0
    %2802 = vmatprep.subr.mxu0 0.0
    %2803 = vmatpush1.msra.mxu0 0.0
    %2804 = vmatprep.subr.mxu0 0.0
    %2805 = vmatpush1.msra.mxu0 0.0
    %2806 = vmatprep.subr.mxu0 0.0
    %2807 = vmatpush1.msra.mxu0 0.0
    %2808 = vmatprep.subr.mxu0 0.0
    %2809 = vmatpush1.msra.mxu0 0.0
    %2810 = vmatprep.subr.mxu0 0.0
    %2811 = vmatpush1.msra.mxu0 0.0
    %2812 = vmatprep.subr.mxu0 0.0
    %2813 = vmatpush1.msra.mxu0 0.0
    %2814 = vmatprep.subr.mxu0 0.0
    %2815 = vmatpush1.msra.mxu0 0.0
    %2816 = vmatprep.subr.mxu0 0.0
    %2817 = vmatpush1.msra.mxu0 0.0
    %2818 = vmatprep.subr.mxu0 0.0
    %2819 = vmatpush1.msra.mxu0 0.0
    %2820 = vmatprep.subr.mxu0 0.0
    %2821 = vmatpush1.msra.mxu0 0.0
    %2822 = vmatprep.subr.mxu0 0.0
    %2823 = vmatpush1.msra.mxu0 0.0
    %2824 = vmatprep.subr.mxu0 0.0
    %2825 = vmatpush1.msra.mxu0 0.0
    %2826 = vmatprep.subr.mxu0 0.0
    %2827 = vmatpush1.msra.mxu0 0.0
    %2828 = vmatprep.subr.mxu0 0.0
    %2829 = vmatpush1.msra.mxu0 0.0
    %2830 = vmatprep.subr.mxu0 0.0
    %2831 = vmatpush1.msra.mxu0 0.0
    %2832 = vmatprep.subr.mxu0 0.0
    %2833 = vmatpush1.msra.mxu0 0.0
    %2834 = vmatprep.subr.mxu0 0.0
    %2835 = vmatpush1.msra.mxu0 0.0
    %2836 = vmatprep.subr.mxu0 0.0
    %2837 = vmatpush1.msra.mxu0 0.0
    %2838 = vmatprep.subr.mxu0 0.0
    %2839 = vmatpush1.msra.mxu0 0.0
    %2840 = vmatprep.subr.mxu0 0.0
    %2841 = vmatpush1.msra.mxu0 0.0
    %2842 = vmatprep.subr.mxu0 0.0
    %2843 = vmatpush1.msra.mxu0 0.0
    %2844 = vmatprep.subr.mxu0 0.0
    %2845 = vmatpush1.msra.mxu0 0.0
    %2846 = vmatprep.subr.mxu0 0.0
    %2847 = vmatpush1.msra.mxu0 0.0
    %2848 = vmatprep.subr.mxu0 0.0
    %2849 = vmatpush1.msra.mxu0 0.0
    %2850 = vmatprep.subr.mxu0 0.0
    %2851 = vmatpush1.msra.mxu0 0.0
    %2852 = vmatprep.subr.mxu0 0.0
    %2853 = vmatpush1.msra.mxu0 0.0
    %2854 = vmatprep.subr.mxu0 0.0
    %2855 = vmatpush1.msra.mxu0 0.0
    %2856 = vmatprep.subr.mxu0 0.0
    %2857 = vmatpush1.msra.mxu0 0.0
    %2858 = vmatprep.subr.mxu0 0.0
    %2859 = vmatpush1.msra.mxu0 0.0
    %2860 = vmatprep.mubr.f32.mxu0 0.0
    %2861 = vmatmul.mubr.f32.gmra.mrb[0].mxu0 %v2794
    %v2862 = vpop.f32.mrb[0].mxu0
    %v2863 = vadd.f32 0.0, %v2862
    %v2864 = vpop.f32.mrb[0].mxu0
    %2865 = vdwg.mxu0
    %v2867 = vsel %vm553, %v2792, 0
    %2869 = vmatprep.subr.mxu0 0.0
    %2870 = vmatpush1.msra.mxu0 %v2616
    %2871 = vmatprep.subr.mxu0 0.0
    %2872 = vmatpush1.msra.mxu0 0.0
    %2873 = vmatprep.subr.mxu0 0.0
    %2874 = vmatpush1.msra.mxu0 0.0
    %2875 = vmatprep.subr.mxu0 0.0
    %2876 = vmatpush1.msra.mxu0 0.0
    %2877 = vmatprep.subr.mxu0 0.0
    %2878 = vmatpush1.msra.mxu0 0.0
    %2879 = vmatprep.subr.mxu0 0.0
    %2880 = vmatpush1.msra.mxu0 0.0
    %2881 = vmatprep.subr.mxu0 0.0
    %2882 = vmatpush1.msra.mxu0 0.0
    %2883 = vmatprep.subr.mxu0 0.0
    %2884 = vmatpush1.msra.mxu0 0.0
    %2885 = vmatprep.subr.mxu0 0.0
    %2886 = vmatpush1.msra.mxu0 0.0
    %2887 = vmatprep.subr.mxu0 0.0
    %2888 = vmatpush1.msra.mxu0 0.0
    %2889 = vmatprep.subr.mxu0 0.0
    %2890 = vmatpush1.msra.mxu0 0.0
    %2891 = vmatprep.subr.mxu0 0.0
    %2892 = vmatpush1.msra.mxu0 0.0
    %2893 = vmatprep.subr.mxu0 0.0
    %2894 = vmatpush1.msra.mxu0 0.0
    %2895 = vmatprep.subr.mxu0 0.0
    %2896 = vmatpush1.msra.mxu0 0.0
    %2897 = vmatprep.subr.mxu0 0.0
    %2898 = vmatpush1.msra.mxu0 0.0
    %2899 = vmatprep.subr.mxu0 0.0
    %2900 = vmatpush1.msra.mxu0 0.0
    %2901 = vmatprep.subr.mxu0 0.0
    %2902 = vmatpush1.msra.mxu0 0.0
    %2903 = vmatprep.subr.mxu0 0.0
    %2904 = vmatpush1.msra.mxu0 0.0
    %2905 = vmatprep.subr.mxu0 0.0
    %2906 = vmatpush1.msra.mxu0 0.0
    %2907 = vmatprep.subr.mxu0 0.0
    %2908 = vmatpush1.msra.mxu0 0.0
    %2909 = vmatprep.subr.mxu0 0.0
    %2910 = vmatpush1.msra.mxu0 0.0
    %2911 = vmatprep.subr.mxu0 0.0
    %2912 = vmatpush1.msra.mxu0 0.0
    %2913 = vmatprep.subr.mxu0 0.0
    %2914 = vmatpush1.msra.mxu0 0.0
    %2915 = vmatprep.subr.mxu0 0.0
    %2916 = vmatpush1.msra.mxu0 0.0
    %2917 = vmatprep.subr.mxu0 0.0
    %2918 = vmatpush1.msra.mxu0 0.0
    %2919 = vmatprep.subr.mxu0 0.0
    %2920 = vmatpush1.msra.mxu0 0.0
    %2921 = vmatprep.subr.mxu0 0.0
    %2922 = vmatpush1.msra.mxu0 0.0
    %2923 = vmatprep.subr.mxu0 0.0
    %2924 = vmatpush1.msra.mxu0 0.0
    %2925 = vmatprep.subr.mxu0 0.0
    %2926 = vmatpush1.msra.mxu0 0.0
    %2927 = vmatprep.subr.mxu0 0.0
    %2928 = vmatpush1.msra.mxu0 0.0
    %2929 = vmatprep.subr.mxu0 0.0
    %2930 = vmatpush1.msra.mxu0 0.0
    %2931 = vmatprep.subr.mxu0 0.0
    %2932 = vmatpush1.msra.mxu0 0.0
    %2933 = vmatprep.mubr.f32.mxu0 0.0
    %2934 = vmatmul.mubr.f32.gmra.mrb[0].mxu0 %v2867
    %v2935 = vpop.f32.mrb[0].mxu0
    %v2936 = vadd.f32 0.0, %v2935
    %v2937 = vpop.f32.mrb[0].mxu0
    %2938 = vdwg.mxu0
    %s2939 = scalar_lea.vmem %s5, 48
    %v2940 = vld [vmem:[%s2939] sm:$0xff]
    %v2941 = vld [vmem:[%s2939 + $0x8] sm:$0xff]
    %v2943 = vsel %vm400, %v2863, 0
    %v2946 = vsel %vm400, %v2936, 0
    %2948 = vmatprep.subr.mxu0 0.0
    %2949 = vmatpush1.msra.mxu0 %v2940
    %2950 = vmatprep.subr.mxu0 0.0
    %2951 = vmatpush1.msra.mxu0 %v2941
    %2952 = vmatprep.subr.mxu0 0.0
    %2953 = vmatpush1.msra.mxu0 0.0
    %2954 = vmatprep.subr.mxu0 0.0
    %2955 = vmatpush1.msra.mxu0 0.0
    %2956 = vmatprep.subr.mxu0 0.0
    %2957 = vmatpush1.msra.mxu0 0.0
    %2958 = vmatprep.subr.mxu0 0.0
    %2959 = vmatpush1.msra.mxu0 0.0
    %2960 = vmatprep.subr.mxu0 0.0
    %2961 = vmatpush1.msra.mxu0 0.0
    %2962 = vmatprep.subr.mxu0 0.0
    %2963 = vmatpush1.msra.mxu0 0.0
    %2964 = vmatprep.subr.mxu0 0.0
    %2965 = vmatpush1.msra.mxu0 0.0
    %2966 = vmatprep.subr.mxu0 0.0
    %2967 = vmatpush1.msra.mxu0 0.0
    %2968 = vmatprep.subr.mxu0 0.0
    %2969 = vmatpush1.msra.mxu0 0.0
    %2970 = vmatprep.subr.mxu0 0.0
    %2971 = vmatpush1.msra.mxu0 0.0
    %2972 = vmatprep.subr.mxu0 0.0
    %2973 = vmatpush1.msra.mxu0 0.0
    %2974 = vmatprep.subr.mxu0 0.0
    %2975 = vmatpush1.msra.mxu0 0.0
    %2976 = vmatprep.subr.mxu0 0.0
    %2977 = vmatpush1.msra.mxu0 0.0
    %2978 = vmatprep.subr.mxu0 0.0
    %2979 = vmatpush1.msra.mxu0 0.0
    %2980 = vmatprep.subr.mxu0 0.0
    %2981 = vmatpush1.msra.mxu0 0.0
    %2982 = vmatprep.subr.mxu0 0.0
    %2983 = vmatpush1.msra.mxu0 0.0
    %2984 = vmatprep.subr.mxu0 0.0
    %2985 = vmatpush1.msra.mxu0 0.0
    %2986 = vmatprep.subr.mxu0 0.0
    %2987 = vmatpush1.msra.mxu0 0.0
    %2988 = vmatprep.subr.mxu0 0.0
    %2989 = vmatpush1.msra.mxu0 0.0
    %2990 = vmatprep.subr.mxu0 0.0
    %2991 = vmatpush1.msra.mxu0 0.0
    %2992 = vmatprep.subr.mxu0 0.0
    %2993 = vmatpush1.msra.mxu0 0.0
    %2994 = vmatprep.subr.mxu0 0.0
    %2995 = vmatpush1.msra.mxu0 0.0
    %2996 = vmatprep.subr.mxu0 0.0
    %2997 = vmatpush1.msra.mxu0 0.0
    %2998 = vmatprep.subr.mxu0 0.0
    %2999 = vmatpush1.msra.mxu0 0.0
    %3000 = vmatprep.subr.mxu0 0.0
    %3001 = vmatpush1.msra.mxu0 0.0
    %3002 = vmatprep.subr.mxu0 0.0
    %3003 = vmatpush1.msra.mxu0 0.0
    %3004 = vmatprep.subr.mxu0 0.0
    %3005 = vmatpush1.msra.mxu0 0.0
    %3006 = vmatprep.subr.mxu0 0.0
    %3007 = vmatpush1.msra.mxu0 0.0
    %3008 = vmatprep.subr.mxu0 0.0
    %3009 = vmatpush1.msra.mxu0 0.0
    %3010 = vmatprep.subr.mxu0 0.0
    %3011 = vmatpush1.msra.mxu0 0.0
    %3012 = vmatprep.mubr.f32.mxu0 0.0
    %3013 = vmatmul.mubr.f32.gmra.mrb[0].mxu0 %v2943
    %v3014 = vpop.f32.mrb[0].mxu0
    %v3015 = vadd.f32 0.0, %v3014
    %v3016 = vpop.f32.mrb[0].mxu0
    %3017 = vmatprep.mubr.f32.mxu0 0.0
    %3018 = vmatmul.mubr.f32.gmra.mrb[0].mxu0 %v2946
    %v3019 = vpop.f32.mrb[0].mxu0
    %v3020 = vadd.f32 0.0, %v3019
    %v3021 = vpop.f32.mrb[0].mxu0
    %3022 = vdwg.mxu0
    %v3024 = vsel %vm400, %v2276, 0
    %v3027 = vsel %vm400, %v2349, 0
    %3029 = vmatprep.subr.mxu0 0.0
    %3030 = vmatpush1.msra.mxu0 %v2353
    %3031 = vmatprep.subr.mxu0 0.0
    %3032 = vmatpush1.msra.mxu0 %v2354
    %3033 = vmatprep.subr.mxu0 0.0
    %3034 = vmatpush1.msra.mxu0 0.0
    %3035 = vmatprep.subr.mxu0 0.0
    %3036 = vmatpush1.msra.mxu0 0.0
    %3037 = vmatprep.subr.mxu0 0.0
    %3038 = vmatpush1.msra.mxu0 0.0
    %3039 = vmatprep.subr.mxu0 0.0
    %3040 = vmatpush1.msra.mxu0 0.0
    %3041 = vmatprep.subr.mxu0 0.0
    %3042 = vmatpush1.msra.mxu0 0.0
    %3043 = vmatprep.subr.mxu0 0.0
    %3044 = vmatpush1.msra.mxu0 0.0
    %3045 = vmatprep.subr.mxu0 0.0
    %3046 = vmatpush1.msra.mxu0 0.0
    %3047 = vmatprep.subr.mxu0 0.0
    %3048 = vmatpush1.msra.mxu0 0.0
    %3049 = vmatprep.subr.mxu0 0.0
    %3050 = vmatpush1.msra.mxu0 0.0
    %3051 = vmatprep.subr.mxu0 0.0
    %3052 = vmatpush1.msra.mxu0 0.0
    %3053 = vmatprep.subr.mxu0 0.0
    %3054 = vmatpush1.msra.mxu0 0.0
    %3055 = vmatprep.subr.mxu0 0.0
    %3056 = vmatpush1.msra.mxu0 0.0
    %3057 = vmatprep.subr.mxu0 0.0
    %3058 = vmatpush1.msra.mxu0 0.0
    %3059 = vmatprep.subr.mxu0 0.0
    %3060 = vmatpush1.msra.mxu0 0.0
    %3061 = vmatprep.subr.mxu0 0.0
    %3062 = vmatpush1.msra.mxu0 0.0
    %3063 = vmatprep.subr.mxu0 0.0
    %3064 = vmatpush1.msra.mxu0 0.0
    %3065 = vmatprep.subr.mxu0 0.0
    %3066 = vmatpush1.msra.mxu0 0.0
    %3067 = vmatprep.subr.mxu0 0.0
    %3068 = vmatpush1.msra.mxu0 0.0
    %3069 = vmatprep.subr.mxu0 0.0
    %3070 = vmatpush1.msra.mxu0 0.0
    %3071 = vmatprep.subr.mxu0 0.0
    %3072 = vmatpush1.msra.mxu0 0.0
    %3073 = vmatprep.subr.mxu0 0.0
    %3074 = vmatpush1.msra.mxu0 0.0
    %3075 = vmatprep.subr.mxu0 0.0
    %3076 = vmatpush1.msra.mxu0 0.0
    %3077 = vmatprep.subr.mxu0 0.0
    %3078 = vmatpush1.msra.mxu0 0.0
    %3079 = vmatprep.subr.mxu0 0.0
    %3080 = vmatpush1.msra.mxu0 0.0
    %3081 = vmatprep.subr.mxu0 0.0
    %3082 = vmatpush1.msra.mxu0 0.0
    %3083 = vmatprep.subr.mxu0 0.0
    %3084 = vmatpush1.msra.mxu0 0.0
    %3085 = vmatprep.subr.mxu0 0.0
    %3086 = vmatpush1.msra.mxu0 0.0
    %3087 = vmatprep.subr.mxu0 0.0
    %3088 = vmatpush1.msra.mxu0 0.0
    %3089 = vmatprep.subr.mxu0 0.0
    %3090 = vmatpush1.msra.mxu0 0.0
    %3091 = vmatprep.subr.mxu0 0.0
    %3092 = vmatpush1.msra.mxu0 0.0
    %3093 = vmatprep.mubr.f32.mxu0 0.0
    %3094 = vmatmul.mubr.f32.gmra.mrb[0].mxu0 %v3024
    %v3095 = vpop.f32.mrb[0].mxu0
    %v3096 = vadd.f32 %v3015, %v3095
    %v3097 = vpop.f32.mrb[0].mxu0
    %3098 = vmatprep.mubr.f32.mxu0 0.0
    %3099 = vmatmul.mubr.f32.gmra.mrb[0].mxu0 %v3027
    %v3100 = vpop.f32.mrb[0].mxu0
    %v3101 = vadd.f32 %v3020, %v3100
    %v3102 = vpop.f32.mrb[0].mxu0
    %3103 = vdwg.mxu0
    %v3104 = vlaneseq
    %v3105 = vshrl.u32 %v3104, 7
    %v3106 = vsub.s32 0, %v3105
    %v3107 = vrot.slane %v1761, %v3106
    %v3108 = vadd.f32 %v3096, %v3107
    %v3109 = vadd.f32 %v3101, %v3107
    %v3110 = vadd.f32 %v1758, %v3108
    %v3111 = vadd.f32 %v1759, %v3109
    %v3112 = vsel %vm55, %v3110, 0.0
    %3113 = vadd.xlane.f32.xlu0 %v3112
    %v3114 = vpop.xlane.xlu0 %3113
    %v3115 = vsel %vm55, %v3111, 0.0
    %3116 = vadd.xlane.f32.xlu0 %v3115
    %v3117 = vpop.xlane.xlu0 %3116
    %v3118 = vmul.f32 %v3114, %v62
    %v3119 = vmul.f32 %v3117, %v62
    %v3120 = vsub.f32 %v3110, %v3118
    %v3121 = vsub.f32 %v3111, %v3119
    %v3122 = vmul.f32 %v3120, %v3120
    %v3123 = vmul.f32 %v3121, %v3121
    %v3124 = vsel %vm55, %v3122, 0.0
    %3125 = vadd.xlane.f32.xlu0 %v3124
    %v3126 = vpop.xlane.xlu0 %3125
    %v3127 = vsel %vm55, %v3123, 0.0
    %3128 = vadd.xlane.f32.xlu0 %v3127
    %v3129 = vpop.xlane.xlu0 %3128
    %v3130 = vmul.f32 %v3126, %v62
    %v3131 = vmul.f32 %v3129, %v62
    %v3132 = vadd.f32 %v3130, 1e-12
    %v3133 = vadd.f32 %v3131, 1e-12
    %v3134 = vrsqrt.pop %v3132
    %v3135 = vrsqrt.pop %v3133
    %v3136 = vmul.f32 %v3120, %v3134
    %v3137 = vmul.f32 %v3121, %v3135
    %v3138 = vlaneseq
    %v3139 = vshrl.u32 %v3138, 7
    %v3140 = vsub.s32 3, %v3139
    %v3141 = vrot.slane %v1761, %v3140
    %v3142 = vmul.f32 %v3136, %v3141
    %v3143 = vmul.f32 %v3137, %v3141
    %v3144 = vlaneseq
    %v3145 = vshrl.u32 %v3144, 7
    %v3146 = vsub.s32 4, %v3145
    %v3147 = vrot.slane %v1761, %v3146
    %v3148 = vadd.f32 %v3142, %v3147
    %v3149 = vadd.f32 %v3143, %v3147
    %s3150 = scalar_lea.vmem %s6, 32
    %v3151 = vld [vmem:[%s3150] sm:$0xff]
    %v3152 = vld [vmem:[%s3150 + $0x8] sm:$0xff]
    %v3153 = vld [vmem:[%s3150 + $0x10] sm:$0xff]
    %v3154 = vld [vmem:[%s3150 + $0x18] sm:$0xff]
    %v3155 = vlaneseq
    %v3156 = vshrl.u32 %v3155, 7
    %v3157 = vsub.s32 1, %v3156
    %v3158 = vrot.slane %v1761, %v3157
    %v3160 = vsel %vm55, %v3148, 0
    %v3163 = vsel %vm55, %v3149, 0
    %3165 = vmatprep.subr.mxu0 0.0
    %3166 = vmatpush1.msra.mxu0 %v3151
    %3167 = vmatprep.subr.mxu0 0.0
    %3168 = vmatpush1.msra.mxu0 %v3152
    %3169 = vmatprep.subr.mxu0 0.0
    %3170 = vmatpush1.msra.mxu0 %v3153
    %3171 = vmatprep.subr.mxu0 0.0
    %3172 = vmatpush1.msra.mxu0 %v3154
    %3173 = vmatprep.subr.mxu0 0.0
    %3174 = vmatpush1.msra.mxu0 0.0
    %3175 = vmatprep.subr.mxu0 0.0
    %3176 = vmatpush1.msra.mxu0 0.0
    %3177 = vmatprep.subr.mxu0 0.0
    %3178 = vmatpush1.msra.mxu0 0.0
    %3179 = vmatprep.subr.mxu0 0.0
    %3180 = vmatpush1.msra.mxu0 0.0
    %3181 = vmatprep.subr.mxu0 0.0
    %3182 = vmatpush1.msra.mxu0 0.0
    %3183 = vmatprep.subr.mxu0 0.0
    %3184 = vmatpush1.msra.mxu0 0.0
    %3185 = vmatprep.subr.mxu0 0.0
    %3186 = vmatpush1.msra.mxu0 0.0
    %3187 = vmatprep.subr.mxu0 0.0
    %3188 = vmatpush1.msra.mxu0 0.0
    %3189 = vmatprep.subr.mxu0 0.0
    %3190 = vmatpush1.msra.mxu0 0.0
    %3191 = vmatprep.subr.mxu0 0.0
    %3192 = vmatpush1.msra.mxu0 0.0
    %3193 = vmatprep.subr.mxu0 0.0
    %3194 = vmatpush1.msra.mxu0 0.0
    %3195 = vmatprep.subr.mxu0 0.0
    %3196 = vmatpush1.msra.mxu0 0.0
    %3197 = vmatprep.subr.mxu0 0.0
    %3198 = vmatpush1.msra.mxu0 0.0
    %3199 = vmatprep.subr.mxu0 0.0
    %3200 = vmatpush1.msra.mxu0 0.0
    %3201 = vmatprep.subr.mxu0 0.0
    %3202 = vmatpush1.msra.mxu0 0.0
    %3203 = vmatprep.subr.mxu0 0.0
    %3204 = vmatpush1.msra.mxu0 0.0
    %3205 = vmatprep.subr.mxu0 0.0
    %3206 = vmatpush1.msra.mxu0 0.0
    %3207 = vmatprep.subr.mxu0 0.0
    %3208 = vmatpush1.msra.mxu0 0.0
    %3209 = vmatprep.subr.mxu0 0.0
    %3210 = vmatpush1.msra.mxu0 0.0
    %3211 = vmatprep.subr.mxu0 0.0
    %3212 = vmatpush1.msra.mxu0 0.0
    %3213 = vmatprep.subr.mxu0 0.0
    %3214 = vmatpush1.msra.mxu0 0.0
    %3215 = vmatprep.subr.mxu0 0.0
    %3216 = vmatpush1.msra.mxu0 0.0
    %3217 = vmatprep.subr.mxu0 0.0
    %3218 = vmatpush1.msra.mxu0 0.0
    %3219 = vmatprep.subr.mxu0 0.0
    %3220 = vmatpush1.msra.mxu0 0.0
    %3221 = vmatprep.subr.mxu0 0.0
    %3222 = vmatpush1.msra.mxu0 0.0
    %3223 = vmatprep.subr.mxu0 0.0
    %3224 = vmatpush1.msra.mxu0 0.0
    %3225 = vmatprep.subr.mxu0 0.0
    %3226 = vmatpush1.msra.mxu0 0.0
    %3227 = vmatprep.subr.mxu0 0.0
    %3228 = vmatpush1.msra.mxu0 0.0
    %3229 = vmatprep.mubr.f32.mxu0 0.0
    %3230 = vmatmul.mubr.f32.gmra.mrb[0].mxu0 %v3160
    %v3231 = vpop.f32.mrb[0].mxu0
    %v3232 = vadd.f32 %v3158, %v3231
    %v3233 = vpop.f32.mrb[0].mxu0
    %3234 = vmatprep.mubr.f32.mxu0 0.0
    %3235 = vmatmul.mubr.f32.gmra.mrb[0].mxu0 %v3163
    %v3236 = vpop.f32.mrb[0].mxu0
    %v3237 = vadd.f32 %v3158, %v3236
    %v3238 = vpop.f32.mrb[0].mxu0
    %3239 = vdwg.mxu0
    %v3240 = vmul.f32 %v3232, %v3232
    %v3241 = vmul.f32 %v3237, %v3237
    %v3242 = vmul.f32 %v3232, %v3240
    %v3243 = vmul.f32 %v3237, %v3241
    %v3244 = vmul.f32 %v3242, 0.044715
    %v3245 = vmul.f32 %v3243, 0.044715
    %v3246 = vadd.f32 %v3232, %v3244
    %v3247 = vadd.f32 %v3237, %v3245
    %v3248 = vmul.f32 %v3246, 0.7978846
    %v3249 = vmul.f32 %v3247, 0.7978846
    %v3250 = vtanh.pop %v3248
    %v3251 = vtanh.pop %v3249
    %v3252 = vadd.f32 %v3250, 1.0
    %v3253 = vadd.f32 %v3251, 1.0
    %v3254 = vmul.f32 %v3252, 0.5
    %v3255 = vmul.f32 %v3253, 0.5
    %v3256 = vmul.f32 %v3232, %v3254
    %v3257 = vmul.f32 %v3237, %v3255
    %s3258 = scalar_lea.vmem %s7, 64
    %v3259 = vld [vmem:[%s3258] sm:$0xff]
    %v3260 = vld [vmem:[%s3258 + $0x8] sm:$0xff]
    %v3261 = vld [vmem:[%s3258 + $0x10] sm:$0xff]
    %v3262 = vld [vmem:[%s3258 + $0x18] sm:$0xff]
    %v3263 = vld [vmem:[%s3258 + $0x20] sm:$0xff]
    %v3264 = vld [vmem:[%s3258 + $0x28] sm:$0xff]
    %v3265 = vld [vmem:[%s3258 + $0x30] sm:$0xff]
    %v3266 = vld [vmem:[%s3258 + $0x38] sm:$0xff]
    %v3267 = vlaneseq
    %v3268 = vshrl.u32 %v3267, 7
    %v3269 = vsub.s32 2, %v3268
    %v3270 = vrot.slane %v1761, %v3269
    %v3272 = vsel %vm1638, %v3256, 0
    %v3275 = vsel %vm1638, %v3257, 0
    %3277 = vmatprep.subr.mxu0 0.0
    %3278 = vmatpush1.msra.mxu0 %v3259
    %3279 = vmatprep.subr.mxu0 0.0
    %3280 = vmatpush1.msra.mxu0 %v3260
    %3281 = vmatprep.subr.mxu0 0.0
    %3282 = vmatpush1.msra.mxu0 %v3261
    %3283 = vmatprep.subr.mxu0 0.0
    %3284 = vmatpush1.msra.mxu0 %v3262
    %3285 = vmatprep.subr.mxu0 0.0
    %3286 = vmatpush1.msra.mxu0 %v3263
    %3287 = vmatprep.subr.mxu0 0.0
    %3288 = vmatpush1.msra.mxu0 %v3264
    %3289 = vmatprep.subr.mxu0 0.0
    %3290 = vmatpush1.msra.mxu0 %v3265
    %3291 = vmatprep.subr.mxu0 0.0
    %3292 = vmatpush1.msra.mxu0 %v3266
    %3293 = vmatprep.subr.mxu0 0.0
    %3294 = vmatpush1.msra.mxu0 0.0
    %3295 = vmatprep.subr.mxu0 0.0
    %3296 = vmatpush1.msra.mxu0 0.0
    %3297 = vmatprep.subr.mxu0 0.0
    %3298 = vmatpush1.msra.mxu0 0.0
    %3299 = vmatprep.subr.mxu0 0.0
    %3300 = vmatpush1.msra.mxu0 0.0
    %3301 = vmatprep.subr.mxu0 0.0
    %3302 = vmatpush1.msra.mxu0 0.0
    %3303 = vmatprep.subr.mxu0 0.0
    %3304 = vmatpush1.msra.mxu0 0.0
    %3305 = vmatprep.subr.mxu0 0.0
    %3306 = vmatpush1.msra.mxu0 0.0
    %3307 = vmatprep.subr.mxu0 0.0
    %3308 = vmatpush1.msra.mxu0 0.0
    %3309 = vmatprep.subr.mxu0 0.0
    %3310 = vmatpush1.msra.mxu0 0.0
    %3311 = vmatprep.subr.mxu0 0.0
    %3312 = vmatpush1.msra.mxu0 0.0
    %3313 = vmatprep.subr.mxu0 0.0
    %3314 = vmatpush1.msra.mxu0 0.0
    %3315 = vmatprep.subr.mxu0 0.0
    %3316 = vmatpush1.msra.mxu0 0.0
    %3317 = vmatprep.subr.mxu0 0.0
    %3318 = vmatpush1.msra.mxu0 0.0
    %3319 = vmatprep.subr.mxu0 0.0
    %3320 = vmatpush1.msra.mxu0 0.0
    %3321 = vmatprep.subr.mxu0 0.0
    %3322 = vmatpush1.msra.mxu0 0.0
    %3323 = vmatprep.subr.mxu0 0.0
    %3324 = vmatpush1.msra.mxu0 0.0
    %3325 = vmatprep.subr.mxu0 0.0
    %3326 = vmatpush1.msra.mxu0 0.0
    %3327 = vmatprep.subr.mxu0 0.0
    %3328 = vmatpush1.msra.mxu0 0.0
    %3329 = vmatprep.subr.mxu0 0.0
    %3330 = vmatpush1.msra.mxu0 0.0
    %3331 = vmatprep.subr.mxu0 0.0
    %3332 = vmatpush1.msra.mxu0 0.0
    %3333 = vmatprep.subr.mxu0 0.0
    %3334 = vmatpush1.msra.mxu0 0.0
    %3335 = vmatprep.subr.mxu0 0.0
    %3336 = vmatpush1.msra.mxu0 0.0
    %3337 = vmatprep.subr.mxu0 0.0
    %3338 = vmatpush1.msra.mxu0 0.0
    %3339 = vmatprep.subr.mxu0 0.0
    %3340 = vmatpush1.msra.mxu0 0.0
    %3341 = vmatprep.mubr.f32.mxu0 0.0
    %3342 = vmatmul.mubr.f32.gmra.mrb[0].mxu0 %v3272
    %v3343 = vpop.f32.mrb[0].mxu0
    %v3344 = vadd.f32 %v3270, %v3343
    %v3345 = vpop.f32.mrb[0].mxu0
    %3346 = vmatprep.mubr.f32.mxu0 0.0
    %3347 = vmatmul.mubr.f32.gmra.mrb[0].mxu0 %v3275
    %v3348 = vpop.f32.mrb[0].mxu0
    %v3349 = vadd.f32 %v3270, %v3348
    %v3350 = vpop.f32.mrb[0].mxu0
    %3351 = vdwg.mxu0
    %v3352 = vadd.f32 %v3148, %v3344
    %v3353 = vadd.f32 %v3149, %v3349
    %v3354 = vsel %vm55, %v3352, 0.0
    %3355 = vadd.xlane.f32.xlu0 %v3354
    %v3356 = vpop.xlane.xlu0 %3355
    %v3357 = vsel %vm55, %v3353, 0.0
    %3358 = vadd.xlane.f32.xlu0 %v3357
    %v3359 = vpop.xlane.xlu0 %3358
    %v3360 = vmul.f32 %v3356, %v62
    %v3361 = vmul.f32 %v3359, %v62
    %v3362 = vsub.f32 %v3352, %v3360
    %v3363 = vsub.f32 %v3353, %v3361
    %v3364 = vmul.f32 %v3362, %v3362
    %v3365 = vmul.f32 %v3363, %v3363
    %v3366 = vsel %vm55, %v3364, 0.0
    %3367 = vadd.xlane.f32.xlu0 %v3366
    %v3368 = vpop.xlane.xlu0 %3367
    %v3369 = vsel %vm55, %v3365, 0.0
    %3370 = vadd.xlane.f32.xlu0 %v3369
    %v3371 = vpop.xlane.xlu0 %3370
    %v3372 = vmul.f32 %v3368, %v62
    %v3373 = vmul.f32 %v3371, %v62
    %v3374 = vadd.f32 %v3372, 1e-12
    %v3375 = vadd.f32 %v3373, 1e-12
    %v3376 = vrsqrt.pop %v3374
    %v3377 = vrsqrt.pop %v3375
    %v3378 = vmul.f32 %v3362, %v3376
    %v3379 = vmul.f32 %v3363, %v3377
    %v3380 = vlaneseq
    %v3381 = vshrl.u32 %v3380, 7
    %v3382 = vsub.s32 5, %v3381
    %v3383 = vrot.slane %v1761, %v3382
    %v3384 = vmul.f32 %v3378, %v3383
    %v3385 = vmul.f32 %v3379, %v3383
    %v3386 = vlaneseq
    %v3387 = vshrl.u32 %v3386, 7
    %v3388 = vsub.s32 6, %v3387
    %v3389 = vrot.slane %v1761, %v3388
    %v3390 = vadd.f32 %v3384, %v3389
    %v3391 = vadd.f32 %v3385, %v3389
    %v3392 = vlaneseq
    %v3393 = vshrl.u32 %v3392, 7
    %v3394 = vsub.s32 0, %v3393
    %v3395 = vrot.slane %v52, %v3394
    %v3396 = vmul.f32 %v3390, %v3395
    %v3397 = vmul.f32 %v3391, %v3395
    %v3398 = vsel %vm55, %v3396, 0.0
    %3399 = vadd.xlane.f32.xlu0 %v3398
    %v3400 = vpop.xlane.xlu0 %3399
    %v3401 = vsel %vm55, %v3397, 0.0
    %3402 = vadd.xlane.f32.xlu0 %v3401
    %v3403 = vpop.xlane.xlu0 %3402
    %s3404 = sld [smem:[#allocation2]]
    %v3405 = vstv %s3404
    %v3406 = vadd.f32 %v3400, %v3405
    %v3407 = vadd.f32 %v3403, %v3405
    %v3408 = vlaneseq
    %v3409 = vshrl.u32 %v3408, 7
    %v3410 = vsub.s32 1, %v3409
    %v3411 = vrot.slane %v52, %v3410
    %v3412 = vmul.f32 %v3390, %v3411
    %v3413 = vmul.f32 %v3391, %v3411
    %v3414 = vsel %vm55, %v3412, 0.0
    %3415 = vadd.xlane.f32.xlu0 %v3414
    %v3416 = vpop.xlane.xlu0 %3415
    %v3417 = vsel %vm55, %v3413, 0.0
    %3418 = vadd.xlane.f32.xlu0 %v3417
    %v3419 = vpop.xlane.xlu0 %3418
    %s3420 = sld [smem:[#allocation2 + $0x1]]
    %v3421 = vstv %s3420
    %v3422 = vadd.f32 %v3416, %v3421
    %v3423 = vadd.f32 %v3419, %v3421
    %v3424 = vld [vmem:[%s2] sm:$0xff]
    %v3425 = vld [vmem:[%s2 + $0x8] sm:$0xff]
    %v3426 = vmax.f32 %v3406, %v3422
    %v3427 = vmax.f32 %v3407, %v3423
    %v3428 = vsub.f32 %v3406, %v3422
    %v3429 = vsub.f32 %v3407, %v3423
    %v3430 = vand.u32 2147483647, %v3428
    %v3431 = vand.u32 2147483647, %v3429
    %v3432 = vsub.f32 0.0, %v3430
    %v3433 = vsub.f32 0.0, %v3431
    %v3434 = vmul.f32 %v3432, 1.442695
    %v3435 = vpow.pop %v3434
    %v3436 = vmul.f32 %v3433, 1.442695
    %v3437 = vpow.pop %v3436
    %v3438 = vadd.f32 %v3435, 1.0
    %v3439 = vadd.f32 %v3437, 1.0
    %v3440 = vlog2.pop %v3438
    %v3441 = vmul.f32 %v3440, 0.6931472
    %v3442 = vlog2.pop %v3439
    %v3443 = vmul.f32 %v3442, 0.6931472
    %v3444 = vadd.f32 %v3426, %v3441
    %v3445 = vadd.f32 %v3427, %v3443
    %vm3446 = vcmp.eq.s32.totalorder %v3424, 0
    %vm3447 = vcmp.eq.s32.totalorder %v3425, 0
    %v3448 = vsel %vm3446, %v3406, %v3422
    %v3449 = vsel %vm3447, %v3407, %v3423
    %v3450 = vsub.f32 %v3444, %v3448
    %v3451 = vsub.f32 %v3445, %v3449
    %vm3452 = vcmask 7168
    %v3453 = vsel %vm3452, %v3450, 0.0
    %v3454 = vsel %vm3452, %v3451, 0.0
    %v3455 = vadd.f32 %v3453, %v3454
    %3456 = vadd.xlane.f32.xlu0 %v3455
    %v3457 = vpop.xlane.xlu0 %3456
    %v3458 = vrot.slane %v3457, 4
    %v3459 = vadd.f32 %v3457, %v3458
    %v3460 = vrot.slane %v3459, 2
    %v3461 = vadd.f32 %v3459, %v3460
    %v3462 = vrot.slane %v3461, 1
    %v3463 = vadd.f32 %v3461, %v3462
    %s3464 = vtos %v3463
    %v3465 = vrcp.pop 16.0
    %s3466 = vtos %v3465
    %s3467 = smul.f32 %s3464, %s3466
    %s3468 = scalar_lea.smem [#allocation5], 0
    %3469 = sst [smem:[%s3468]] %s3467
    // Predicated region
    $region50: #{forward.1} parent=1 // pred_check
      _
    $region51: #{forward.1} parent=1 // pred_check_branch
      %3471 = sbr.rel (0) target = $region53
    $region52: #{forward.1} parent=1 // pred_region
      %s3473 = ssub.s32 16, 16
      %3474 = vsyncadd [#allocation3], %s3473
      %3477 = dma.smem_to_hbm [#allocation5], 16, %s11, [#allocation3]
    $region53: #{forward.1} parent=1 // pred_fallthru
      _
    // Predicated region
    $region54: #{forward.1} parent=1 // pred_check
      _
    $region55: #{forward.1} parent=1 // pred_check_branch
      %3479 = sbr.rel (0) target = $region57
    $region56: #{forward.1} parent=1 // pred_region
      %3480 = dma.done [#allocation3], 16
    $region57: #{forward.1} parent=1 // pred_fallthru
      _
    %3481 = sfence
    %3482 = vsyncpa [#allocation3], 1
    %3483 = vsyncpa [#allocation4], 1

</llo_original>
